<compile_context>
chip_gen: v6e
topology: v6e:2x2x1
jax: 0.10.0
libtpu: 0.0.40
codegen_flags: <defaults>
</compile_context>

<pallas_src>
import math
import functools

import jax
import jax.numpy as jnp
from jax import lax
from jax.experimental import pallas as pl
from jax.experimental.pallas import tpu as pltpu

LN_EPS = 1e-5


# ----------------------------------------------------------------------------
# In-kernel helpers (also used on host for the hoisted constant query)
# ----------------------------------------------------------------------------
def _ln(x, g, b, eps=LN_EPS):
    mean = jnp.mean(x, axis=-1, keepdims=True)
    var = jnp.mean((x - mean) ** 2, axis=-1, keepdims=True)
    return (x - mean) * lax.rsqrt(var + eps) * g + b


def _mh_attention(q, k, v, num_heads, scratch_ref):
    """All-head scaled dot-product attention inside the kernel.

    q: (Lq, d_att), k/v: (Lk, d_att). Per-head outputs are written into
    scratch_ref (Lq, d_att); returns the merged (Lq, d_att) result.
    """
    d_att = q.shape[-1]
    hd = d_att // num_heads
    scale = 1.0 / math.sqrt(hd)
    for h in range(num_heads):
        sl = slice(h * hd, (h + 1) * hd)
        qh = q[:, sl]
        kh = k[:, sl]
        vh = v[:, sl]
        # q @ k^T without an explicit transpose: contract on last dims.
        s = lax.dot_general(qh, kh, (((1,), (1,)), ((), ())),
                            preferred_element_type=jnp.float32) * scale
        s = s - jnp.max(s, axis=-1, keepdims=True)
        p = jnp.exp(s)
        p = p / jnp.sum(p, axis=-1, keepdims=True)
        scratch_ref[:, sl] = jnp.dot(p, vh, preferred_element_type=jnp.float32)
    return scratch_ref[...]


# ----------------------------------------------------------------------------
# Fused whole-forward kernel (one grid step per batch element)
# ----------------------------------------------------------------------------
def make_encoder_kernel(num_heads, d_att):
    def kernel(x_in_ref,                     # (1, N, d_input)
               q_ca_ref,                     # (L, d_att)     hoisted const query
               xl0_ref,                      # (L, d_latent)  xLatentInit
               ln_in_g_ref, ln_in_b_ref,     # (1, d_input)
               ca_wkv_ref, ca_bkv_ref,       # (d_input, 2*d_att), (1, 2*d_att)
               ca_wo_ref, ca_bo_ref,         # (d_att, d_latent), (1, d_latent)
               mlp_ln_g_ref, mlp_ln_b_ref,   # (1, d_latent)
               mlp_w1_ref, mlp_b1_ref,       # (d_latent, W), (1, W)
               mlp_w2_ref, mlp_b2_ref,       # (W, d_latent), (1, d_latent)
               sa_ln1_g_ref, sa_ln1_b_ref,   # (depth, d_latent)
               sa_wqkv_ref, sa_bqkv_ref,     # (depth, d_latent, 3*d_att), (depth, 3*d_att)
               sa_wo_ref, sa_bo_ref,         # (depth, d_att, d_latent), (depth, d_latent)
               sa_ln2_g_ref, sa_ln2_b_ref,   # (depth, d_latent)
               sa_w1_ref, sa_b1_ref,         # (depth, d_latent, W), (depth, W)
               sa_w2_ref, sa_b2_ref,         # (depth, W, d_latent), (depth, d_latent)
               o_ref,                        # (1, L, d_latent)
               attn_scratch):                # VMEM (L, d_att)

        # ---- Cross-attention block (query precomputed, batch-independent) ----
        kv_in = _ln(x_in_ref[0], ln_in_g_ref[...], ln_in_b_ref[...])
        kv = jnp.dot(kv_in, ca_wkv_ref[...],
                     preferred_element_type=jnp.float32) + ca_bkv_ref[...]
        k = kv[:, :d_att]
        v = kv[:, d_att:]
        att = _mh_attention(q_ca_ref[...], k, v, num_heads, attn_scratch)
        ca_out = jnp.dot(att, ca_wo_ref[...],
                         preferred_element_type=jnp.float32) + ca_bo_ref[...]
        x_lat = xl0_ref[...] + ca_out

        # ---- First MLP block ----
        h = _ln(x_lat, mlp_ln_g_ref[...], mlp_ln_b_ref[...])
        h = jnp.maximum(jnp.dot(h, mlp_w1_ref[...],
                                preferred_element_type=jnp.float32)
                        + mlp_b1_ref[...], 0.0)
        x_lat = x_lat + (jnp.dot(h, mlp_w2_ref[...],
                                 preferred_element_type=jnp.float32)
                         + mlp_b2_ref[...])

        # ---- Self-attention tower (stacked params, all depth in one kernel) ----
        depth = sa_wqkv_ref.shape[0]
        for d in range(depth):
            hn = _ln(x_lat, sa_ln1_g_ref[d:d + 1], sa_ln1_b_ref[d:d + 1])
            qkv = jnp.dot(hn, sa_wqkv_ref[d],
                          preferred_element_type=jnp.float32) + sa_bqkv_ref[d:d + 1]
            qd = qkv[:, 0 * d_att:1 * d_att]
            kd = qkv[:, 1 * d_att:2 * d_att]
            vd = qkv[:, 2 * d_att:3 * d_att]
            attd = _mh_attention(qd, kd, vd, num_heads, attn_scratch)
            x_lat = x_lat + (jnp.dot(attd, sa_wo_ref[d],
                                     preferred_element_type=jnp.float32)
                             + sa_bo_ref[d:d + 1])
            hn = _ln(x_lat, sa_ln2_g_ref[d:d + 1], sa_ln2_b_ref[d:d + 1])
            hn = jnp.maximum(jnp.dot(hn, sa_w1_ref[d],
                                     preferred_element_type=jnp.float32)
                             + sa_b1_ref[d:d + 1], 0.0)
            x_lat = x_lat + (jnp.dot(hn, sa_w2_ref[d],
                                     preferred_element_type=jnp.float32)
                             + sa_b2_ref[d:d + 1])

        o_ref[0] = x_lat

    return kernel


# ----------------------------------------------------------------------------
# Parameter packing (done once, outside the kernel)
# ----------------------------------------------------------------------------
def pack_params(params):
    """Fuse QKV weights, stack tower params over depth, hoist the constant
    cross-attention query (LayerNorm(xLatentInit) @ Wq + bq)."""
    xl0 = params["xLatentInit"][0]                               # (L, d_latent)
    q_ca = _ln(xl0, params["ln_ca"]["g"], params["ln_ca"]["b"])
    q_ca = q_ca @ params["ca"]["wq"] + params["ca"]["bq"]        # (L, d_att)

    row = lambda vv: vv.reshape(1, -1)
    ca = params["ca"]
    mlp = params["mlp"]
    sa = params["sa_blocks"]
    stk = lambda f: jnp.stack([f(b) for b in sa])

    packed = (
        q_ca,
        xl0,
        row(params["ln_in"]["g"]), row(params["ln_in"]["b"]),
        jnp.concatenate([ca["wk"], ca["wv"]], axis=1),
        row(jnp.concatenate([ca["bk"], ca["bv"]])),
        ca["wo"], row(ca["bo"]),
        row(params["ln_mlp"]["g"]), row(params["ln_mlp"]["b"]),
        mlp["w1"], row(mlp["b1"]), mlp["w2"], row(mlp["b2"]),
        stk(lambda b: b["ln_att"]["g"]), stk(lambda b: b["ln_att"]["b"]),
        stk(lambda b: jnp.concatenate(
            [b["att"]["wq"], b["att"]["wk"], b["att"]["wv"]], axis=1)),
        stk(lambda b: jnp.concatenate(
            [b["att"]["bq"], b["att"]["bk"], b["att"]["bv"]])),
        stk(lambda b: b["att"]["wo"]), stk(lambda b: b["att"]["bo"]),
        stk(lambda b: b["ln_mlp"]["g"]), stk(lambda b: b["ln_mlp"]["b"]),
        stk(lambda b: b["mlp"]["w1"]), stk(lambda b: b["mlp"]["b1"]),
        stk(lambda b: b["mlp"]["w2"]), stk(lambda b: b["mlp"]["b2"]),
    )
    return packed


@functools.partial(jax.jit, static_argnums=(2,))
def encoder_io_forward(x_input, packed, num_heads):
    B, N, d_input = x_input.shape
    q_ca = packed[0]
    L, d_att = q_ca.shape
    d_latent = packed[1].shape[-1]

    kernel = make_encoder_kernel(num_heads, d_att)

    def full_spec(a):
        nd = a.ndim
        return pl.BlockSpec(a.shape, lambda b, _n=nd: (0,) * _n)

    in_specs = [pl.BlockSpec((1, N, d_input), lambda b: (b, 0, 0))]
    in_specs += [full_spec(a) for a in packed]

    return pl.pallas_call(
        kernel,
        out_shape=jax.ShapeDtypeStruct((B, L, d_latent), x_input.dtype),
        grid=(B,),
        in_specs=in_specs,
        out_specs=pl.BlockSpec((1, L, d_latent), lambda b: (b, 0, 0)),
        scratch_shapes=[pltpu.VMEM((L, d_att), jnp.float32)],
        compiler_params=pltpu.CompilerParams(
            dimension_semantics=("parallel",)),
    )(x_input, *packed)


# ----------------------------------------------------------------------------
# Pure-JAX reference (for a correctness sanity check)
# ----------------------------------------------------------------------------
def reference_forward(x_input, params, num_heads):
    HP = lax.Precision.HIGHEST

    def ln(x, g, b, eps=LN_EPS):
        m = jnp.mean(x, -1, keepdims=True)
        v = jnp.mean((x - m) ** 2, -1, keepdims=True)
        return (x - m) / jnp.sqrt(v + eps) * g + b

    def mha(xq, xkv, p, H):
        q = jnp.einsum("btd,de->bte", xq, p["wq"], precision=HP) + p["bq"]
        k = jnp.einsum("btd,de->bte", xkv, p["wk"], precision=HP) + p["bk"]
        v = jnp.einsum("btd,de->bte", xkv, p["wv"], precision=HP) + p["bv"]
        B, Lq, D = q.shape
        Lk = k.shape[1]
        hd = D // H
        q = q.reshape(B, Lq, H, hd).transpose(0, 2, 1, 3)
        k = k.reshape(B, Lk, H, hd).transpose(0, 2, 1, 3)
        v = v.reshape(B, Lk, H, hd).transpose(0, 2, 1, 3)
        s = jnp.einsum("bhqd,bhkd->bhqk", q, k, precision=HP) / math.sqrt(hd)
        a = jax.nn.softmax(s, axis=-1)
        o = jnp.einsum("bhqk,bhkd->bhqd", a, v, precision=HP)
        o = o.transpose(0, 2, 1, 3).reshape(B, Lq, D)
        return jnp.einsum("btd,de->bte", o, p["wo"], precision=HP) + p["bo"]

    def ffn(x, p):
        h = jnp.maximum(
            jnp.einsum("btd,dh->bth", x, p["w1"], precision=HP) + p["b1"], 0.0)
        return jnp.einsum("bth,hd->btd", h, p["w2"], precision=HP) + p["b2"]

    B = x_input.shape[0]
    xl0 = params["xLatentInit"]
    q_in = ln(xl0, params["ln_ca"]["g"], params["ln_ca"]["b"])
    q_in = jnp.broadcast_to(q_in, (B,) + q_in.shape[1:])
    kv_in = ln(x_input, params["ln_in"]["g"], params["ln_in"]["b"])
    x_lat = xl0 + mha(q_in, kv_in, params["ca"], num_heads)
    x_lat = x_lat + ffn(
        ln(x_lat, params["ln_mlp"]["g"], params["ln_mlp"]["b"]), params["mlp"])
    for blk in params["sa_blocks"]:
        h = ln(x_lat, blk["ln_att"]["g"], blk["ln_att"]["b"])
        x_lat = x_lat + mha(h, h, blk["att"], num_heads)
        h = ln(x_lat, blk["ln_mlp"]["g"], blk["ln_mlp"]["b"])
        x_lat = x_lat + ffn(h, blk["mlp"])
    return x_lat


# ----------------------------------------------------------------------------
# Deterministic parameter construction
# ----------------------------------------------------------------------------
def init_params(key, d_latent, d_input, d_att, latent_len, depth, width):
    def nrm(k, shape, scale=0.02):
        return scale * jax.random.normal(k, shape, dtype=jnp.float32)

    def ln_p(d):
        return {"g": jnp.ones((d,), jnp.float32), "b": jnp.zeros((d,), jnp.float32)}

    def attn(k, d_q, d_kv, d_out):
        ks = jax.random.split(k, 4)
        return {
            "wq": nrm(ks[0], (d_q, d_att)), "bq": jnp.zeros((d_att,), jnp.float32),
            "wk": nrm(ks[1], (d_kv, d_att)), "bk": jnp.zeros((d_att,), jnp.float32),
            "wv": nrm(ks[2], (d_kv, d_att)), "bv": jnp.zeros((d_att,), jnp.float32),
            "wo": nrm(ks[3], (d_att, d_out)), "bo": jnp.zeros((d_out,), jnp.float32),
        }

    def ffn_p(k, d_in, d_out):
        k1, k2 = jax.random.split(k)
        return {
            "w1": nrm(k1, (d_in, width)), "b1": jnp.zeros((width,), jnp.float32),
            "w2": nrm(k2, (width, d_out)), "b2": jnp.zeros((d_out,), jnp.float32),
        }

    keys = jax.random.split(key, 2 + depth)
    params = {
        "xLatentInit": jnp.zeros((1, latent_len, d_latent), jnp.float32),  # relative=True buffer
        "ln_ca": ln_p(d_latent),
        "ln_in": ln_p(d_input),
        "ca": attn(keys[0], d_latent, d_input, d_latent),
        "ln_mlp": ln_p(d_latent),
        "mlp": ffn_p(keys[1], d_latent, d_latent),
        "sa_blocks": [],
    }
    for i in range(depth):
        ka, kf = jax.random.split(keys[2 + i])
        params["sa_blocks"].append({
            "ln_att": ln_p(d_latent),
            "att": attn(ka, d_latent, d_latent, d_latent),
            "ln_mlp": ln_p(d_latent),
            "mlp": ffn_p(kf, d_latent, d_latent),
        })
    return params


# ----------------------------------------------------------------------------
if __name__ == "__main__":
    # Small, forward-consistent shapes
    B, N = 2, 16            # batch, input sequence length
    d_input = 16
    d_latent = 32
    d_att = 32
    num_heads = 4           # head_dim = 8
    latent_len = 8
    depth = 2               # SelfAttentionDepth
    width = 64              # WidthsFeedForward=[64]

    key = jax.random.PRNGKey(0)
    k_x, k_p = jax.random.split(key)
    x_input = jax.random.normal(k_x, (B, N, d_input), dtype=jnp.float32)
    params = init_params(k_p, d_latent, d_input, d_att, latent_len, depth, width)

    packed = pack_params(params)
    out = encoder_io_forward(x_input, packed, num_heads)
    out = jax.block_until_ready(out)

    assert out.shape == (B, latent_len, d_latent)
    assert jnp.all(jnp.isfinite(out))

    ref = reference_forward(x_input, params, num_heads)
    assert jnp.allclose(out, ref, rtol=2e-3, atol=2e-3)

    print("KERNEL_OK")
</pallas_src>

<mosaic_0001>
module attributes {stable_mosaic.version = 11 : i64} {
  func.func @kernel(%arg0: i32, %arg1: memref<1x16x16xf32, #tpu.memory_space<vmem>>, %arg2: memref<8x32xf32, #tpu.memory_space<vmem>>, %arg3: memref<8x32xf32, #tpu.memory_space<vmem>>, %arg4: memref<1x16xf32, #tpu.memory_space<vmem>>, %arg5: memref<1x16xf32, #tpu.memory_space<vmem>>, %arg6: memref<16x64xf32, #tpu.memory_space<vmem>>, %arg7: memref<1x64xf32, #tpu.memory_space<vmem>>, %arg8: memref<32x32xf32, #tpu.memory_space<vmem>>, %arg9: memref<1x32xf32, #tpu.memory_space<vmem>>, %arg10: memref<1x32xf32, #tpu.memory_space<vmem>>, %arg11: memref<1x32xf32, #tpu.memory_space<vmem>>, %arg12: memref<32x64xf32, #tpu.memory_space<vmem>>, %arg13: memref<1x64xf32, #tpu.memory_space<vmem>>, %arg14: memref<64x32xf32, #tpu.memory_space<vmem>>, %arg15: memref<1x32xf32, #tpu.memory_space<vmem>>, %arg16: memref<2x32xf32, #tpu.memory_space<vmem>>, %arg17: memref<2x32xf32, #tpu.memory_space<vmem>>, %arg18: memref<2x32x96xf32, #tpu.memory_space<vmem>>, %arg19: memref<2x96xf32, #tpu.memory_space<vmem>>, %arg20: memref<2x32x32xf32, #tpu.memory_space<vmem>>, %arg21: memref<2x32xf32, #tpu.memory_space<vmem>>, %arg22: memref<2x32xf32, #tpu.memory_space<vmem>>, %arg23: memref<2x32xf32, #tpu.memory_space<vmem>>, %arg24: memref<2x32x64xf32, #tpu.memory_space<vmem>>, %arg25: memref<2x64xf32, #tpu.memory_space<vmem>>, %arg26: memref<2x64x32xf32, #tpu.memory_space<vmem>>, %arg27: memref<2x32xf32, #tpu.memory_space<vmem>>, %arg28: memref<1x8x32xf32, #tpu.memory_space<vmem>>, %arg29: memref<8x32xf32, #tpu.memory_space<vmem>>) attributes {dimension_semantics = [#tpu.dimension_semantics<parallel>], iteration_bounds = array<i64: 2>, scalar_prefetch = 0 : i64, scratch_operands = 1 : i64, tpu.core_type = #tpu.core_type<tc>, window_params = [{transform_indices = @transform_0, window_bounds = array<i64: 1, 16, 16>}, {pipeline_mode = #tpu.pipeline_mode<synchronous>, transform_indices = @transform_1, window_bounds = array<i64: 8, 32>}, {pipeline_mode = #tpu.pipeline_mode<synchronous>, transform_indices = @transform_2, window_bounds = array<i64: 8, 32>}, {pipeline_mode = #tpu.pipeline_mode<synchronous>, transform_indices = @transform_3, window_bounds = array<i64: 1, 16>}, {pipeline_mode = #tpu.pipeline_mode<synchronous>, transform_indices = @transform_4, window_bounds = array<i64: 1, 16>}, {pipeline_mode = #tpu.pipeline_mode<synchronous>, transform_indices = @transform_5, window_bounds = array<i64: 16, 64>}, {pipeline_mode = #tpu.pipeline_mode<synchronous>, transform_indices = @transform_6, window_bounds = array<i64: 1, 64>}, {pipeline_mode = #tpu.pipeline_mode<synchronous>, transform_indices = @transform_7, window_bounds = array<i64: 32, 32>}, {pipeline_mode = #tpu.pipeline_mode<synchronous>, transform_indices = @transform_8, window_bounds = array<i64: 1, 32>}, {pipeline_mode = #tpu.pipeline_mode<synchronous>, transform_indices = @transform_9, window_bounds = array<i64: 1, 32>}, {pipeline_mode = #tpu.pipeline_mode<synchronous>, transform_indices = @transform_10, window_bounds = array<i64: 1, 32>}, {pipeline_mode = #tpu.pipeline_mode<synchronous>, transform_indices = @transform_11, window_bounds = array<i64: 32, 64>}, {pipeline_mode = #tpu.pipeline_mode<synchronous>, transform_indices = @transform_12, window_bounds = array<i64: 1, 64>}, {pipeline_mode = #tpu.pipeline_mode<synchronous>, transform_indices = @transform_13, window_bounds = array<i64: 64, 32>}, {pipeline_mode = #tpu.pipeline_mode<synchronous>, transform_indices = @transform_14, window_bounds = array<i64: 1, 32>}, {pipeline_mode = #tpu.pipeline_mode<synchronous>, transform_indices = @transform_15, window_bounds = array<i64: 2, 32>}, {pipeline_mode = #tpu.pipeline_mode<synchronous>, transform_indices = @transform_16, window_bounds = array<i64: 2, 32>}, {pipeline_mode = #tpu.pipeline_mode<synchronous>, transform_indices = @transform_17, window_bounds = array<i64: 2, 32, 96>}, {pipeline_mode = #tpu.pipeline_mode<synchronous>, transform_indices = @transform_18, window_bounds = array<i64: 2, 96>}, {pipeline_mode = #tpu.pipeline_mode<synchronous>, transform_indices = @transform_19, window_bounds = array<i64: 2, 32, 32>}, {pipeline_mode = #tpu.pipeline_mode<synchronous>, transform_indices = @transform_20, window_bounds = array<i64: 2, 32>}, {pipeline_mode = #tpu.pipeline_mode<synchronous>, transform_indices = @transform_21, window_bounds = array<i64: 2, 32>}, {pipeline_mode = #tpu.pipeline_mode<synchronous>, transform_indices = @transform_22, window_bounds = array<i64: 2, 32>}, {pipeline_mode = #tpu.pipeline_mode<synchronous>, transform_indices = @transform_23, window_bounds = array<i64: 2, 32, 64>}, {pipeline_mode = #tpu.pipeline_mode<synchronous>, transform_indices = @transform_24, window_bounds = array<i64: 2, 64>}, {pipeline_mode = #tpu.pipeline_mode<synchronous>, transform_indices = @transform_25, window_bounds = array<i64: 2, 64, 32>}, {pipeline_mode = #tpu.pipeline_mode<synchronous>, transform_indices = @transform_26, window_bounds = array<i64: 2, 32>}, {transform_indices = @transform_27, window_bounds = array<i64: 1, 8, 32>}]} {
    %c0 = arith.constant 0 : index
    %c0_0 = arith.constant 0 : index
    %c0_1 = arith.constant 0 : index
    %0 = vector.load %arg1[%c0, %c0_0, %c0_1] : memref<1x16x16xf32, #tpu.memory_space<vmem>>, vector<1x16x16xf32>
    %1 = vector.shape_cast %0 : vector<1x16x16xf32> to vector<16x16xf32>
    %c0_2 = arith.constant 0 : index
    %c0_3 = arith.constant 0 : index
    %2 = vector.load %arg4[%c0_2, %c0_3] : memref<1x16xf32, #tpu.memory_space<vmem>>, vector<1x16xf32>
    %c0_4 = arith.constant 0 : index
    %c0_5 = arith.constant 0 : index
    %3 = vector.load %arg5[%c0_4, %c0_5] : memref<1x16xf32, #tpu.memory_space<vmem>>, vector<1x16xf32>
    %cst = arith.constant dense<0.000000e+00> : vector<16xf32>
    %4 = vector.multi_reduction <add>, %1, %cst [1] : vector<16x16xf32> to vector<16xf32>
    %5 = vector.shape_cast %4 : vector<16xf32> to vector<16x1xf32>
    %cst_6 = arith.constant 1.600000e+01 : f32
    %6 = vector.broadcast %cst_6 : f32 to vector<16x1xf32>
    %7 = arith.divf %5, %6 : vector<16x1xf32>
    %8 = vector.broadcast %7 : vector<16x1xf32> to vector<16x16xf32>
    %9 = arith.subf %1, %8 : vector<16x16xf32>
    %10 = arith.mulf %9, %9 : vector<16x16xf32>
    %cst_7 = arith.constant dense<0.000000e+00> : vector<16xf32>
    %11 = vector.multi_reduction <add>, %10, %cst_7 [1] : vector<16x16xf32> to vector<16xf32>
    %12 = vector.shape_cast %11 : vector<16xf32> to vector<16x1xf32>
    %cst_8 = arith.constant 1.600000e+01 : f32
    %13 = vector.broadcast %cst_8 : f32 to vector<16x1xf32>
    %14 = arith.divf %12, %13 : vector<16x1xf32>
    %15 = vector.broadcast %7 : vector<16x1xf32> to vector<16x16xf32>
    %16 = arith.subf %1, %15 : vector<16x16xf32>
    %cst_9 = arith.constant 9.99999974E-6 : f32
    %17 = vector.broadcast %cst_9 : f32 to vector<16x1xf32>
    %18 = arith.addf %14, %17 : vector<16x1xf32>
    %19 = math.rsqrt %18 : vector<16x1xf32>
    %20 = vector.broadcast %19 : vector<16x1xf32> to vector<16x16xf32>
    %21 = arith.mulf %16, %20 : vector<16x16xf32>
    %22 = vector.broadcast %2 : vector<1x16xf32> to vector<16x16xf32>
    %23 = arith.mulf %21, %22 : vector<16x16xf32>
    %24 = vector.broadcast %3 : vector<1x16xf32> to vector<16x16xf32>
    %25 = arith.addf %23, %24 : vector<16x16xf32>
    %c0_10 = arith.constant 0 : index
    %c0_11 = arith.constant 0 : index
    %26 = vector.load %arg6[%c0_10, %c0_11] : memref<16x64xf32, #tpu.memory_space<vmem>>, vector<16x64xf32>
    %cst_12 = arith.constant dense<0.000000e+00> : vector<16x64xf32>
    %27 = tpu.matmul %25, %26, %cst_12 {dimension_numbers = #tpu.dot_dimension_numbers<[1], [0], [0], [1], [0, 0, 1, 1], [], []>} : vector<16x16xf32>, vector<16x64xf32>, vector<16x64xf32> -> vector<16x64xf32>
    %c0_13 = arith.constant 0 : index
    %c0_14 = arith.constant 0 : index
    %28 = vector.load %arg7[%c0_13, %c0_14] : memref<1x64xf32, #tpu.memory_space<vmem>>, vector<1x64xf32>
    %29 = vector.broadcast %28 : vector<1x64xf32> to vector<16x64xf32>
    %30 = arith.addf %27, %29 : vector<16x64xf32>
    %31 = vector.extract_strided_slice %30 {offsets = [0, 0], sizes = [16, 32], strides = [1, 1]} : vector<16x64xf32> to vector<16x32xf32>
    %32 = vector.extract_strided_slice %30 {offsets = [0, 32], sizes = [16, 32], strides = [1, 1]} : vector<16x64xf32> to vector<16x32xf32>
    %c0_15 = arith.constant 0 : index
    %c0_16 = arith.constant 0 : index
    %33 = vector.load %arg2[%c0_15, %c0_16] : memref<8x32xf32, #tpu.memory_space<vmem>>, vector<8x32xf32>
    %34 = vector.extract_strided_slice %33 {offsets = [0, 0], sizes = [8, 8], strides = [1, 1]} : vector<8x32xf32> to vector<8x8xf32>
    %35 = vector.extract_strided_slice %31 {offsets = [0, 0], sizes = [16, 8], strides = [1, 1]} : vector<16x32xf32> to vector<16x8xf32>
    %36 = vector.extract_strided_slice %32 {offsets = [0, 0], sizes = [16, 8], strides = [1, 1]} : vector<16x32xf32> to vector<16x8xf32>
    %cst_17 = arith.constant dense<0.000000e+00> : vector<8x16xf32>
    %37 = tpu.matmul %34, %35, %cst_17 {dimension_numbers = #tpu.dot_dimension_numbers<[1], [1], [0], [0], [0, 0, 1, 0], [], []>} : vector<8x8xf32>, vector<16x8xf32>, vector<8x16xf32> -> vector<8x16xf32>
    %cst_18 = arith.constant 0.353553385 : f32
    %38 = vector.broadcast %cst_18 : f32 to vector<8x16xf32>
    %39 = arith.mulf %37, %38 : vector<8x16xf32>
    %cst_19 = arith.constant dense<0xFF800000> : vector<8xf32>
    %40 = vector.multi_reduction <maximumf>, %39, %cst_19 [1] : vector<8x16xf32> to vector<8xf32>
    %41 = vector.shape_cast %40 : vector<8xf32> to vector<8x1xf32>
    %42 = vector.broadcast %41 : vector<8x1xf32> to vector<8x16xf32>
    %43 = arith.subf %39, %42 : vector<8x16xf32>
    %44 = math.exp %43 : vector<8x16xf32>
    %cst_20 = arith.constant dense<0.000000e+00> : vector<8xf32>
    %45 = vector.multi_reduction <add>, %44, %cst_20 [1] : vector<8x16xf32> to vector<8xf32>
    %46 = vector.shape_cast %45 : vector<8xf32> to vector<8x1xf32>
    %47 = vector.broadcast %46 : vector<8x1xf32> to vector<8x16xf32>
    %48 = arith.divf %44, %47 : vector<8x16xf32>
    %cst_21 = arith.constant dense<0.000000e+00> : vector<8x8xf32>
    %49 = tpu.matmul %48, %36, %cst_21 {dimension_numbers = #tpu.dot_dimension_numbers<[1], [0], [0], [1], [0, 0, 1, 1], [], []>} : vector<8x16xf32>, vector<16x8xf32>, vector<8x8xf32> -> vector<8x8xf32>
    %c0_22 = arith.constant 0 : index
    %c0_23 = arith.constant 0 : index
    %50 = vector.load %arg29[%c0_22, %c0_23] : memref<8x32xf32, #tpu.memory_space<vmem>>, vector<8x8xf32>
    tpu.vector_store %arg29[%c0_22, %c0_23], %49 {strides = array<i32>} : memref<8x32xf32, #tpu.memory_space<vmem>>, vector<8x8xf32>,
    %51 = vector.extract_strided_slice %33 {offsets = [0, 8], sizes = [8, 8], strides = [1, 1]} : vector<8x32xf32> to vector<8x8xf32>
    %52 = vector.extract_strided_slice %31 {offsets = [0, 8], sizes = [16, 8], strides = [1, 1]} : vector<16x32xf32> to vector<16x8xf32>
    %53 = vector.extract_strided_slice %32 {offsets = [0, 8], sizes = [16, 8], strides = [1, 1]} : vector<16x32xf32> to vector<16x8xf32>
    %cst_24 = arith.constant dense<0.000000e+00> : vector<8x16xf32>
    %54 = tpu.matmul %51, %52, %cst_24 {dimension_numbers = #tpu.dot_dimension_numbers<[1], [1], [0], [0], [0, 0, 1, 0], [], []>} : vector<8x8xf32>, vector<16x8xf32>, vector<8x16xf32> -> vector<8x16xf32>
    %cst_25 = arith.constant 0.353553385 : f32
    %55 = vector.broadcast %cst_25 : f32 to vector<8x16xf32>
    %56 = arith.mulf %54, %55 : vector<8x16xf32>
    %cst_26 = arith.constant dense<0xFF800000> : vector<8xf32>
    %57 = vector.multi_reduction <maximumf>, %56, %cst_26 [1] : vector<8x16xf32> to vector<8xf32>
    %58 = vector.shape_cast %57 : vector<8xf32> to vector<8x1xf32>
    %59 = vector.broadcast %58 : vector<8x1xf32> to vector<8x16xf32>
    %60 = arith.subf %56, %59 : vector<8x16xf32>
    %61 = math.exp %60 : vector<8x16xf32>
    %cst_27 = arith.constant dense<0.000000e+00> : vector<8xf32>
    %62 = vector.multi_reduction <add>, %61, %cst_27 [1] : vector<8x16xf32> to vector<8xf32>
    %63 = vector.shape_cast %62 : vector<8xf32> to vector<8x1xf32>
    %64 = vector.broadcast %63 : vector<8x1xf32> to vector<8x16xf32>
    %65 = arith.divf %61, %64 : vector<8x16xf32>
    %cst_28 = arith.constant dense<0.000000e+00> : vector<8x8xf32>
    %66 = tpu.matmul %65, %53, %cst_28 {dimension_numbers = #tpu.dot_dimension_numbers<[1], [0], [0], [1], [0, 0, 1, 1], [], []>} : vector<8x16xf32>, vector<16x8xf32>, vector<8x8xf32> -> vector<8x8xf32>
    %c0_29 = arith.constant 0 : index
    %c8 = arith.constant 8 : index
    %67 = vector.load %arg29[%c0_29, %c8] : memref<8x32xf32, #tpu.memory_space<vmem>>, vector<8x8xf32>
    tpu.vector_store %arg29[%c0_29, %c8], %66 {strides = array<i32>} : memref<8x32xf32, #tpu.memory_space<vmem>>, vector<8x8xf32>,
    %68 = vector.extract_strided_slice %33 {offsets = [0, 16], sizes = [8, 8], strides = [1, 1]} : vector<8x32xf32> to vector<8x8xf32>
    %69 = vector.extract_strided_slice %31 {offsets = [0, 16], sizes = [16, 8], strides = [1, 1]} : vector<16x32xf32> to vector<16x8xf32>
    %70 = vector.extract_strided_slice %32 {offsets = [0, 16], sizes = [16, 8], strides = [1, 1]} : vector<16x32xf32> to vector<16x8xf32>
    %cst_30 = arith.constant dense<0.000000e+00> : vector<8x16xf32>
    %71 = tpu.matmul %68, %69, %cst_30 {dimension_numbers = #tpu.dot_dimension_numbers<[1], [1], [0], [0], [0, 0, 1, 0], [], []>} : vector<8x8xf32>, vector<16x8xf32>, vector<8x16xf32> -> vector<8x16xf32>
    %cst_31 = arith.constant 0.353553385 : f32
    %72 = vector.broadcast %cst_31 : f32 to vector<8x16xf32>
    %73 = arith.mulf %71, %72 : vector<8x16xf32>
    %cst_32 = arith.constant dense<0xFF800000> : vector<8xf32>
    %74 = vector.multi_reduction <maximumf>, %73, %cst_32 [1] : vector<8x16xf32> to vector<8xf32>
    %75 = vector.shape_cast %74 : vector<8xf32> to vector<8x1xf32>
    %76 = vector.broadcast %75 : vector<8x1xf32> to vector<8x16xf32>
    %77 = arith.subf %73, %76 : vector<8x16xf32>
    %78 = math.exp %77 : vector<8x16xf32>
    %cst_33 = arith.constant dense<0.000000e+00> : vector<8xf32>
    %79 = vector.multi_reduction <add>, %78, %cst_33 [1] : vector<8x16xf32> to vector<8xf32>
    %80 = vector.shape_cast %79 : vector<8xf32> to vector<8x1xf32>
    %81 = vector.broadcast %80 : vector<8x1xf32> to vector<8x16xf32>
    %82 = arith.divf %78, %81 : vector<8x16xf32>
    %cst_34 = arith.constant dense<0.000000e+00> : vector<8x8xf32>
    %83 = tpu.matmul %82, %70, %cst_34 {dimension_numbers = #tpu.dot_dimension_numbers<[1], [0], [0], [1], [0, 0, 1, 1], [], []>} : vector<8x16xf32>, vector<16x8xf32>, vector<8x8xf32> -> vector<8x8xf32>
    %c0_35 = arith.constant 0 : index
    %c16 = arith.constant 16 : index
    %84 = vector.load %arg29[%c0_35, %c16] : memref<8x32xf32, #tpu.memory_space<vmem>>, vector<8x8xf32>
    tpu.vector_store %arg29[%c0_35, %c16], %83 {strides = array<i32>} : memref<8x32xf32, #tpu.memory_space<vmem>>, vector<8x8xf32>,
    %85 = vector.extract_strided_slice %33 {offsets = [0, 24], sizes = [8, 8], strides = [1, 1]} : vector<8x32xf32> to vector<8x8xf32>
    %86 = vector.extract_strided_slice %31 {offsets = [0, 24], sizes = [16, 8], strides = [1, 1]} : vector<16x32xf32> to vector<16x8xf32>
    %87 = vector.extract_strided_slice %32 {offsets = [0, 24], sizes = [16, 8], strides = [1, 1]} : vector<16x32xf32> to vector<16x8xf32>
    %cst_36 = arith.constant dense<0.000000e+00> : vector<8x16xf32>
    %88 = tpu.matmul %85, %86, %cst_36 {dimension_numbers = #tpu.dot_dimension_numbers<[1], [1], [0], [0], [0, 0, 1, 0], [], []>} : vector<8x8xf32>, vector<16x8xf32>, vector<8x16xf32> -> vector<8x16xf32>
    %cst_37 = arith.constant 0.353553385 : f32
    %89 = vector.broadcast %cst_37 : f32 to vector<8x16xf32>
    %90 = arith.mulf %88, %89 : vector<8x16xf32>
    %cst_38 = arith.constant dense<0xFF800000> : vector<8xf32>
    %91 = vector.multi_reduction <maximumf>, %90, %cst_38 [1] : vector<8x16xf32> to vector<8xf32>
    %92 = vector.shape_cast %91 : vector<8xf32> to vector<8x1xf32>
    %93 = vector.broadcast %92 : vector<8x1xf32> to vector<8x16xf32>
    %94 = arith.subf %90, %93 : vector<8x16xf32>
    %95 = math.exp %94 : vector<8x16xf32>
    %cst_39 = arith.constant dense<0.000000e+00> : vector<8xf32>
    %96 = vector.multi_reduction <add>, %95, %cst_39 [1] : vector<8x16xf32> to vector<8xf32>
    %97 = vector.shape_cast %96 : vector<8xf32> to vector<8x1xf32>
    %98 = vector.broadcast %97 : vector<8x1xf32> to vector<8x16xf32>
    %99 = arith.divf %95, %98 : vector<8x16xf32>
    %cst_40 = arith.constant dense<0.000000e+00> : vector<8x8xf32>
    %100 = tpu.matmul %99, %87, %cst_40 {dimension_numbers = #tpu.dot_dimension_numbers<[1], [0], [0], [1], [0, 0, 1, 1], [], []>} : vector<8x16xf32>, vector<16x8xf32>, vector<8x8xf32> -> vector<8x8xf32>
    %c0_41 = arith.constant 0 : index
    %c24 = arith.constant 24 : index
    %101 = vector.load %arg29[%c0_41, %c24] : memref<8x32xf32, #tpu.memory_space<vmem>>, vector<8x8xf32>
    tpu.vector_store %arg29[%c0_41, %c24], %100 {strides = array<i32>} : memref<8x32xf32, #tpu.memory_space<vmem>>, vector<8x8xf32>,
    %c0_42 = arith.constant 0 : index
    %c0_43 = arith.constant 0 : index
    %102 = vector.load %arg29[%c0_42, %c0_43] : memref<8x32xf32, #tpu.memory_space<vmem>>, vector<8x32xf32>
    %c0_44 = arith.constant 0 : index
    %c0_45 = arith.constant 0 : index
    %103 = vector.load %arg8[%c0_44, %c0_45] : memref<32x32xf32, #tpu.memory_space<vmem>>, vector<32x32xf32>
    %cst_46 = arith.constant dense<0.000000e+00> : vector<8x32xf32>
    %104 = tpu.matmul %102, %103, %cst_46 {dimension_numbers = #tpu.dot_dimension_numbers<[1], [0], [0], [1], [0, 0, 1, 1], [], []>} : vector<8x32xf32>, vector<32x32xf32>, vector<8x32xf32> -> vector<8x32xf32>
    %c0_47 = arith.constant 0 : index
    %c0_48 = arith.constant 0 : index
    %105 = vector.load %arg9[%c0_47, %c0_48] : memref<1x32xf32, #tpu.memory_space<vmem>>, vector<1x32xf32>
    %106 = vector.broadcast %105 : vector<1x32xf32> to vector<8x32xf32>
    %107 = arith.addf %104, %106 : vector<8x32xf32>
    %c0_49 = arith.constant 0 : index
    %c0_50 = arith.constant 0 : index
    %108 = vector.load %arg3[%c0_49, %c0_50] : memref<8x32xf32, #tpu.memory_space<vmem>>, vector<8x32xf32>
    %109 = arith.addf %108, %107 : vector<8x32xf32>
    %c0_51 = arith.constant 0 : index
    %c0_52 = arith.constant 0 : index
    %110 = vector.load %arg10[%c0_51, %c0_52] : memref<1x32xf32, #tpu.memory_space<vmem>>, vector<1x32xf32>
    %c0_53 = arith.constant 0 : index
    %c0_54 = arith.constant 0 : index
    %111 = vector.load %arg11[%c0_53, %c0_54] : memref<1x32xf32, #tpu.memory_space<vmem>>, vector<1x32xf32>
    %cst_55 = arith.constant dense<0.000000e+00> : vector<8xf32>
    %112 = vector.multi_reduction <add>, %109, %cst_55 [1] : vector<8x32xf32> to vector<8xf32>
    %113 = vector.shape_cast %112 : vector<8xf32> to vector<8x1xf32>
    %cst_56 = arith.constant 3.200000e+01 : f32
    %114 = vector.broadcast %cst_56 : f32 to vector<8x1xf32>
    %115 = arith.divf %113, %114 : vector<8x1xf32>
    %116 = vector.broadcast %115 : vector<8x1xf32> to vector<8x32xf32>
    %117 = arith.subf %109, %116 : vector<8x32xf32>
    %118 = arith.mulf %117, %117 : vector<8x32xf32>
    %cst_57 = arith.constant dense<0.000000e+00> : vector<8xf32>
    %119 = vector.multi_reduction <add>, %118, %cst_57 [1] : vector<8x32xf32> to vector<8xf32>
    %120 = vector.shape_cast %119 : vector<8xf32> to vector<8x1xf32>
    %cst_58 = arith.constant 3.200000e+01 : f32
    %121 = vector.broadcast %cst_58 : f32 to vector<8x1xf32>
    %122 = arith.divf %120, %121 : vector<8x1xf32>
    %123 = vector.broadcast %115 : vector<8x1xf32> to vector<8x32xf32>
    %124 = arith.subf %109, %123 : vector<8x32xf32>
    %cst_59 = arith.constant 9.99999974E-6 : f32
    %125 = vector.broadcast %cst_59 : f32 to vector<8x1xf32>
    %126 = arith.addf %122, %125 : vector<8x1xf32>
    %127 = math.rsqrt %126 : vector<8x1xf32>
    %128 = vector.broadcast %127 : vector<8x1xf32> to vector<8x32xf32>
    %129 = arith.mulf %124, %128 : vector<8x32xf32>
    %130 = vector.broadcast %110 : vector<1x32xf32> to vector<8x32xf32>
    %131 = arith.mulf %129, %130 : vector<8x32xf32>
    %132 = vector.broadcast %111 : vector<1x32xf32> to vector<8x32xf32>
    %133 = arith.addf %131, %132 : vector<8x32xf32>
    %c0_60 = arith.constant 0 : index
    %c0_61 = arith.constant 0 : index
    %134 = vector.load %arg12[%c0_60, %c0_61] : memref<32x64xf32, #tpu.memory_space<vmem>>, vector<32x64xf32>
    %cst_62 = arith.constant dense<0.000000e+00> : vector<8x64xf32>
    %135 = tpu.matmul %133, %134, %cst_62 {dimension_numbers = #tpu.dot_dimension_numbers<[1], [0], [0], [1], [0, 0, 1, 1], [], []>} : vector<8x32xf32>, vector<32x64xf32>, vector<8x64xf32> -> vector<8x64xf32>
    %c0_63 = arith.constant 0 : index
    %c0_64 = arith.constant 0 : index
    %136 = vector.load %arg13[%c0_63, %c0_64] : memref<1x64xf32, #tpu.memory_space<vmem>>, vector<1x64xf32>
    %137 = vector.broadcast %136 : vector<1x64xf32> to vector<8x64xf32>
    %138 = arith.addf %135, %137 : vector<8x64xf32>
    %cst_65 = arith.constant 0.000000e+00 : f32
    %139 = vector.broadcast %cst_65 : f32 to vector<8x64xf32>
    %140 = arith.maximumf %138, %139 : vector<8x64xf32>
    %c0_66 = arith.constant 0 : index
    %c0_67 = arith.constant 0 : index
    %141 = vector.load %arg14[%c0_66, %c0_67] : memref<64x32xf32, #tpu.memory_space<vmem>>, vector<64x32xf32>
    %cst_68 = arith.constant dense<0.000000e+00> : vector<8x32xf32>
    %142 = tpu.matmul %140, %141, %cst_68 {dimension_numbers = #tpu.dot_dimension_numbers<[1], [0], [0], [1], [0, 0, 1, 1], [], []>} : vector<8x64xf32>, vector<64x32xf32>, vector<8x32xf32> -> vector<8x32xf32>
    %c0_69 = arith.constant 0 : index
    %c0_70 = arith.constant 0 : index
    %143 = vector.load %arg15[%c0_69, %c0_70] : memref<1x32xf32, #tpu.memory_space<vmem>>, vector<1x32xf32>
    %144 = vector.broadcast %143 : vector<1x32xf32> to vector<8x32xf32>
    %145 = arith.addf %142, %144 : vector<8x32xf32>
    %146 = arith.addf %109, %145 : vector<8x32xf32>
    %c0_71 = arith.constant 0 : index
    %c0_72 = arith.constant 0 : index
    %147 = vector.load %arg16[%c0_71, %c0_72] : memref<2x32xf32, #tpu.memory_space<vmem>>, vector<1x32xf32>
    %c0_73 = arith.constant 0 : index
    %c0_74 = arith.constant 0 : index
    %148 = vector.load %arg17[%c0_73, %c0_74] : memref<2x32xf32, #tpu.memory_space<vmem>>, vector<1x32xf32>
    %cst_75 = arith.constant dense<0.000000e+00> : vector<8xf32>
    %149 = vector.multi_reduction <add>, %146, %cst_75 [1] : vector<8x32xf32> to vector<8xf32>
    %150 = vector.shape_cast %149 : vector<8xf32> to vector<8x1xf32>
    %cst_76 = arith.constant 3.200000e+01 : f32
    %151 = vector.broadcast %cst_76 : f32 to vector<8x1xf32>
    %152 = arith.divf %150, %151 : vector<8x1xf32>
    %153 = vector.broadcast %152 : vector<8x1xf32> to vector<8x32xf32>
    %154 = arith.subf %146, %153 : vector<8x32xf32>
    %155 = arith.mulf %154, %154 : vector<8x32xf32>
    %cst_77 = arith.constant dense<0.000000e+00> : vector<8xf32>
    %156 = vector.multi_reduction <add>, %155, %cst_77 [1] : vector<8x32xf32> to vector<8xf32>
    %157 = vector.shape_cast %156 : vector<8xf32> to vector<8x1xf32>
    %cst_78 = arith.constant 3.200000e+01 : f32
    %158 = vector.broadcast %cst_78 : f32 to vector<8x1xf32>
    %159 = arith.divf %157, %158 : vector<8x1xf32>
    %160 = vector.broadcast %152 : vector<8x1xf32> to vector<8x32xf32>
    %161 = arith.subf %146, %160 : vector<8x32xf32>
    %cst_79 = arith.constant 9.99999974E-6 : f32
    %162 = vector.broadcast %cst_79 : f32 to vector<8x1xf32>
    %163 = arith.addf %159, %162 : vector<8x1xf32>
    %164 = math.rsqrt %163 : vector<8x1xf32>
    %165 = vector.broadcast %164 : vector<8x1xf32> to vector<8x32xf32>
    %166 = arith.mulf %161, %165 : vector<8x32xf32>
    %167 = vector.broadcast %147 : vector<1x32xf32> to vector<8x32xf32>
    %168 = arith.mulf %166, %167 : vector<8x32xf32>
    %169 = vector.broadcast %148 : vector<1x32xf32> to vector<8x32xf32>
    %170 = arith.addf %168, %169 : vector<8x32xf32>
    %c0_80 = arith.constant 0 : index
    %c0_81 = arith.constant 0 : index
    %c0_82 = arith.constant 0 : index
    %171 = vector.load %arg18[%c0_80, %c0_81, %c0_82] : memref<2x32x96xf32, #tpu.memory_space<vmem>>, vector<1x32x96xf32>
    %172 = vector.shape_cast %171 : vector<1x32x96xf32> to vector<32x96xf32>
    %cst_83 = arith.constant dense<0.000000e+00> : vector<8x96xf32>
    %173 = tpu.matmul %170, %172, %cst_83 {dimension_numbers = #tpu.dot_dimension_numbers<[1], [0], [0], [1], [0, 0, 1, 1], [], []>} : vector<8x32xf32>, vector<32x96xf32>, vector<8x96xf32> -> vector<8x96xf32>
    %c0_84 = arith.constant 0 : index
    %c0_85 = arith.constant 0 : index
    %174 = vector.load %arg19[%c0_84, %c0_85] : memref<2x96xf32, #tpu.memory_space<vmem>>, vector<1x96xf32>
    %175 = vector.broadcast %174 : vector<1x96xf32> to vector<8x96xf32>
    %176 = arith.addf %173, %175 : vector<8x96xf32>
    %177 = vector.extract_strided_slice %176 {offsets = [0, 0], sizes = [8, 32], strides = [1, 1]} : vector<8x96xf32> to vector<8x32xf32>
    %178 = vector.extract_strided_slice %176 {offsets = [0, 32], sizes = [8, 32], strides = [1, 1]} : vector<8x96xf32> to vector<8x32xf32>
    %179 = vector.extract_strided_slice %176 {offsets = [0, 64], sizes = [8, 32], strides = [1, 1]} : vector<8x96xf32> to vector<8x32xf32>
    %180 = vector.extract_strided_slice %177 {offsets = [0, 0], sizes = [8, 8], strides = [1, 1]} : vector<8x32xf32> to vector<8x8xf32>
    %181 = vector.extract_strided_slice %178 {offsets = [0, 0], sizes = [8, 8], strides = [1, 1]} : vector<8x32xf32> to vector<8x8xf32>
    %182 = vector.extract_strided_slice %179 {offsets = [0, 0], sizes = [8, 8], strides = [1, 1]} : vector<8x32xf32> to vector<8x8xf32>
    %cst_86 = arith.constant dense<0.000000e+00> : vector<8x8xf32>
    %183 = tpu.matmul %180, %181, %cst_86 {dimension_numbers = #tpu.dot_dimension_numbers<[1], [1], [0], [0], [0, 0, 1, 0], [], []>} : vector<8x8xf32>, vector<8x8xf32>, vector<8x8xf32> -> vector<8x8xf32>
    %cst_87 = arith.constant 0.353553385 : f32
    %184 = vector.broadcast %cst_87 : f32 to vector<8x8xf32>
    %185 = arith.mulf %183, %184 : vector<8x8xf32>
    %cst_88 = arith.constant dense<0xFF800000> : vector<8xf32>
    %186 = vector.multi_reduction <maximumf>, %185, %cst_88 [1] : vector<8x8xf32> to vector<8xf32>
    %187 = vector.shape_cast %186 : vector<8xf32> to vector<8x1xf32>
    %188 = vector.broadcast %187 : vector<8x1xf32> to vector<8x8xf32>
    %189 = arith.subf %185, %188 : vector<8x8xf32>
    %190 = math.exp %189 : vector<8x8xf32>
    %cst_89 = arith.constant dense<0.000000e+00> : vector<8xf32>
    %191 = vector.multi_reduction <add>, %190, %cst_89 [1] : vector<8x8xf32> to vector<8xf32>
    %192 = vector.shape_cast %191 : vector<8xf32> to vector<8x1xf32>
    %193 = vector.broadcast %192 : vector<8x1xf32> to vector<8x8xf32>
    %194 = arith.divf %190, %193 : vector<8x8xf32>
    %cst_90 = arith.constant dense<0.000000e+00> : vector<8x8xf32>
    %195 = tpu.matmul %194, %182, %cst_90 {dimension_numbers = #tpu.dot_dimension_numbers<[1], [0], [0], [1], [0, 0, 1, 1], [], []>} : vector<8x8xf32>, vector<8x8xf32>, vector<8x8xf32> -> vector<8x8xf32>
    %c0_91 = arith.constant 0 : index
    %c0_92 = arith.constant 0 : index
    %196 = vector.load %arg29[%c0_91, %c0_92] : memref<8x32xf32, #tpu.memory_space<vmem>>, vector<8x8xf32>
    tpu.vector_store %arg29[%c0_91, %c0_92], %195 {strides = array<i32>} : memref<8x32xf32, #tpu.memory_space<vmem>>, vector<8x8xf32>,
    %197 = vector.extract_strided_slice %177 {offsets = [0, 8], sizes = [8, 8], strides = [1, 1]} : vector<8x32xf32> to vector<8x8xf32>
    %198 = vector.extract_strided_slice %178 {offsets = [0, 8], sizes = [8, 8], strides = [1, 1]} : vector<8x32xf32> to vector<8x8xf32>
    %199 = vector.extract_strided_slice %179 {offsets = [0, 8], sizes = [8, 8], strides = [1, 1]} : vector<8x32xf32> to vector<8x8xf32>
    %cst_93 = arith.constant dense<0.000000e+00> : vector<8x8xf32>
    %200 = tpu.matmul %197, %198, %cst_93 {dimension_numbers = #tpu.dot_dimension_numbers<[1], [1], [0], [0], [0, 0, 1, 0], [], []>} : vector<8x8xf32>, vector<8x8xf32>, vector<8x8xf32> -> vector<8x8xf32>
    %cst_94 = arith.constant 0.353553385 : f32
    %201 = vector.broadcast %cst_94 : f32 to vector<8x8xf32>
    %202 = arith.mulf %200, %201 : vector<8x8xf32>
    %cst_95 = arith.constant dense<0xFF800000> : vector<8xf32>
    %203 = vector.multi_reduction <maximumf>, %202, %cst_95 [1] : vector<8x8xf32> to vector<8xf32>
    %204 = vector.shape_cast %203 : vector<8xf32> to vector<8x1xf32>
    %205 = vector.broadcast %204 : vector<8x1xf32> to vector<8x8xf32>
    %206 = arith.subf %202, %205 : vector<8x8xf32>
    %207 = math.exp %206 : vector<8x8xf32>
    %cst_96 = arith.constant dense<0.000000e+00> : vector<8xf32>
    %208 = vector.multi_reduction <add>, %207, %cst_96 [1] : vector<8x8xf32> to vector<8xf32>
    %209 = vector.shape_cast %208 : vector<8xf32> to vector<8x1xf32>
    %210 = vector.broadcast %209 : vector<8x1xf32> to vector<8x8xf32>
    %211 = arith.divf %207, %210 : vector<8x8xf32>
    %cst_97 = arith.constant dense<0.000000e+00> : vector<8x8xf32>
    %212 = tpu.matmul %211, %199, %cst_97 {dimension_numbers = #tpu.dot_dimension_numbers<[1], [0], [0], [1], [0, 0, 1, 1], [], []>} : vector<8x8xf32>, vector<8x8xf32>, vector<8x8xf32> -> vector<8x8xf32>
    %c0_98 = arith.constant 0 : index
    %c8_99 = arith.constant 8 : index
    %213 = vector.load %arg29[%c0_98, %c8_99] : memref<8x32xf32, #tpu.memory_space<vmem>>, vector<8x8xf32>
    tpu.vector_store %arg29[%c0_98, %c8_99], %212 {strides = array<i32>} : memref<8x32xf32, #tpu.memory_space<vmem>>, vector<8x8xf32>,
    %214 = vector.extract_strided_slice %177 {offsets = [0, 16], sizes = [8, 8], strides = [1, 1]} : vector<8x32xf32> to vector<8x8xf32>
    %215 = vector.extract_strided_slice %178 {offsets = [0, 16], sizes = [8, 8], strides = [1, 1]} : vector<8x32xf32> to vector<8x8xf32>
    %216 = vector.extract_strided_slice %179 {offsets = [0, 16], sizes = [8, 8], strides = [1, 1]} : vector<8x32xf32> to vector<8x8xf32>
    %cst_100 = arith.constant dense<0.000000e+00> : vector<8x8xf32>
    %217 = tpu.matmul %214, %215, %cst_100 {dimension_numbers = #tpu.dot_dimension_numbers<[1], [1], [0], [0], [0, 0, 1, 0], [], []>} : vector<8x8xf32>, vector<8x8xf32>, vector<8x8xf32> -> vector<8x8xf32>
    %cst_101 = arith.constant 0.353553385 : f32
    %218 = vector.broadcast %cst_101 : f32 to vector<8x8xf32>
    %219 = arith.mulf %217, %218 : vector<8x8xf32>
    %cst_102 = arith.constant dense<0xFF800000> : vector<8xf32>
    %220 = vector.multi_reduction <maximumf>, %219, %cst_102 [1] : vector<8x8xf32> to vector<8xf32>
    %221 = vector.shape_cast %220 : vector<8xf32> to vector<8x1xf32>
    %222 = vector.broadcast %221 : vector<8x1xf32> to vector<8x8xf32>
    %223 = arith.subf %219, %222 : vector<8x8xf32>
    %224 = math.exp %223 : vector<8x8xf32>
    %cst_103 = arith.constant dense<0.000000e+00> : vector<8xf32>
    %225 = vector.multi_reduction <add>, %224, %cst_103 [1] : vector<8x8xf32> to vector<8xf32>
    %226 = vector.shape_cast %225 : vector<8xf32> to vector<8x1xf32>
    %227 = vector.broadcast %226 : vector<8x1xf32> to vector<8x8xf32>
    %228 = arith.divf %224, %227 : vector<8x8xf32>
    %cst_104 = arith.constant dense<0.000000e+00> : vector<8x8xf32>
    %229 = tpu.matmul %228, %216, %cst_104 {dimension_numbers = #tpu.dot_dimension_numbers<[1], [0], [0], [1], [0, 0, 1, 1], [], []>} : vector<8x8xf32>, vector<8x8xf32>, vector<8x8xf32> -> vector<8x8xf32>
    %c0_105 = arith.constant 0 : index
    %c16_106 = arith.constant 16 : index
    %230 = vector.load %arg29[%c0_105, %c16_106] : memref<8x32xf32, #tpu.memory_space<vmem>>, vector<8x8xf32>
    tpu.vector_store %arg29[%c0_105, %c16_106], %229 {strides = array<i32>} : memref<8x32xf32, #tpu.memory_space<vmem>>, vector<8x8xf32>,
    %231 = vector.extract_strided_slice %177 {offsets = [0, 24], sizes = [8, 8], strides = [1, 1]} : vector<8x32xf32> to vector<8x8xf32>
    %232 = vector.extract_strided_slice %178 {offsets = [0, 24], sizes = [8, 8], strides = [1, 1]} : vector<8x32xf32> to vector<8x8xf32>
    %233 = vector.extract_strided_slice %179 {offsets = [0, 24], sizes = [8, 8], strides = [1, 1]} : vector<8x32xf32> to vector<8x8xf32>
    %cst_107 = arith.constant dense<0.000000e+00> : vector<8x8xf32>
    %234 = tpu.matmul %231, %232, %cst_107 {dimension_numbers = #tpu.dot_dimension_numbers<[1], [1], [0], [0], [0, 0, 1, 0], [], []>} : vector<8x8xf32>, vector<8x8xf32>, vector<8x8xf32> -> vector<8x8xf32>
    %cst_108 = arith.constant 0.353553385 : f32
    %235 = vector.broadcast %cst_108 : f32 to vector<8x8xf32>
    %236 = arith.mulf %234, %235 : vector<8x8xf32>
    %cst_109 = arith.constant dense<0xFF800000> : vector<8xf32>
    %237 = vector.multi_reduction <maximumf>, %236, %cst_109 [1] : vector<8x8xf32> to vector<8xf32>
    %238 = vector.shape_cast %237 : vector<8xf32> to vector<8x1xf32>
    %239 = vector.broadcast %238 : vector<8x1xf32> to vector<8x8xf32>
    %240 = arith.subf %236, %239 : vector<8x8xf32>
    %241 = math.exp %240 : vector<8x8xf32>
    %cst_110 = arith.constant dense<0.000000e+00> : vector<8xf32>
    %242 = vector.multi_reduction <add>, %241, %cst_110 [1] : vector<8x8xf32> to vector<8xf32>
    %243 = vector.shape_cast %242 : vector<8xf32> to vector<8x1xf32>
    %244 = vector.broadcast %243 : vector<8x1xf32> to vector<8x8xf32>
    %245 = arith.divf %241, %244 : vector<8x8xf32>
    %cst_111 = arith.constant dense<0.000000e+00> : vector<8x8xf32>
    %246 = tpu.matmul %245, %233, %cst_111 {dimension_numbers = #tpu.dot_dimension_numbers<[1], [0], [0], [1], [0, 0, 1, 1], [], []>} : vector<8x8xf32>, vector<8x8xf32>, vector<8x8xf32> -> vector<8x8xf32>
    %c0_112 = arith.constant 0 : index
    %c24_113 = arith.constant 24 : index
    %247 = vector.load %arg29[%c0_112, %c24_113] : memref<8x32xf32, #tpu.memory_space<vmem>>, vector<8x8xf32>
    tpu.vector_store %arg29[%c0_112, %c24_113], %246 {strides = array<i32>} : memref<8x32xf32, #tpu.memory_space<vmem>>, vector<8x8xf32>,
    %c0_114 = arith.constant 0 : index
    %c0_115 = arith.constant 0 : index
    %248 = vector.load %arg29[%c0_114, %c0_115] : memref<8x32xf32, #tpu.memory_space<vmem>>, vector<8x32xf32>
    %c0_116 = arith.constant 0 : index
    %c0_117 = arith.constant 0 : index
    %c0_118 = arith.constant 0 : index
    %249 = vector.load %arg20[%c0_116, %c0_117, %c0_118] : memref<2x32x32xf32, #tpu.memory_space<vmem>>, vector<1x32x32xf32>
    %250 = vector.shape_cast %249 : vector<1x32x32xf32> to vector<32x32xf32>
    %cst_119 = arith.constant dense<0.000000e+00> : vector<8x32xf32>
    %251 = tpu.matmul %248, %250, %cst_119 {dimension_numbers = #tpu.dot_dimension_numbers<[1], [0], [0], [1], [0, 0, 1, 1], [], []>} : vector<8x32xf32>, vector<32x32xf32>, vector<8x32xf32> -> vector<8x32xf32>
    %c0_120 = arith.constant 0 : index
    %c0_121 = arith.constant 0 : index
    %252 = vector.load %arg21[%c0_120, %c0_121] : memref<2x32xf32, #tpu.memory_space<vmem>>, vector<1x32xf32>
    %253 = vector.broadcast %252 : vector<1x32xf32> to vector<8x32xf32>
    %254 = arith.addf %251, %253 : vector<8x32xf32>
    %255 = arith.addf %146, %254 : vector<8x32xf32>
    %c0_122 = arith.constant 0 : index
    %c0_123 = arith.constant 0 : index
    %256 = vector.load %arg22[%c0_122, %c0_123] : memref<2x32xf32, #tpu.memory_space<vmem>>, vector<1x32xf32>
    %c0_124 = arith.constant 0 : index
    %c0_125 = arith.constant 0 : index
    %257 = vector.load %arg23[%c0_124, %c0_125] : memref<2x32xf32, #tpu.memory_space<vmem>>, vector<1x32xf32>
    %cst_126 = arith.constant dense<0.000000e+00> : vector<8xf32>
    %258 = vector.multi_reduction <add>, %255, %cst_126 [1] : vector<8x32xf32> to vector<8xf32>
    %259 = vector.shape_cast %258 : vector<8xf32> to vector<8x1xf32>
    %cst_127 = arith.constant 3.200000e+01 : f32
    %260 = vector.broadcast %cst_127 : f32 to vector<8x1xf32>
    %261 = arith.divf %259, %260 : vector<8x1xf32>
    %262 = vector.broadcast %261 : vector<8x1xf32> to vector<8x32xf32>
    %263 = arith.subf %255, %262 : vector<8x32xf32>
    %264 = arith.mulf %263, %263 : vector<8x32xf32>
    %cst_128 = arith.constant dense<0.000000e+00> : vector<8xf32>
    %265 = vector.multi_reduction <add>, %264, %cst_128 [1] : vector<8x32xf32> to vector<8xf32>
    %266 = vector.shape_cast %265 : vector<8xf32> to vector<8x1xf32>
    %cst_129 = arith.constant 3.200000e+01 : f32
    %267 = vector.broadcast %cst_129 : f32 to vector<8x1xf32>
    %268 = arith.divf %266, %267 : vector<8x1xf32>
    %269 = vector.broadcast %261 : vector<8x1xf32> to vector<8x32xf32>
    %270 = arith.subf %255, %269 : vector<8x32xf32>
    %cst_130 = arith.constant 9.99999974E-6 : f32
    %271 = vector.broadcast %cst_130 : f32 to vector<8x1xf32>
    %272 = arith.addf %268, %271 : vector<8x1xf32>
    %273 = math.rsqrt %272 : vector<8x1xf32>
    %274 = vector.broadcast %273 : vector<8x1xf32> to vector<8x32xf32>
    %275 = arith.mulf %270, %274 : vector<8x32xf32>
    %276 = vector.broadcast %256 : vector<1x32xf32> to vector<8x32xf32>
    %277 = arith.mulf %275, %276 : vector<8x32xf32>
    %278 = vector.broadcast %257 : vector<1x32xf32> to vector<8x32xf32>
    %279 = arith.addf %277, %278 : vector<8x32xf32>
    %c0_131 = arith.constant 0 : index
    %c0_132 = arith.constant 0 : index
    %c0_133 = arith.constant 0 : index
    %280 = vector.load %arg24[%c0_131, %c0_132, %c0_133] : memref<2x32x64xf32, #tpu.memory_space<vmem>>, vector<1x32x64xf32>
    %281 = vector.shape_cast %280 : vector<1x32x64xf32> to vector<32x64xf32>
    %cst_134 = arith.constant dense<0.000000e+00> : vector<8x64xf32>
    %282 = tpu.matmul %279, %281, %cst_134 {dimension_numbers = #tpu.dot_dimension_numbers<[1], [0], [0], [1], [0, 0, 1, 1], [], []>} : vector<8x32xf32>, vector<32x64xf32>, vector<8x64xf32> -> vector<8x64xf32>
    %c0_135 = arith.constant 0 : index
    %c0_136 = arith.constant 0 : index
    %283 = vector.load %arg25[%c0_135, %c0_136] : memref<2x64xf32, #tpu.memory_space<vmem>>, vector<1x64xf32>
    %284 = vector.broadcast %283 : vector<1x64xf32> to vector<8x64xf32>
    %285 = arith.addf %282, %284 : vector<8x64xf32>
    %cst_137 = arith.constant 0.000000e+00 : f32
    %286 = vector.broadcast %cst_137 : f32 to vector<8x64xf32>
    %287 = arith.maximumf %285, %286 : vector<8x64xf32>
    %c0_138 = arith.constant 0 : index
    %c0_139 = arith.constant 0 : index
    %c0_140 = arith.constant 0 : index
    %288 = vector.load %arg26[%c0_138, %c0_139, %c0_140] : memref<2x64x32xf32, #tpu.memory_space<vmem>>, vector<1x64x32xf32>
    %289 = vector.shape_cast %288 : vector<1x64x32xf32> to vector<64x32xf32>
    %cst_141 = arith.constant dense<0.000000e+00> : vector<8x32xf32>
    %290 = tpu.matmul %287, %289, %cst_141 {dimension_numbers = #tpu.dot_dimension_numbers<[1], [0], [0], [1], [0, 0, 1, 1], [], []>} : vector<8x64xf32>, vector<64x32xf32>, vector<8x32xf32> -> vector<8x32xf32>
    %c0_142 = arith.constant 0 : index
    %c0_143 = arith.constant 0 : index
    %291 = vector.load %arg27[%c0_142, %c0_143] : memref<2x32xf32, #tpu.memory_space<vmem>>, vector<1x32xf32>
    %292 = vector.broadcast %291 : vector<1x32xf32> to vector<8x32xf32>
    %293 = arith.addf %290, %292 : vector<8x32xf32>
    %294 = arith.addf %255, %293 : vector<8x32xf32>
    %c1 = arith.constant 1 : index
    %c0_144 = arith.constant 0 : index
    %295 = vector.load %arg16[%c1, %c0_144] : memref<2x32xf32, #tpu.memory_space<vmem>>, vector<1x32xf32>
    %c1_145 = arith.constant 1 : index
    %c0_146 = arith.constant 0 : index
    %296 = vector.load %arg17[%c1_145, %c0_146] : memref<2x32xf32, #tpu.memory_space<vmem>>, vector<1x32xf32>
    %cst_147 = arith.constant dense<0.000000e+00> : vector<8xf32>
    %297 = vector.multi_reduction <add>, %294, %cst_147 [1] : vector<8x32xf32> to vector<8xf32>
    %298 = vector.shape_cast %297 : vector<8xf32> to vector<8x1xf32>
    %cst_148 = arith.constant 3.200000e+01 : f32
    %299 = vector.broadcast %cst_148 : f32 to vector<8x1xf32>
    %300 = arith.divf %298, %299 : vector<8x1xf32>
    %301 = vector.broadcast %300 : vector<8x1xf32> to vector<8x32xf32>
    %302 = arith.subf %294, %301 : vector<8x32xf32>
    %303 = arith.mulf %302, %302 : vector<8x32xf32>
    %cst_149 = arith.constant dense<0.000000e+00> : vector<8xf32>
    %304 = vector.multi_reduction <add>, %303, %cst_149 [1] : vector<8x32xf32> to vector<8xf32>
    %305 = vector.shape_cast %304 : vector<8xf32> to vector<8x1xf32>
    %cst_150 = arith.constant 3.200000e+01 : f32
    %306 = vector.broadcast %cst_150 : f32 to vector<8x1xf32>
    %307 = arith.divf %305, %306 : vector<8x1xf32>
    %308 = vector.broadcast %300 : vector<8x1xf32> to vector<8x32xf32>
    %309 = arith.subf %294, %308 : vector<8x32xf32>
    %cst_151 = arith.constant 9.99999974E-6 : f32
    %310 = vector.broadcast %cst_151 : f32 to vector<8x1xf32>
    %311 = arith.addf %307, %310 : vector<8x1xf32>
    %312 = math.rsqrt %311 : vector<8x1xf32>
    %313 = vector.broadcast %312 : vector<8x1xf32> to vector<8x32xf32>
    %314 = arith.mulf %309, %313 : vector<8x32xf32>
    %315 = vector.broadcast %295 : vector<1x32xf32> to vector<8x32xf32>
    %316 = arith.mulf %314, %315 : vector<8x32xf32>
    %317 = vector.broadcast %296 : vector<1x32xf32> to vector<8x32xf32>
    %318 = arith.addf %316, %317 : vector<8x32xf32>
    %c1_152 = arith.constant 1 : index
    %c0_153 = arith.constant 0 : index
    %c0_154 = arith.constant 0 : index
    %319 = vector.load %arg18[%c1_152, %c0_153, %c0_154] : memref<2x32x96xf32, #tpu.memory_space<vmem>>, vector<1x32x96xf32>
    %320 = vector.shape_cast %319 : vector<1x32x96xf32> to vector<32x96xf32>
    %cst_155 = arith.constant dense<0.000000e+00> : vector<8x96xf32>
    %321 = tpu.matmul %318, %320, %cst_155 {dimension_numbers = #tpu.dot_dimension_numbers<[1], [0], [0], [1], [0, 0, 1, 1], [], []>} : vector<8x32xf32>, vector<32x96xf32>, vector<8x96xf32> -> vector<8x96xf32>
    %c1_156 = arith.constant 1 : index
    %c0_157 = arith.constant 0 : index
    %322 = vector.load %arg19[%c1_156, %c0_157] : memref<2x96xf32, #tpu.memory_space<vmem>>, vector<1x96xf32>
    %323 = vector.broadcast %322 : vector<1x96xf32> to vector<8x96xf32>
    %324 = arith.addf %321, %323 : vector<8x96xf32>
    %325 = vector.extract_strided_slice %324 {offsets = [0, 0], sizes = [8, 32], strides = [1, 1]} : vector<8x96xf32> to vector<8x32xf32>
    %326 = vector.extract_strided_slice %324 {offsets = [0, 32], sizes = [8, 32], strides = [1, 1]} : vector<8x96xf32> to vector<8x32xf32>
    %327 = vector.extract_strided_slice %324 {offsets = [0, 64], sizes = [8, 32], strides = [1, 1]} : vector<8x96xf32> to vector<8x32xf32>
    %328 = vector.extract_strided_slice %325 {offsets = [0, 0], sizes = [8, 8], strides = [1, 1]} : vector<8x32xf32> to vector<8x8xf32>
    %329 = vector.extract_strided_slice %326 {offsets = [0, 0], sizes = [8, 8], strides = [1, 1]} : vector<8x32xf32> to vector<8x8xf32>
    %330 = vector.extract_strided_slice %327 {offsets = [0, 0], sizes = [8, 8], strides = [1, 1]} : vector<8x32xf32> to vector<8x8xf32>
    %cst_158 = arith.constant dense<0.000000e+00> : vector<8x8xf32>
    %331 = tpu.matmul %328, %329, %cst_158 {dimension_numbers = #tpu.dot_dimension_numbers<[1], [1], [0], [0], [0, 0, 1, 0], [], []>} : vector<8x8xf32>, vector<8x8xf32>, vector<8x8xf32> -> vector<8x8xf32>
    %cst_159 = arith.constant 0.353553385 : f32
    %332 = vector.broadcast %cst_159 : f32 to vector<8x8xf32>
    %333 = arith.mulf %331, %332 : vector<8x8xf32>
    %cst_160 = arith.constant dense<0xFF800000> : vector<8xf32>
    %334 = vector.multi_reduction <maximumf>, %333, %cst_160 [1] : vector<8x8xf32> to vector<8xf32>
    %335 = vector.shape_cast %334 : vector<8xf32> to vector<8x1xf32>
    %336 = vector.broadcast %335 : vector<8x1xf32> to vector<8x8xf32>
    %337 = arith.subf %333, %336 : vector<8x8xf32>
    %338 = math.exp %337 : vector<8x8xf32>
    %cst_161 = arith.constant dense<0.000000e+00> : vector<8xf32>
    %339 = vector.multi_reduction <add>, %338, %cst_161 [1] : vector<8x8xf32> to vector<8xf32>
    %340 = vector.shape_cast %339 : vector<8xf32> to vector<8x1xf32>
    %341 = vector.broadcast %340 : vector<8x1xf32> to vector<8x8xf32>
    %342 = arith.divf %338, %341 : vector<8x8xf32>
    %cst_162 = arith.constant dense<0.000000e+00> : vector<8x8xf32>
    %343 = tpu.matmul %342, %330, %cst_162 {dimension_numbers = #tpu.dot_dimension_numbers<[1], [0], [0], [1], [0, 0, 1, 1], [], []>} : vector<8x8xf32>, vector<8x8xf32>, vector<8x8xf32> -> vector<8x8xf32>
    %c0_163 = arith.constant 0 : index
    %c0_164 = arith.constant 0 : index
    %344 = vector.load %arg29[%c0_163, %c0_164] : memref<8x32xf32, #tpu.memory_space<vmem>>, vector<8x8xf32>
    tpu.vector_store %arg29[%c0_163, %c0_164], %343 {strides = array<i32>} : memref<8x32xf32, #tpu.memory_space<vmem>>, vector<8x8xf32>,
    %345 = vector.extract_strided_slice %325 {offsets = [0, 8], sizes = [8, 8], strides = [1, 1]} : vector<8x32xf32> to vector<8x8xf32>
    %346 = vector.extract_strided_slice %326 {offsets = [0, 8], sizes = [8, 8], strides = [1, 1]} : vector<8x32xf32> to vector<8x8xf32>
    %347 = vector.extract_strided_slice %327 {offsets = [0, 8], sizes = [8, 8], strides = [1, 1]} : vector<8x32xf32> to vector<8x8xf32>
    %cst_165 = arith.constant dense<0.000000e+00> : vector<8x8xf32>
    %348 = tpu.matmul %345, %346, %cst_165 {dimension_numbers = #tpu.dot_dimension_numbers<[1], [1], [0], [0], [0, 0, 1, 0], [], []>} : vector<8x8xf32>, vector<8x8xf32>, vector<8x8xf32> -> vector<8x8xf32>
    %cst_166 = arith.constant 0.353553385 : f32
    %349 = vector.broadcast %cst_166 : f32 to vector<8x8xf32>
    %350 = arith.mulf %348, %349 : vector<8x8xf32>
    %cst_167 = arith.constant dense<0xFF800000> : vector<8xf32>
    %351 = vector.multi_reduction <maximumf>, %350, %cst_167 [1] : vector<8x8xf32> to vector<8xf32>
    %352 = vector.shape_cast %351 : vector<8xf32> to vector<8x1xf32>
    %353 = vector.broadcast %352 : vector<8x1xf32> to vector<8x8xf32>
    %354 = arith.subf %350, %353 : vector<8x8xf32>
    %355 = math.exp %354 : vector<8x8xf32>
    %cst_168 = arith.constant dense<0.000000e+00> : vector<8xf32>
    %356 = vector.multi_reduction <add>, %355, %cst_168 [1] : vector<8x8xf32> to vector<8xf32>
    %357 = vector.shape_cast %356 : vector<8xf32> to vector<8x1xf32>
    %358 = vector.broadcast %357 : vector<8x1xf32> to vector<8x8xf32>
    %359 = arith.divf %355, %358 : vector<8x8xf32>
    %cst_169 = arith.constant dense<0.000000e+00> : vector<8x8xf32>
    %360 = tpu.matmul %359, %347, %cst_169 {dimension_numbers = #tpu.dot_dimension_numbers<[1], [0], [0], [1], [0, 0, 1, 1], [], []>} : vector<8x8xf32>, vector<8x8xf32>, vector<8x8xf32> -> vector<8x8xf32>
    %c0_170 = arith.constant 0 : index
    %c8_171 = arith.constant 8 : index
    %361 = vector.load %arg29[%c0_170, %c8_171] : memref<8x32xf32, #tpu.memory_space<vmem>>, vector<8x8xf32>
    tpu.vector_store %arg29[%c0_170, %c8_171], %360 {strides = array<i32>} : memref<8x32xf32, #tpu.memory_space<vmem>>, vector<8x8xf32>,
    %362 = vector.extract_strided_slice %325 {offsets = [0, 16], sizes = [8, 8], strides = [1, 1]} : vector<8x32xf32> to vector<8x8xf32>
    %363 = vector.extract_strided_slice %326 {offsets = [0, 16], sizes = [8, 8], strides = [1, 1]} : vector<8x32xf32> to vector<8x8xf32>
    %364 = vector.extract_strided_slice %327 {offsets = [0, 16], sizes = [8, 8], strides = [1, 1]} : vector<8x32xf32> to vector<8x8xf32>
    %cst_172 = arith.constant dense<0.000000e+00> : vector<8x8xf32>
    %365 = tpu.matmul %362, %363, %cst_172 {dimension_numbers = #tpu.dot_dimension_numbers<[1], [1], [0], [0], [0, 0, 1, 0], [], []>} : vector<8x8xf32>, vector<8x8xf32>, vector<8x8xf32> -> vector<8x8xf32>
    %cst_173 = arith.constant 0.353553385 : f32
    %366 = vector.broadcast %cst_173 : f32 to vector<8x8xf32>
    %367 = arith.mulf %365, %366 : vector<8x8xf32>
    %cst_174 = arith.constant dense<0xFF800000> : vector<8xf32>
    %368 = vector.multi_reduction <maximumf>, %367, %cst_174 [1] : vector<8x8xf32> to vector<8xf32>
    %369 = vector.shape_cast %368 : vector<8xf32> to vector<8x1xf32>
    %370 = vector.broadcast %369 : vector<8x1xf32> to vector<8x8xf32>
    %371 = arith.subf %367, %370 : vector<8x8xf32>
    %372 = math.exp %371 : vector<8x8xf32>
    %cst_175 = arith.constant dense<0.000000e+00> : vector<8xf32>
    %373 = vector.multi_reduction <add>, %372, %cst_175 [1] : vector<8x8xf32> to vector<8xf32>
    %374 = vector.shape_cast %373 : vector<8xf32> to vector<8x1xf32>
    %375 = vector.broadcast %374 : vector<8x1xf32> to vector<8x8xf32>
    %376 = arith.divf %372, %375 : vector<8x8xf32>
    %cst_176 = arith.constant dense<0.000000e+00> : vector<8x8xf32>
    %377 = tpu.matmul %376, %364, %cst_176 {dimension_numbers = #tpu.dot_dimension_numbers<[1], [0], [0], [1], [0, 0, 1, 1], [], []>} : vector<8x8xf32>, vector<8x8xf32>, vector<8x8xf32> -> vector<8x8xf32>
    %c0_177 = arith.constant 0 : index
    %c16_178 = arith.constant 16 : index
    %378 = vector.load %arg29[%c0_177, %c16_178] : memref<8x32xf32, #tpu.memory_space<vmem>>, vector<8x8xf32>
    tpu.vector_store %arg29[%c0_177, %c16_178], %377 {strides = array<i32>} : memref<8x32xf32, #tpu.memory_space<vmem>>, vector<8x8xf32>,
    %379 = vector.extract_strided_slice %325 {offsets = [0, 24], sizes = [8, 8], strides = [1, 1]} : vector<8x32xf32> to vector<8x8xf32>
    %380 = vector.extract_strided_slice %326 {offsets = [0, 24], sizes = [8, 8], strides = [1, 1]} : vector<8x32xf32> to vector<8x8xf32>
    %381 = vector.extract_strided_slice %327 {offsets = [0, 24], sizes = [8, 8], strides = [1, 1]} : vector<8x32xf32> to vector<8x8xf32>
    %cst_179 = arith.constant dense<0.000000e+00> : vector<8x8xf32>
    %382 = tpu.matmul %379, %380, %cst_179 {dimension_numbers = #tpu.dot_dimension_numbers<[1], [1], [0], [0], [0, 0, 1, 0], [], []>} : vector<8x8xf32>, vector<8x8xf32>, vector<8x8xf32> -> vector<8x8xf32>
    %cst_180 = arith.constant 0.353553385 : f32
    %383 = vector.broadcast %cst_180 : f32 to vector<8x8xf32>
    %384 = arith.mulf %382, %383 : vector<8x8xf32>
    %cst_181 = arith.constant dense<0xFF800000> : vector<8xf32>
    %385 = vector.multi_reduction <maximumf>, %384, %cst_181 [1] : vector<8x8xf32> to vector<8xf32>
    %386 = vector.shape_cast %385 : vector<8xf32> to vector<8x1xf32>
    %387 = vector.broadcast %386 : vector<8x1xf32> to vector<8x8xf32>
    %388 = arith.subf %384, %387 : vector<8x8xf32>
    %389 = math.exp %388 : vector<8x8xf32>
    %cst_182 = arith.constant dense<0.000000e+00> : vector<8xf32>
    %390 = vector.multi_reduction <add>, %389, %cst_182 [1] : vector<8x8xf32> to vector<8xf32>
    %391 = vector.shape_cast %390 : vector<8xf32> to vector<8x1xf32>
    %392 = vector.broadcast %391 : vector<8x1xf32> to vector<8x8xf32>
    %393 = arith.divf %389, %392 : vector<8x8xf32>
    %cst_183 = arith.constant dense<0.000000e+00> : vector<8x8xf32>
    %394 = tpu.matmul %393, %381, %cst_183 {dimension_numbers = #tpu.dot_dimension_numbers<[1], [0], [0], [1], [0, 0, 1, 1], [], []>} : vector<8x8xf32>, vector<8x8xf32>, vector<8x8xf32> -> vector<8x8xf32>
    %c0_184 = arith.constant 0 : index
    %c24_185 = arith.constant 24 : index
    %395 = vector.load %arg29[%c0_184, %c24_185] : memref<8x32xf32, #tpu.memory_space<vmem>>, vector<8x8xf32>
    tpu.vector_store %arg29[%c0_184, %c24_185], %394 {strides = array<i32>} : memref<8x32xf32, #tpu.memory_space<vmem>>, vector<8x8xf32>,
    %c0_186 = arith.constant 0 : index
    %c0_187 = arith.constant 0 : index
    %396 = vector.load %arg29[%c0_186, %c0_187] : memref<8x32xf32, #tpu.memory_space<vmem>>, vector<8x32xf32>
    %c1_188 = arith.constant 1 : index
    %c0_189 = arith.constant 0 : index
    %c0_190 = arith.constant 0 : index
    %397 = vector.load %arg20[%c1_188, %c0_189, %c0_190] : memref<2x32x32xf32, #tpu.memory_space<vmem>>, vector<1x32x32xf32>
    %398 = vector.shape_cast %397 : vector<1x32x32xf32> to vector<32x32xf32>
    %cst_191 = arith.constant dense<0.000000e+00> : vector<8x32xf32>
    %399 = tpu.matmul %396, %398, %cst_191 {dimension_numbers = #tpu.dot_dimension_numbers<[1], [0], [0], [1], [0, 0, 1, 1], [], []>} : vector<8x32xf32>, vector<32x32xf32>, vector<8x32xf32> -> vector<8x32xf32>
    %c1_192 = arith.constant 1 : index
    %c0_193 = arith.constant 0 : index
    %400 = vector.load %arg21[%c1_192, %c0_193] : memref<2x32xf32, #tpu.memory_space<vmem>>, vector<1x32xf32>
    %401 = vector.broadcast %400 : vector<1x32xf32> to vector<8x32xf32>
    %402 = arith.addf %399, %401 : vector<8x32xf32>
    %403 = arith.addf %294, %402 : vector<8x32xf32>
    %c1_194 = arith.constant 1 : index
    %c0_195 = arith.constant 0 : index
    %404 = vector.load %arg22[%c1_194, %c0_195] : memref<2x32xf32, #tpu.memory_space<vmem>>, vector<1x32xf32>
    %c1_196 = arith.constant 1 : index
    %c0_197 = arith.constant 0 : index
    %405 = vector.load %arg23[%c1_196, %c0_197] : memref<2x32xf32, #tpu.memory_space<vmem>>, vector<1x32xf32>
    %cst_198 = arith.constant dense<0.000000e+00> : vector<8xf32>
    %406 = vector.multi_reduction <add>, %403, %cst_198 [1] : vector<8x32xf32> to vector<8xf32>
    %407 = vector.shape_cast %406 : vector<8xf32> to vector<8x1xf32>
    %cst_199 = arith.constant 3.200000e+01 : f32
    %408 = vector.broadcast %cst_199 : f32 to vector<8x1xf32>
    %409 = arith.divf %407, %408 : vector<8x1xf32>
    %410 = vector.broadcast %409 : vector<8x1xf32> to vector<8x32xf32>
    %411 = arith.subf %403, %410 : vector<8x32xf32>
    %412 = arith.mulf %411, %411 : vector<8x32xf32>
    %cst_200 = arith.constant dense<0.000000e+00> : vector<8xf32>
    %413 = vector.multi_reduction <add>, %412, %cst_200 [1] : vector<8x32xf32> to vector<8xf32>
    %414 = vector.shape_cast %413 : vector<8xf32> to vector<8x1xf32>
    %cst_201 = arith.constant 3.200000e+01 : f32
    %415 = vector.broadcast %cst_201 : f32 to vector<8x1xf32>
    %416 = arith.divf %414, %415 : vector<8x1xf32>
    %417 = vector.broadcast %409 : vector<8x1xf32> to vector<8x32xf32>
    %418 = arith.subf %403, %417 : vector<8x32xf32>
    %cst_202 = arith.constant 9.99999974E-6 : f32
    %419 = vector.broadcast %cst_202 : f32 to vector<8x1xf32>
    %420 = arith.addf %416, %419 : vector<8x1xf32>
    %421 = math.rsqrt %420 : vector<8x1xf32>
    %422 = vector.broadcast %421 : vector<8x1xf32> to vector<8x32xf32>
    %423 = arith.mulf %418, %422 : vector<8x32xf32>
    %424 = vector.broadcast %404 : vector<1x32xf32> to vector<8x32xf32>
    %425 = arith.mulf %423, %424 : vector<8x32xf32>
    %426 = vector.broadcast %405 : vector<1x32xf32> to vector<8x32xf32>
    %427 = arith.addf %425, %426 : vector<8x32xf32>
    %c1_203 = arith.constant 1 : index
    %c0_204 = arith.constant 0 : index
    %c0_205 = arith.constant 0 : index
    %428 = vector.load %arg24[%c1_203, %c0_204, %c0_205] : memref<2x32x64xf32, #tpu.memory_space<vmem>>, vector<1x32x64xf32>
    %429 = vector.shape_cast %428 : vector<1x32x64xf32> to vector<32x64xf32>
    %cst_206 = arith.constant dense<0.000000e+00> : vector<8x64xf32>
    %430 = tpu.matmul %427, %429, %cst_206 {dimension_numbers = #tpu.dot_dimension_numbers<[1], [0], [0], [1], [0, 0, 1, 1], [], []>} : vector<8x32xf32>, vector<32x64xf32>, vector<8x64xf32> -> vector<8x64xf32>
    %c1_207 = arith.constant 1 : index
    %c0_208 = arith.constant 0 : index
    %431 = vector.load %arg25[%c1_207, %c0_208] : memref<2x64xf32, #tpu.memory_space<vmem>>, vector<1x64xf32>
    %432 = vector.broadcast %431 : vector<1x64xf32> to vector<8x64xf32>
    %433 = arith.addf %430, %432 : vector<8x64xf32>
    %cst_209 = arith.constant 0.000000e+00 : f32
    %434 = vector.broadcast %cst_209 : f32 to vector<8x64xf32>
    %435 = arith.maximumf %433, %434 : vector<8x64xf32>
    %c1_210 = arith.constant 1 : index
    %c0_211 = arith.constant 0 : index
    %c0_212 = arith.constant 0 : index
    %436 = vector.load %arg26[%c1_210, %c0_211, %c0_212] : memref<2x64x32xf32, #tpu.memory_space<vmem>>, vector<1x64x32xf32>
    %437 = vector.shape_cast %436 : vector<1x64x32xf32> to vector<64x32xf32>
    %cst_213 = arith.constant dense<0.000000e+00> : vector<8x32xf32>
    %438 = tpu.matmul %435, %437, %cst_213 {dimension_numbers = #tpu.dot_dimension_numbers<[1], [0], [0], [1], [0, 0, 1, 1], [], []>} : vector<8x64xf32>, vector<64x32xf32>, vector<8x32xf32> -> vector<8x32xf32>
    %c1_214 = arith.constant 1 : index
    %c0_215 = arith.constant 0 : index
    %439 = vector.load %arg27[%c1_214, %c0_215] : memref<2x32xf32, #tpu.memory_space<vmem>>, vector<1x32xf32>
    %440 = vector.broadcast %439 : vector<1x32xf32> to vector<8x32xf32>
    %441 = arith.addf %438, %440 : vector<8x32xf32>
    %442 = arith.addf %403, %441 : vector<8x32xf32>
    %c0_216 = arith.constant 0 : index
    %c0_217 = arith.constant 0 : index
    %c0_218 = arith.constant 0 : index
    %443 = vector.load %arg28[%c0_216, %c0_217, %c0_218] : memref<1x8x32xf32, #tpu.memory_space<vmem>>, vector<1x8x32xf32>
    %444 = vector.shape_cast %443 : vector<1x8x32xf32> to vector<8x32xf32>
    %445 = vector.shape_cast %442 : vector<8x32xf32> to vector<1x8x32xf32>
    tpu.vector_store %arg28[%c0_216, %c0_217, %c0_218], %445 {strides = array<i32>} : memref<1x8x32xf32, #tpu.memory_space<vmem>>, vector<1x8x32xf32>,
    return
  }
  func.func @transform_0(%arg0: i32) -> (i32, i32, i32) {
    %c0_i32 = arith.constant 0 : i32
    %c0_i32_0 = arith.constant 0 : i32
    %c0_i32_1 = arith.constant 0 : i32
    return %arg0, %c0_i32, %c0_i32_0 : i32, i32, i32
  }
  func.func @transform_1(%arg0: i32) -> (i32, i32) {
    %c0_i32 = arith.constant 0 : i32
    %c0_i32_0 = arith.constant 0 : i32
    %c0_i32_1 = arith.constant 0 : i32
    return %c0_i32, %c0_i32_0 : i32, i32
  }
  func.func @transform_2(%arg0: i32) -> (i32, i32) {
    %c0_i32 = arith.constant 0 : i32
    %c0_i32_0 = arith.constant 0 : i32
    %c0_i32_1 = arith.constant 0 : i32
    return %c0_i32, %c0_i32_0 : i32, i32
  }
  func.func @transform_3(%arg0: i32) -> (i32, i32) {
    %c0_i32 = arith.constant 0 : i32
    %c0_i32_0 = arith.constant 0 : i32
    %c0_i32_1 = arith.constant 0 : i32
    return %c0_i32, %c0_i32_0 : i32, i32
  }
  func.func @transform_4(%arg0: i32) -> (i32, i32) {
    %c0_i32 = arith.constant 0 : i32
    %c0_i32_0 = arith.constant 0 : i32
    %c0_i32_1 = arith.constant 0 : i32
    return %c0_i32, %c0_i32_0 : i32, i32
  }
  func.func @transform_5(%arg0: i32) -> (i32, i32) {
    %c0_i32 = arith.constant 0 : i32
    %c0_i32_0 = arith.constant 0 : i32
    %c0_i32_1 = arith.constant 0 : i32
    return %c0_i32, %c0_i32_0 : i32, i32
  }
  func.func @transform_6(%arg0: i32) -> (i32, i32) {
    %c0_i32 = arith.constant 0 : i32
    %c0_i32_0 = arith.constant 0 : i32
    %c0_i32_1 = arith.constant 0 : i32
    return %c0_i32, %c0_i32_0 : i32, i32
  }
  func.func @transform_7(%arg0: i32) -> (i32, i32) {
    %c0_i32 = arith.constant 0 : i32
    %c0_i32_0 = arith.constant 0 : i32
    %c0_i32_1 = arith.constant 0 : i32
    return %c0_i32, %c0_i32_0 : i32, i32
  }
  func.func @transform_8(%arg0: i32) -> (i32, i32) {
    %c0_i32 = arith.constant 0 : i32
    %c0_i32_0 = arith.constant 0 : i32
    %c0_i32_1 = arith.constant 0 : i32
    return %c0_i32, %c0_i32_0 : i32, i32
  }
  func.func @transform_9(%arg0: i32) -> (i32, i32) {
    %c0_i32 = arith.constant 0 : i32
    %c0_i32_0 = arith.constant 0 : i32
    %c0_i32_1 = arith.constant 0 : i32
    return %c0_i32, %c0_i32_0 : i32, i32
  }
  func.func @transform_10(%arg0: i32) -> (i32, i32) {
    %c0_i32 = arith.constant 0 : i32
    %c0_i32_0 = arith.constant 0 : i32
    %c0_i32_1 = arith.constant 0 : i32
    return %c0_i32, %c0_i32_0 : i32, i32
  }
  func.func @transform_11(%arg0: i32) -> (i32, i32) {
    %c0_i32 = arith.constant 0 : i32
    %c0_i32_0 = arith.constant 0 : i32
    %c0_i32_1 = arith.constant 0 : i32
    return %c0_i32, %c0_i32_0 : i32, i32
  }
  func.func @transform_12(%arg0: i32) -> (i32, i32) {
    %c0_i32 = arith.constant 0 : i32
    %c0_i32_0 = arith.constant 0 : i32
    %c0_i32_1 = arith.constant 0 : i32
    return %c0_i32, %c0_i32_0 : i32, i32
  }
  func.func @transform_13(%arg0: i32) -> (i32, i32) {
    %c0_i32 = arith.constant 0 : i32
    %c0_i32_0 = arith.constant 0 : i32
    %c0_i32_1 = arith.constant 0 : i32
    return %c0_i32, %c0_i32_0 : i32, i32
  }
  func.func @transform_14(%arg0: i32) -> (i32, i32) {
    %c0_i32 = arith.constant 0 : i32
    %c0_i32_0 = arith.constant 0 : i32
    %c0_i32_1 = arith.constant 0 : i32
    return %c0_i32, %c0_i32_0 : i32, i32
  }
  func.func @transform_15(%arg0: i32) -> (i32, i32) {
    %c0_i32 = arith.constant 0 : i32
    %c0_i32_0 = arith.constant 0 : i32
    %c0_i32_1 = arith.constant 0 : i32
    return %c0_i32, %c0_i32_0 : i32, i32
  }
  func.func @transform_16(%arg0: i32) -> (i32, i32) {
    %c0_i32 = arith.constant 0 : i32
    %c0_i32_0 = arith.constant 0 : i32
    %c0_i32_1 = arith.constant 0 : i32
    return %c0_i32, %c0_i32_0 : i32, i32
  }
  func.func @transform_17(%arg0: i32) -> (i32, i32, i32) {
    %c0_i32 = arith.constant 0 : i32
    %c0_i32_0 = arith.constant 0 : i32
    %c0_i32_1 = arith.constant 0 : i32
    %c0_i32_2 = arith.constant 0 : i32
    return %c0_i32, %c0_i32_0, %c0_i32_1 : i32, i32, i32
  }
  func.func @transform_18(%arg0: i32) -> (i32, i32) {
    %c0_i32 = arith.constant 0 : i32
    %c0_i32_0 = arith.constant 0 : i32
    %c0_i32_1 = arith.constant 0 : i32
    return %c0_i32, %c0_i32_0 : i32, i32
  }
  func.func @transform_19(%arg0: i32) -> (i32, i32, i32) {
    %c0_i32 = arith.constant 0 : i32
    %c0_i32_0 = arith.constant 0 : i32
    %c0_i32_1 = arith.constant 0 : i32
    %c0_i32_2 = arith.constant 0 : i32
    return %c0_i32, %c0_i32_0, %c0_i32_1 : i32, i32, i32
  }
  func.func @transform_20(%arg0: i32) -> (i32, i32) {
    %c0_i32 = arith.constant 0 : i32
    %c0_i32_0 = arith.constant 0 : i32
    %c0_i32_1 = arith.constant 0 : i32
    return %c0_i32, %c0_i32_0 : i32, i32
  }
  func.func @transform_21(%arg0: i32) -> (i32, i32) {
    %c0_i32 = arith.constant 0 : i32
    %c0_i32_0 = arith.constant 0 : i32
    %c0_i32_1 = arith.constant 0 : i32
    return %c0_i32, %c0_i32_0 : i32, i32
  }
  func.func @transform_22(%arg0: i32) -> (i32, i32) {
    %c0_i32 = arith.constant 0 : i32
    %c0_i32_0 = arith.constant 0 : i32
    %c0_i32_1 = arith.constant 0 : i32
    return %c0_i32, %c0_i32_0 : i32, i32
  }
  func.func @transform_23(%arg0: i32) -> (i32, i32, i32) {
    %c0_i32 = arith.constant 0 : i32
    %c0_i32_0 = arith.constant 0 : i32
    %c0_i32_1 = arith.constant 0 : i32
    %c0_i32_2 = arith.constant 0 : i32
    return %c0_i32, %c0_i32_0, %c0_i32_1 : i32, i32, i32
  }
  func.func @transform_24(%arg0: i32) -> (i32, i32) {
    %c0_i32 = arith.constant 0 : i32
    %c0_i32_0 = arith.constant 0 : i32
    %c0_i32_1 = arith.constant 0 : i32
    return %c0_i32, %c0_i32_0 : i32, i32
  }
  func.func @transform_25(%arg0: i32) -> (i32, i32, i32) {
    %c0_i32 = arith.constant 0 : i32
    %c0_i32_0 = arith.constant 0 : i32
    %c0_i32_1 = arith.constant 0 : i32
    %c0_i32_2 = arith.constant 0 : i32
    return %c0_i32, %c0_i32_0, %c0_i32_1 : i32, i32, i32
  }
  func.func @transform_26(%arg0: i32) -> (i32, i32) {
    %c0_i32 = arith.constant 0 : i32
    %c0_i32_0 = arith.constant 0 : i32
    %c0_i32_1 = arith.constant 0 : i32
    return %c0_i32, %c0_i32_0 : i32, i32
  }
  func.func @transform_27(%arg0: i32) -> (i32, i32, i32) {
    %c0_i32 = arith.constant 0 : i32
    %c0_i32_0 = arith.constant 0 : i32
    %c0_i32_1 = arith.constant 0 : i32
    return %arg0, %c0_i32, %c0_i32_0 : i32, i32, i32
  }
}

</mosaic_0001>

<llo_original>
// kernel: encoder_io_forward.1
$region0: #{encoder_io_forward.1}
  #allocation0 [shape = 'u32[]', space=smem, size = 0x4, offset = 0x4, fixed_abs, tag = 'smem constant byte address 0x4 - core index']
  #allocation1 [shape = 'u32[144,128]{1,0:T(1,128)}', space=vmem, size = 0x12000, scoped, tag = 'internal scratch']
  #allocation2 [shape = 'f32[8,32]{1,0:T(8,128)}', space=vmem, size = 0x1000, scoped, tag = 'scratch operand']
  %s0 = inlined_call_operand.vmem [shape: f32[2,16,16], index: 0, kind: input, shape index: {}]
  %s1 = inlined_call_operand.hbm [shape: f32[8,32], index: 1, kind: input, shape index: {}]
  %s2 = inlined_call_operand.hbm [shape: f32[8,32], index: 2, kind: input, shape index: {}]
  %s3 = inlined_call_operand.hbm [shape: f32[1,16], index: 3, kind: input, shape index: {}]
  %s4 = inlined_call_operand.hbm [shape: f32[1,16], index: 4, kind: input, shape index: {}]
  %s5 = inlined_call_operand.hbm [shape: f32[16,64], index: 5, kind: input, shape index: {}]
  %s6 = inlined_call_operand.hbm [shape: f32[1,64], index: 6, kind: input, shape index: {}]
  %s7 = inlined_call_operand.vmem [shape: f32[32,32], index: 7, kind: input, shape index: {}]
  %s8 = inlined_call_operand.hbm [shape: f32[1,32], index: 8, kind: input, shape index: {}]
  %s9 = inlined_call_operand.hbm [shape: f32[1,32], index: 9, kind: input, shape index: {}]
  %s10 = inlined_call_operand.hbm [shape: f32[1,32], index: 10, kind: input, shape index: {}]
  %s11 = inlined_call_operand.hbm [shape: f32[32,64], index: 11, kind: input, shape index: {}]
  %s12 = inlined_call_operand.hbm [shape: f32[1,64], index: 12, kind: input, shape index: {}]
  %s13 = inlined_call_operand.vmem [shape: f32[64,32], index: 13, kind: input, shape index: {}]
  %s14 = inlined_call_operand.hbm [shape: f32[1,32], index: 14, kind: input, shape index: {}]
  %s15 = inlined_call_operand.hbm [shape: f32[2,32], index: 15, kind: input, shape index: {}]
  %s16 = inlined_call_operand.hbm [shape: f32[2,32], index: 16, kind: input, shape index: {}]
  %s17 = inlined_call_operand.vmem [shape: f32[2,32,96], index: 17, kind: input, shape index: {}]
  %s18 = inlined_call_operand.hbm [shape: f32[2,96], index: 18, kind: input, shape index: {}]
  %s19 = inlined_call_operand.vmem [shape: f32[2,32,32], index: 19, kind: input, shape index: {}]
  %s20 = inlined_call_operand.vmem [shape: f32[2,32], index: 20, kind: input, shape index: {}]
  %s21 = inlined_call_operand.vmem [shape: f32[2,32], index: 21, kind: input, shape index: {}]
  %s22 = inlined_call_operand.vmem [shape: f32[2,32], index: 22, kind: input, shape index: {}]
  %s23 = inlined_call_operand.vmem [shape: f32[2,32,64], index: 23, kind: input, shape index: {}]
  %s24 = inlined_call_operand.vmem [shape: f32[2,64], index: 24, kind: input, shape index: {}]
  %s25 = inlined_call_operand.vmem [shape: f32[2,64,32], index: 25, kind: input, shape index: {}]
  %s26 = inlined_call_operand.vmem [shape: f32[2,32], index: 26, kind: input, shape index: {}]
  %s27 = inlined_call_operand.hbm [shape: f32[2,8,32], index: 27, kind: output, shape index: {}]
  %s28 = sld [smem:[#allocation0]]
  $region201: #{encoder_io_forward.1} parent=0
    _
  %s30 = ssub.s32 1, %s28
  %s31 = scalar_select 0, %s30, %s28
  $region1: #{encoder_io_forward.1} parent=0
    #allocation3 [shape = 'u8[4096]{0}', space=vmem, size = 0x1000, scoped, tag = 'input window, operand 1, single buffered']
    #allocation4 [shape = 's32[2]{0}', space=sflag, size = 0x8, scoped, tag = 'scoped memory for encoder_io_forward.1']
    #allocation5 [shape = 's32[2]{0}', space=sflag, size = 0x8, scoped, tag = 'scoped memory for encoder_io_forward.1']
    #allocation6 [shape = 'u8[4096]{0}', space=vmem, size = 0x1000, scoped, tag = 'input window, operand 2, single buffered']
    #allocation7 [shape = 's32[1]{0}', space=sflag, size = 0x4, scoped, tag = 'scoped memory for encoder_io_forward.1']
    #allocation8 [shape = 'u8[512]{0}', space=vmem, size = 0x400, scoped, tag = 'input window, operand 3, single buffered']
    #allocation9 [shape = 'u8[512]{0}', space=vmem, size = 0x400, scoped, tag = 'input window, operand 4, single buffered']
    #allocation10 [shape = 's32[1]{0}', space=sflag, size = 0x4, scoped, tag = 'scoped memory for encoder_io_forward.1']
    #allocation11 [shape = 'u8[8192]{0}', space=vmem, size = 0x2000, scoped, tag = 'input window, operand 5, single buffered']
    #allocation12 [shape = 'u8[512]{0}', space=vmem, size = 0x400, scoped, tag = 'input window, operand 6, single buffered']
    #allocation13 [shape = 's32[1]{0}', space=sflag, size = 0x4, scoped, tag = 'scoped memory for encoder_io_forward.1']
    #allocation14 [shape = 'u8[512]{0}', space=vmem, size = 0x400, scoped, tag = 'input window, operand 8, single buffered']
    #allocation15 [shape = 'u8[512]{0}', space=vmem, size = 0x400, scoped, tag = 'input window, operand 9, single buffered']
    #allocation16 [shape = 's32[1]{0}', space=sflag, size = 0x4, scoped, tag = 'scoped memory for encoder_io_forward.1']
    #allocation17 [shape = 'u8[512]{0}', space=vmem, size = 0x400, scoped, tag = 'input window, operand 10, single buffered']
    #allocation18 [shape = 'u8[16384]{0}', space=vmem, size = 0x4000, scoped, tag = 'input window, operand 11, single buffered']
    #allocation19 [shape = 's32[1]{0}', space=sflag, size = 0x4, scoped, tag = 'scoped memory for encoder_io_forward.1']
    #allocation20 [shape = 'u8[512]{0}', space=vmem, size = 0x400, scoped, tag = 'input window, operand 12, single buffered']
    #allocation21 [shape = 'u8[512]{0}', space=vmem, size = 0x400, scoped, tag = 'input window, operand 14, single buffered']
    #allocation22 [shape = 's32[1]{0}', space=sflag, size = 0x4, scoped, tag = 'scoped memory for encoder_io_forward.1']
    #allocation23 [shape = 'u8[1024]{0}', space=vmem, size = 0x400, scoped, tag = 'input window, operand 15, single buffered']
    #allocation24 [shape = 'u8[1024]{0}', space=vmem, size = 0x400, scoped, tag = 'input window, operand 16, single buffered']
    #allocation25 [shape = 's32[1]{0}', space=sflag, size = 0x4, scoped, tag = 'scoped memory for encoder_io_forward.1']
    #allocation26 [shape = 'u8[1024]{0}', space=vmem, size = 0x400, scoped, tag = 'input window, operand 18, single buffered']
    #allocation27 [shape = 'u8[8192]{0}', space=vmem, size = 0x2000, scoped, tag = 'output window, operand 0']
    %32 = vsyncpa [#allocation4], 0
    %33 = vsyncpa [#allocation7], 0
    %34 = vsyncpa [#allocation10], 0
    %35 = vsyncpa [#allocation13], 0
    %36 = vsyncpa [#allocation16], 0
    %37 = vsyncpa [#allocation19], 0
    %38 = vsyncpa [#allocation22], 0
    %39 = vsyncpa [#allocation25], 0
    %40 = vsyncpa [#allocation5], 0
    %s41 = scalar_lea.sflag [#allocation5], 1
    %42 = vsyncpa %s41, 0
    loop: start=0, step=1, limit=4
    $region2: #{encoder_io_forward.1} parent=1 // loop_pre_header
      _
    $region3: #{encoder_io_forward.1} parent=1 // loop_header
      %s44 = sphi 0, %s48
      %p45 = scmp.ge.s32.totalorder %s44, 4
      %s54 = sphi 0, %s56
      %s57 = sphi 0, %s54
      %s58 = sphi 0, %s57
      %s74 = sphi 0, %s58
      %s78 = sphi 0, %s78
      %s80 = sphi 0, %s78
      %s81 = sphi 0, %s80
      %s95 = sphi 0, %s81
      %s99 = sphi 0, %s99
      %s101 = sphi 0, %s99
      %s102 = sphi 0, %s101
      %s116 = sphi 0, %s102
      %s120 = sphi 0, %s120
      %s122 = sphi 0, %s120
      %s123 = sphi 0, %s122
      %s137 = sphi 0, %s123
      %s141 = sphi 0, %s141
      %s143 = sphi 0, %s141
      %s144 = sphi 0, %s143
      %s158 = sphi 0, %s144
      %s162 = sphi 0, %s162
      %s164 = sphi 0, %s162
      %s165 = sphi 0, %s164
      %s179 = sphi 0, %s165
      %s183 = sphi 0, %s183
      %s185 = sphi 0, %s183
      %s186 = sphi 0, %s185
      %s200 = sphi 0, %s186
      %s204 = sphi 0, %s204
      %s206 = sphi 0, %s204
      %s207 = sphi 0, %s206
      %s221 = sphi 0, %s207
      %s225 = sphi 0, %s225
      %s227 = sphi 0, %s225
      %s228 = sphi 0, %s227
      %s242 = sphi 0, %s228
      %s246 = sphi 0, %s246
      %s248 = sphi 0, %s246
      %s249 = sphi 0, %s248
      %s263 = sphi 0, %s249
      %s267 = sphi 0, %s267
      %s269 = sphi 0, %s267
      %s270 = sphi 0, %s269
      %s284 = sphi 0, %s270
      %s288 = sphi 0, %s288
      %s290 = sphi 0, %s288
      %s291 = sphi 0, %s290
      %s305 = sphi 0, %s291
      %s309 = sphi 0, %s309
      %s311 = sphi 0, %s309
      %s312 = sphi 0, %s311
      %s326 = sphi 0, %s312
      %s330 = sphi 0, %s330
      %s332 = sphi 0, %s330
      %s333 = sphi 0, %s332
      %s347 = sphi 0, %s333
      %s351 = sphi 0, %s351
      %s353 = sphi 0, %s351
      %s354 = sphi 0, %s353
      %s368 = sphi 0, %s354
      %s372 = sphi 0, %s372
      %s374 = sphi 0, %s372
      %s375 = sphi 0, %s374
      %s389 = sphi 0, %s375
      %s393 = sphi 0, %s393
      %s395 = sphi 0, %s393
      %s396 = sphi 0, %s395
      %s410 = sphi 0, %s396
      %s414 = sphi 0, %s414
      %s416 = sphi 0, %s414
      %s417 = sphi 0, %s416
      %s431 = sphi 0, %s417
      %s435 = sphi 0, %s435
      %s437 = sphi 0, %s435
      %s438 = sphi 0, %s437
      %s452 = sphi 0, %s438
      %s456 = sphi 0, %s456
      %s458 = sphi 0, %s456
      %s459 = sphi 0, %s458
      %s473 = sphi 0, %s459
      %s477 = sphi 0, %s477
      %s479 = sphi 0, %s477
      %s480 = sphi 0, %s479
      %s494 = sphi 0, %s480
      %s498 = sphi 0, %s498
      %s500 = sphi 0, %s498
      %s501 = sphi 0, %s500
      %s515 = sphi 0, %s501
      %s519 = sphi 0, %s519
      %s521 = sphi 0, %s519
      %s522 = sphi 0, %s521
      %s536 = sphi 0, %s522
      %s540 = sphi 0, %s540
      %s542 = sphi 0, %s540
      %s543 = sphi 0, %s542
      %s557 = sphi 0, %s543
      %s561 = sphi 0, %s561
      %s563 = sphi 0, %s561
      %s564 = sphi 0, %s563
      %s578 = sphi 0, %s564
      %s582 = sphi 0, %s582
      %s584 = sphi 0, %s582
      %s585 = sphi 0, %s584
      %s599 = sphi 0, %s585
      %s603 = sphi 0, %s603
      %s605 = sphi 0, %s603
      %s606 = sphi 0, %s605
      %s620 = sphi 0, %s606
      %s626 = sphi 0, %s628
      %s629 = sphi 0, %s626
      %s630 = sphi 0, %s629
      %s646 = sphi 0, %s630
    $region4: #{encoder_io_forward.1} parent=1 // loop_header_branch
      %47 = sbr.rel (%p45) target = $region8
    $region5: #{encoder_io_forward.1} parent=1 // loop_body
      %s49 = ssub.s32 %s44, 1
      %s50 = ssub.s32 %s44, 2
      %s51 = sadd.s32 %s44, 1
      %s52 = ssub.s32 %s44, %s51
      %p53 = scmp.eq.s32.totalorder %s52, 0
      %s55 = sadd.s32 %s54, 1
      %s56 = scalar_select %p53, %s54, %s55
      %p59 = pneg %p53
      %p60 = scmp.eq.s32.totalorder %s44, 1
      %p61 = por %p59, %p60
      %p62 = scmp.ne.s32.totalorder %s54, %s57
      %p63 = scmp.eq.s32.totalorder %s44, 0
      %p64 = por %p62, %p63
      %p65 = scmp.ne.s32.totalorder %s54, %s57
      %p66 = scmp.eq.s32.totalorder %s49, 1
      %p67 = por %p65, %p66
      %p68 = scmp.ne.s32.totalorder %s57, %s58
      %p69 = scmp.eq.s32.totalorder %s49, 0
      %p70 = por %p68, %p69
      %p71 = scmp.ne.s32.totalorder %s57, %s58
      %p72 = scmp.eq.s32.totalorder %s50, 1
      %p73 = por %p71, %p72
      %p75 = scmp.ne.s32.totalorder %s58, %s74
      %p76 = scmp.eq.s32.totalorder %s50, 0
      %p77 = por %p75, %p76
      %s79 = sadd.s32 %s78, 1
      %p82 = scmp.eq.s32.totalorder %s44, 1
      %p83 = scmp.ne.s32.totalorder %s78, %s80
      %p84 = scmp.eq.s32.totalorder %s44, 0
      %p85 = por %p83, %p84
      %p86 = scmp.ne.s32.totalorder %s78, %s80
      %p87 = scmp.eq.s32.totalorder %s49, 1
      %p88 = por %p86, %p87
      %p89 = scmp.ne.s32.totalorder %s80, %s81
      %p90 = scmp.eq.s32.totalorder %s49, 0
      %p91 = por %p89, %p90
      %p92 = scmp.ne.s32.totalorder %s80, %s81
      %p93 = scmp.eq.s32.totalorder %s50, 1
      %p94 = por %p92, %p93
      %p96 = scmp.ne.s32.totalorder %s81, %s95
      %p97 = scmp.eq.s32.totalorder %s50, 0
      %p98 = por %p96, %p97
      %s100 = sadd.s32 %s99, 1
      %p103 = scmp.eq.s32.totalorder %s44, 1
      %p104 = scmp.ne.s32.totalorder %s99, %s101
      %p105 = scmp.eq.s32.totalorder %s44, 0
      %p106 = por %p104, %p105
      %p107 = scmp.ne.s32.totalorder %s99, %s101
      %p108 = scmp.eq.s32.totalorder %s49, 1
      %p109 = por %p107, %p108
      %p110 = scmp.ne.s32.totalorder %s101, %s102
      %p111 = scmp.eq.s32.totalorder %s49, 0
      %p112 = por %p110, %p111
      %p113 = scmp.ne.s32.totalorder %s101, %s102
      %p114 = scmp.eq.s32.totalorder %s50, 1
      %p115 = por %p113, %p114
      %p117 = scmp.ne.s32.totalorder %s102, %s116
      %p118 = scmp.eq.s32.totalorder %s50, 0
      %p119 = por %p117, %p118
      %s121 = sadd.s32 %s120, 1
      %p124 = scmp.eq.s32.totalorder %s44, 1
      %p125 = scmp.ne.s32.totalorder %s120, %s122
      %p126 = scmp.eq.s32.totalorder %s44, 0
      %p127 = por %p125, %p126
      %p128 = scmp.ne.s32.totalorder %s120, %s122
      %p129 = scmp.eq.s32.totalorder %s49, 1
      %p130 = por %p128, %p129
      %p131 = scmp.ne.s32.totalorder %s122, %s123
      %p132 = scmp.eq.s32.totalorder %s49, 0
      %p133 = por %p131, %p132
      %p134 = scmp.ne.s32.totalorder %s122, %s123
      %p135 = scmp.eq.s32.totalorder %s50, 1
      %p136 = por %p134, %p135
      %p138 = scmp.ne.s32.totalorder %s123, %s137
      %p139 = scmp.eq.s32.totalorder %s50, 0
      %p140 = por %p138, %p139
      %s142 = sadd.s32 %s141, 1
      %p145 = scmp.eq.s32.totalorder %s44, 1
      %p146 = scmp.ne.s32.totalorder %s141, %s143
      %p147 = scmp.eq.s32.totalorder %s44, 0
      %p148 = por %p146, %p147
      %p149 = scmp.ne.s32.totalorder %s141, %s143
      %p150 = scmp.eq.s32.totalorder %s49, 1
      %p151 = por %p149, %p150
      %p152 = scmp.ne.s32.totalorder %s143, %s144
      %p153 = scmp.eq.s32.totalorder %s49, 0
      %p154 = por %p152, %p153
      %p155 = scmp.ne.s32.totalorder %s143, %s144
      %p156 = scmp.eq.s32.totalorder %s50, 1
      %p157 = por %p155, %p156
      %p159 = scmp.ne.s32.totalorder %s144, %s158
      %p160 = scmp.eq.s32.totalorder %s50, 0
      %p161 = por %p159, %p160
      %s163 = sadd.s32 %s162, 1
      %p166 = scmp.eq.s32.totalorder %s44, 1
      %p167 = scmp.ne.s32.totalorder %s162, %s164
      %p168 = scmp.eq.s32.totalorder %s44, 0
      %p169 = por %p167, %p168
      %p170 = scmp.ne.s32.totalorder %s162, %s164
      %p171 = scmp.eq.s32.totalorder %s49, 1
      %p172 = por %p170, %p171
      %p173 = scmp.ne.s32.totalorder %s164, %s165
      %p174 = scmp.eq.s32.totalorder %s49, 0
      %p175 = por %p173, %p174
      %p176 = scmp.ne.s32.totalorder %s164, %s165
      %p177 = scmp.eq.s32.totalorder %s50, 1
      %p178 = por %p176, %p177
      %p180 = scmp.ne.s32.totalorder %s165, %s179
      %p181 = scmp.eq.s32.totalorder %s50, 0
      %p182 = por %p180, %p181
      %s184 = sadd.s32 %s183, 1
      %p187 = scmp.eq.s32.totalorder %s44, 1
      %p188 = scmp.ne.s32.totalorder %s183, %s185
      %p189 = scmp.eq.s32.totalorder %s44, 0
      %p190 = por %p188, %p189
      %p191 = scmp.ne.s32.totalorder %s183, %s185
      %p192 = scmp.eq.s32.totalorder %s49, 1
      %p193 = por %p191, %p192
      %p194 = scmp.ne.s32.totalorder %s185, %s186
      %p195 = scmp.eq.s32.totalorder %s49, 0
      %p196 = por %p194, %p195
      %p197 = scmp.ne.s32.totalorder %s185, %s186
      %p198 = scmp.eq.s32.totalorder %s50, 1
      %p199 = por %p197, %p198
      %p201 = scmp.ne.s32.totalorder %s186, %s200
      %p202 = scmp.eq.s32.totalorder %s50, 0
      %p203 = por %p201, %p202
      %s205 = sadd.s32 %s204, 1
      %p208 = scmp.eq.s32.totalorder %s44, 1
      %p209 = scmp.ne.s32.totalorder %s204, %s206
      %p210 = scmp.eq.s32.totalorder %s44, 0
      %p211 = por %p209, %p210
      %p212 = scmp.ne.s32.totalorder %s204, %s206
      %p213 = scmp.eq.s32.totalorder %s49, 1
      %p214 = por %p212, %p213
      %p215 = scmp.ne.s32.totalorder %s206, %s207
      %p216 = scmp.eq.s32.totalorder %s49, 0
      %p217 = por %p215, %p216
      %p218 = scmp.ne.s32.totalorder %s206, %s207
      %p219 = scmp.eq.s32.totalorder %s50, 1
      %p220 = por %p218, %p219
      %p222 = scmp.ne.s32.totalorder %s207, %s221
      %p223 = scmp.eq.s32.totalorder %s50, 0
      %p224 = por %p222, %p223
      %s226 = sadd.s32 %s225, 1
      %p229 = scmp.eq.s32.totalorder %s44, 1
      %p230 = scmp.ne.s32.totalorder %s225, %s227
      %p231 = scmp.eq.s32.totalorder %s44, 0
      %p232 = por %p230, %p231
      %p233 = scmp.ne.s32.totalorder %s225, %s227
      %p234 = scmp.eq.s32.totalorder %s49, 1
      %p235 = por %p233, %p234
      %p236 = scmp.ne.s32.totalorder %s227, %s228
      %p237 = scmp.eq.s32.totalorder %s49, 0
      %p238 = por %p236, %p237
      %p239 = scmp.ne.s32.totalorder %s227, %s228
      %p240 = scmp.eq.s32.totalorder %s50, 1
      %p241 = por %p239, %p240
      %p243 = scmp.ne.s32.totalorder %s228, %s242
      %p244 = scmp.eq.s32.totalorder %s50, 0
      %p245 = por %p243, %p244
      %s247 = sadd.s32 %s246, 1
      %p250 = scmp.eq.s32.totalorder %s44, 1
      %p251 = scmp.ne.s32.totalorder %s246, %s248
      %p252 = scmp.eq.s32.totalorder %s44, 0
      %p253 = por %p251, %p252
      %p254 = scmp.ne.s32.totalorder %s246, %s248
      %p255 = scmp.eq.s32.totalorder %s49, 1
      %p256 = por %p254, %p255
      %p257 = scmp.ne.s32.totalorder %s248, %s249
      %p258 = scmp.eq.s32.totalorder %s49, 0
      %p259 = por %p257, %p258
      %p260 = scmp.ne.s32.totalorder %s248, %s249
      %p261 = scmp.eq.s32.totalorder %s50, 1
      %p262 = por %p260, %p261
      %p264 = scmp.ne.s32.totalorder %s249, %s263
      %p265 = scmp.eq.s32.totalorder %s50, 0
      %p266 = por %p264, %p265
      %s268 = sadd.s32 %s267, 1
      %p271 = scmp.eq.s32.totalorder %s44, 1
      %p272 = scmp.ne.s32.totalorder %s267, %s269
      %p273 = scmp.eq.s32.totalorder %s44, 0
      %p274 = por %p272, %p273
      %p275 = scmp.ne.s32.totalorder %s267, %s269
      %p276 = scmp.eq.s32.totalorder %s49, 1
      %p277 = por %p275, %p276
      %p278 = scmp.ne.s32.totalorder %s269, %s270
      %p279 = scmp.eq.s32.totalorder %s49, 0
      %p280 = por %p278, %p279
      %p281 = scmp.ne.s32.totalorder %s269, %s270
      %p282 = scmp.eq.s32.totalorder %s50, 1
      %p283 = por %p281, %p282
      %p285 = scmp.ne.s32.totalorder %s270, %s284
      %p286 = scmp.eq.s32.totalorder %s50, 0
      %p287 = por %p285, %p286
      %s289 = sadd.s32 %s288, 1
      %p292 = scmp.eq.s32.totalorder %s44, 1
      %p293 = scmp.ne.s32.totalorder %s288, %s290
      %p294 = scmp.eq.s32.totalorder %s44, 0
      %p295 = por %p293, %p294
      %p296 = scmp.ne.s32.totalorder %s288, %s290
      %p297 = scmp.eq.s32.totalorder %s49, 1
      %p298 = por %p296, %p297
      %p299 = scmp.ne.s32.totalorder %s290, %s291
      %p300 = scmp.eq.s32.totalorder %s49, 0
      %p301 = por %p299, %p300
      %p302 = scmp.ne.s32.totalorder %s290, %s291
      %p303 = scmp.eq.s32.totalorder %s50, 1
      %p304 = por %p302, %p303
      %p306 = scmp.ne.s32.totalorder %s291, %s305
      %p307 = scmp.eq.s32.totalorder %s50, 0
      %p308 = por %p306, %p307
      %s310 = sadd.s32 %s309, 1
      %p313 = scmp.eq.s32.totalorder %s44, 1
      %p314 = scmp.ne.s32.totalorder %s309, %s311
      %p315 = scmp.eq.s32.totalorder %s44, 0
      %p316 = por %p314, %p315
      %p317 = scmp.ne.s32.totalorder %s309, %s311
      %p318 = scmp.eq.s32.totalorder %s49, 1
      %p319 = por %p317, %p318
      %p320 = scmp.ne.s32.totalorder %s311, %s312
      %p321 = scmp.eq.s32.totalorder %s49, 0
      %p322 = por %p320, %p321
      %p323 = scmp.ne.s32.totalorder %s311, %s312
      %p324 = scmp.eq.s32.totalorder %s50, 1
      %p325 = por %p323, %p324
      %p327 = scmp.ne.s32.totalorder %s312, %s326
      %p328 = scmp.eq.s32.totalorder %s50, 0
      %p329 = por %p327, %p328
      %s331 = sadd.s32 %s330, 1
      %p334 = scmp.eq.s32.totalorder %s44, 1
      %p335 = scmp.ne.s32.totalorder %s330, %s332
      %p336 = scmp.eq.s32.totalorder %s44, 0
      %p337 = por %p335, %p336
      %p338 = scmp.ne.s32.totalorder %s330, %s332
      %p339 = scmp.eq.s32.totalorder %s49, 1
      %p340 = por %p338, %p339
      %p341 = scmp.ne.s32.totalorder %s332, %s333
      %p342 = scmp.eq.s32.totalorder %s49, 0
      %p343 = por %p341, %p342
      %p344 = scmp.ne.s32.totalorder %s332, %s333
      %p345 = scmp.eq.s32.totalorder %s50, 1
      %p346 = por %p344, %p345
      %p348 = scmp.ne.s32.totalorder %s333, %s347
      %p349 = scmp.eq.s32.totalorder %s50, 0
      %p350 = por %p348, %p349
      %s352 = sadd.s32 %s351, 1
      %p355 = scmp.eq.s32.totalorder %s44, 1
      %p356 = scmp.ne.s32.totalorder %s351, %s353
      %p357 = scmp.eq.s32.totalorder %s44, 0
      %p358 = por %p356, %p357
      %p359 = scmp.ne.s32.totalorder %s351, %s353
      %p360 = scmp.eq.s32.totalorder %s49, 1
      %p361 = por %p359, %p360
      %p362 = scmp.ne.s32.totalorder %s353, %s354
      %p363 = scmp.eq.s32.totalorder %s49, 0
      %p364 = por %p362, %p363
      %p365 = scmp.ne.s32.totalorder %s353, %s354
      %p366 = scmp.eq.s32.totalorder %s50, 1
      %p367 = por %p365, %p366
      %p369 = scmp.ne.s32.totalorder %s354, %s368
      %p370 = scmp.eq.s32.totalorder %s50, 0
      %p371 = por %p369, %p370
      %s373 = sadd.s32 %s372, 1
      %p376 = scmp.eq.s32.totalorder %s44, 1
      %p377 = scmp.ne.s32.totalorder %s372, %s374
      %p378 = scmp.eq.s32.totalorder %s44, 0
      %p379 = por %p377, %p378
      %p380 = scmp.ne.s32.totalorder %s372, %s374
      %p381 = scmp.eq.s32.totalorder %s49, 1
      %p382 = por %p380, %p381
      %p383 = scmp.ne.s32.totalorder %s374, %s375
      %p384 = scmp.eq.s32.totalorder %s49, 0
      %p385 = por %p383, %p384
      %p386 = scmp.ne.s32.totalorder %s374, %s375
      %p387 = scmp.eq.s32.totalorder %s50, 1
      %p388 = por %p386, %p387
      %p390 = scmp.ne.s32.totalorder %s375, %s389
      %p391 = scmp.eq.s32.totalorder %s50, 0
      %p392 = por %p390, %p391
      %s394 = sadd.s32 %s393, 1
      %p397 = scmp.eq.s32.totalorder %s44, 1
      %p398 = scmp.ne.s32.totalorder %s393, %s395
      %p399 = scmp.eq.s32.totalorder %s44, 0
      %p400 = por %p398, %p399
      %p401 = scmp.ne.s32.totalorder %s393, %s395
      %p402 = scmp.eq.s32.totalorder %s49, 1
      %p403 = por %p401, %p402
      %p404 = scmp.ne.s32.totalorder %s395, %s396
      %p405 = scmp.eq.s32.totalorder %s49, 0
      %p406 = por %p404, %p405
      %p407 = scmp.ne.s32.totalorder %s395, %s396
      %p408 = scmp.eq.s32.totalorder %s50, 1
      %p409 = por %p407, %p408
      %p411 = scmp.ne.s32.totalorder %s396, %s410
      %p412 = scmp.eq.s32.totalorder %s50, 0
      %p413 = por %p411, %p412
      %s415 = sadd.s32 %s414, 1
      %p418 = scmp.eq.s32.totalorder %s44, 1
      %p419 = scmp.ne.s32.totalorder %s414, %s416
      %p420 = scmp.eq.s32.totalorder %s44, 0
      %p421 = por %p419, %p420
      %p422 = scmp.ne.s32.totalorder %s414, %s416
      %p423 = scmp.eq.s32.totalorder %s49, 1
      %p424 = por %p422, %p423
      %p425 = scmp.ne.s32.totalorder %s416, %s417
      %p426 = scmp.eq.s32.totalorder %s49, 0
      %p427 = por %p425, %p426
      %p428 = scmp.ne.s32.totalorder %s416, %s417
      %p429 = scmp.eq.s32.totalorder %s50, 1
      %p430 = por %p428, %p429
      %p432 = scmp.ne.s32.totalorder %s417, %s431
      %p433 = scmp.eq.s32.totalorder %s50, 0
      %p434 = por %p432, %p433
      %s436 = sadd.s32 %s435, 1
      %p439 = scmp.eq.s32.totalorder %s44, 1
      %p440 = scmp.ne.s32.totalorder %s435, %s437
      %p441 = scmp.eq.s32.totalorder %s44, 0
      %p442 = por %p440, %p441
      %p443 = scmp.ne.s32.totalorder %s435, %s437
      %p444 = scmp.eq.s32.totalorder %s49, 1
      %p445 = por %p443, %p444
      %p446 = scmp.ne.s32.totalorder %s437, %s438
      %p447 = scmp.eq.s32.totalorder %s49, 0
      %p448 = por %p446, %p447
      %p449 = scmp.ne.s32.totalorder %s437, %s438
      %p450 = scmp.eq.s32.totalorder %s50, 1
      %p451 = por %p449, %p450
      %p453 = scmp.ne.s32.totalorder %s438, %s452
      %p454 = scmp.eq.s32.totalorder %s50, 0
      %p455 = por %p453, %p454
      %s457 = sadd.s32 %s456, 1
      %p460 = scmp.eq.s32.totalorder %s44, 1
      %p461 = scmp.ne.s32.totalorder %s456, %s458
      %p462 = scmp.eq.s32.totalorder %s44, 0
      %p463 = por %p461, %p462
      %p464 = scmp.ne.s32.totalorder %s456, %s458
      %p465 = scmp.eq.s32.totalorder %s49, 1
      %p466 = por %p464, %p465
      %p467 = scmp.ne.s32.totalorder %s458, %s459
      %p468 = scmp.eq.s32.totalorder %s49, 0
      %p469 = por %p467, %p468
      %p470 = scmp.ne.s32.totalorder %s458, %s459
      %p471 = scmp.eq.s32.totalorder %s50, 1
      %p472 = por %p470, %p471
      %p474 = scmp.ne.s32.totalorder %s459, %s473
      %p475 = scmp.eq.s32.totalorder %s50, 0
      %p476 = por %p474, %p475
      %s478 = sadd.s32 %s477, 1
      %p481 = scmp.eq.s32.totalorder %s44, 1
      %p482 = scmp.ne.s32.totalorder %s477, %s479
      %p483 = scmp.eq.s32.totalorder %s44, 0
      %p484 = por %p482, %p483
      %p485 = scmp.ne.s32.totalorder %s477, %s479
      %p486 = scmp.eq.s32.totalorder %s49, 1
      %p487 = por %p485, %p486
      %p488 = scmp.ne.s32.totalorder %s479, %s480
      %p489 = scmp.eq.s32.totalorder %s49, 0
      %p490 = por %p488, %p489
      %p491 = scmp.ne.s32.totalorder %s479, %s480
      %p492 = scmp.eq.s32.totalorder %s50, 1
      %p493 = por %p491, %p492
      %p495 = scmp.ne.s32.totalorder %s480, %s494
      %p496 = scmp.eq.s32.totalorder %s50, 0
      %p497 = por %p495, %p496
      %s499 = sadd.s32 %s498, 1
      %p502 = scmp.eq.s32.totalorder %s44, 1
      %p503 = scmp.ne.s32.totalorder %s498, %s500
      %p504 = scmp.eq.s32.totalorder %s44, 0
      %p505 = por %p503, %p504
      %p506 = scmp.ne.s32.totalorder %s498, %s500
      %p507 = scmp.eq.s32.totalorder %s49, 1
      %p508 = por %p506, %p507
      %p509 = scmp.ne.s32.totalorder %s500, %s501
      %p510 = scmp.eq.s32.totalorder %s49, 0
      %p511 = por %p509, %p510
      %p512 = scmp.ne.s32.totalorder %s500, %s501
      %p513 = scmp.eq.s32.totalorder %s50, 1
      %p514 = por %p512, %p513
      %p516 = scmp.ne.s32.totalorder %s501, %s515
      %p517 = scmp.eq.s32.totalorder %s50, 0
      %p518 = por %p516, %p517
      %s520 = sadd.s32 %s519, 1
      %p523 = scmp.eq.s32.totalorder %s44, 1
      %p524 = scmp.ne.s32.totalorder %s519, %s521
      %p525 = scmp.eq.s32.totalorder %s44, 0
      %p526 = por %p524, %p525
      %p527 = scmp.ne.s32.totalorder %s519, %s521
      %p528 = scmp.eq.s32.totalorder %s49, 1
      %p529 = por %p527, %p528
      %p530 = scmp.ne.s32.totalorder %s521, %s522
      %p531 = scmp.eq.s32.totalorder %s49, 0
      %p532 = por %p530, %p531
      %p533 = scmp.ne.s32.totalorder %s521, %s522
      %p534 = scmp.eq.s32.totalorder %s50, 1
      %p535 = por %p533, %p534
      %p537 = scmp.ne.s32.totalorder %s522, %s536
      %p538 = scmp.eq.s32.totalorder %s50, 0
      %p539 = por %p537, %p538
      %s541 = sadd.s32 %s540, 1
      %p544 = scmp.eq.s32.totalorder %s44, 1
      %p545 = scmp.ne.s32.totalorder %s540, %s542
      %p546 = scmp.eq.s32.totalorder %s44, 0
      %p547 = por %p545, %p546
      %p548 = scmp.ne.s32.totalorder %s540, %s542
      %p549 = scmp.eq.s32.totalorder %s49, 1
      %p550 = por %p548, %p549
      %p551 = scmp.ne.s32.totalorder %s542, %s543
      %p552 = scmp.eq.s32.totalorder %s49, 0
      %p553 = por %p551, %p552
      %p554 = scmp.ne.s32.totalorder %s542, %s543
      %p555 = scmp.eq.s32.totalorder %s50, 1
      %p556 = por %p554, %p555
      %p558 = scmp.ne.s32.totalorder %s543, %s557
      %p559 = scmp.eq.s32.totalorder %s50, 0
      %p560 = por %p558, %p559
      %s562 = sadd.s32 %s561, 1
      %p565 = scmp.eq.s32.totalorder %s44, 1
      %p566 = scmp.ne.s32.totalorder %s561, %s563
      %p567 = scmp.eq.s32.totalorder %s44, 0
      %p568 = por %p566, %p567
      %p569 = scmp.ne.s32.totalorder %s561, %s563
      %p570 = scmp.eq.s32.totalorder %s49, 1
      %p571 = por %p569, %p570
      %p572 = scmp.ne.s32.totalorder %s563, %s564
      %p573 = scmp.eq.s32.totalorder %s49, 0
      %p574 = por %p572, %p573
      %p575 = scmp.ne.s32.totalorder %s563, %s564
      %p576 = scmp.eq.s32.totalorder %s50, 1
      %p577 = por %p575, %p576
      %p579 = scmp.ne.s32.totalorder %s564, %s578
      %p580 = scmp.eq.s32.totalorder %s50, 0
      %p581 = por %p579, %p580
      %s583 = sadd.s32 %s582, 1
      %p586 = scmp.eq.s32.totalorder %s44, 1
      %p587 = scmp.ne.s32.totalorder %s582, %s584
      %p588 = scmp.eq.s32.totalorder %s44, 0
      %p589 = por %p587, %p588
      %p590 = scmp.ne.s32.totalorder %s582, %s584
      %p591 = scmp.eq.s32.totalorder %s49, 1
      %p592 = por %p590, %p591
      %p593 = scmp.ne.s32.totalorder %s584, %s585
      %p594 = scmp.eq.s32.totalorder %s49, 0
      %p595 = por %p593, %p594
      %p596 = scmp.ne.s32.totalorder %s584, %s585
      %p597 = scmp.eq.s32.totalorder %s50, 1
      %p598 = por %p596, %p597
      %p600 = scmp.ne.s32.totalorder %s585, %s599
      %p601 = scmp.eq.s32.totalorder %s50, 0
      %p602 = por %p600, %p601
      %s604 = sadd.s32 %s603, 1
      %p607 = scmp.eq.s32.totalorder %s44, 1
      %p608 = scmp.ne.s32.totalorder %s603, %s605
      %p609 = scmp.eq.s32.totalorder %s44, 0
      %p610 = por %p608, %p609
      %p611 = scmp.ne.s32.totalorder %s603, %s605
      %p612 = scmp.eq.s32.totalorder %s49, 1
      %p613 = por %p611, %p612
      %p614 = scmp.ne.s32.totalorder %s605, %s606
      %p615 = scmp.eq.s32.totalorder %s49, 0
      %p616 = por %p614, %p615
      %p617 = scmp.ne.s32.totalorder %s605, %s606
      %p618 = scmp.eq.s32.totalorder %s50, 1
      %p619 = por %p617, %p618
      %p621 = scmp.ne.s32.totalorder %s606, %s620
      %p622 = scmp.eq.s32.totalorder %s50, 0
      %p623 = por %p621, %p622
      %s624 = ssub.s32 %s44, %s51
      %p625 = scmp.eq.s32.totalorder %s624, 0
      %s627 = sadd.s32 %s626, 1
      %s628 = scalar_select %p625, %s626, %s627
      %p631 = pneg %p625
      %p632 = scmp.eq.s32.totalorder %s44, 1
      %p633 = por %p631, %p632
      %p634 = scmp.ne.s32.totalorder %s626, %s629
      %p635 = scmp.eq.s32.totalorder %s44, 0
      %p636 = por %p634, %p635
      %p637 = scmp.ne.s32.totalorder %s626, %s629
      %p638 = scmp.eq.s32.totalorder %s49, 1
      %p639 = por %p637, %p638
      %p640 = scmp.ne.s32.totalorder %s629, %s630
      %p641 = scmp.eq.s32.totalorder %s49, 0
      %p642 = por %p640, %p641
      %p643 = scmp.ne.s32.totalorder %s629, %s630
      %p644 = scmp.eq.s32.totalorder %s50, 1
      %p645 = por %p643, %p644
      %p647 = scmp.ne.s32.totalorder %s630, %s646
      %p648 = scmp.eq.s32.totalorder %s50, 0
      %p649 = por %p647, %p648
      %p650 = scmp.le.s32.totalorder 1, %s44
      %p651 = scmp.lt.s32.totalorder %s44, 3
      %p652 = pnand %p650, %p651
      %p653 = pneg %p652
      // Predicated region
      $region9: #{encoder_io_forward.1} parent=5 // pred_check
        _
      $region10: #{encoder_io_forward.1} parent=5 // pred_check_branch
        %655 = sbr.rel (%p652) target = $region12
      $region11: #{encoder_io_forward.1} parent=5 // pred_region
        %s656 = ssub.s32 %s44, 1
        // Predicated region
        $region13: #{encoder_io_forward.1} parent=11 // pred_check
          %p657 = pneg %p91
        $region14: #{encoder_io_forward.1} parent=11 // pred_check_branch
          %659 = sbr.rel (%p657) target = $region16
        $region15: #{encoder_io_forward.1} parent=11 // pred_region
          %s661 = ssub.s32 128, 128
          %662 = vsyncadd [#allocation4], %s661
          %s664 = sshll.u32 [#allocation3], 4
          %s665 = int_to_ptr.vmem [resolvable:$true] %s664
          %667 = dma.hbm_to_vmem [thread:$0]  %s1, 128, %s665, [#allocation4]
        $region16: #{encoder_io_forward.1} parent=11 // pred_fallthru
          _
        // Predicated region
        $region17: #{encoder_io_forward.1} parent=11 // pred_check
          %p668 = pneg %p112
        $region18: #{encoder_io_forward.1} parent=11 // pred_check_branch
          %670 = sbr.rel (%p668) target = $region20
        $region19: #{encoder_io_forward.1} parent=11 // pred_region
          %s672 = ssub.s32 128, 128
          %673 = vsyncadd [#allocation7], %s672
          %s675 = sshll.u32 [#allocation6], 4
          %s676 = int_to_ptr.vmem [resolvable:$true] %s675
          %678 = dma.hbm_to_vmem [thread:$0]  %s2, 128, %s676, [#allocation7]
        $region20: #{encoder_io_forward.1} parent=11 // pred_fallthru
          _
        // Predicated region
        $region21: #{encoder_io_forward.1} parent=11 // pred_check
          %p679 = pneg %p133
        $region22: #{encoder_io_forward.1} parent=11 // pred_check_branch
          %681 = sbr.rel (%p679) target = $region24
        $region23: #{encoder_io_forward.1} parent=11 // pred_region
          %s683 = ssub.s32 16, 16
          %684 = vsyncadd [#allocation7], %s683
          %s686 = sshll.u32 [#allocation8], 4
          %s687 = int_to_ptr.vmem [resolvable:$true] %s686
          %689 = dma.hbm_to_vmem [thread:$0]  %s3, 16, %s687, [#allocation7]
        $region24: #{encoder_io_forward.1} parent=11 // pred_fallthru
          _
        // Predicated region
        $region25: #{encoder_io_forward.1} parent=11 // pred_check
          %p690 = pneg %p154
        $region26: #{encoder_io_forward.1} parent=11 // pred_check_branch
          %692 = sbr.rel (%p690) target = $region28
        $region27: #{encoder_io_forward.1} parent=11 // pred_region
          %s694 = ssub.s32 16, 16
          %695 = vsyncadd [#allocation10], %s694
          %s697 = sshll.u32 [#allocation9], 4
          %s698 = int_to_ptr.vmem [resolvable:$true] %s697
          %700 = dma.hbm_to_vmem [thread:$0]  %s4, 16, %s698, [#allocation10]
        $region28: #{encoder_io_forward.1} parent=11 // pred_fallthru
          _
        // Predicated region
        $region29: #{encoder_io_forward.1} parent=11 // pred_check
          %p701 = pneg %p175
        $region30: #{encoder_io_forward.1} parent=11 // pred_check_branch
          %703 = sbr.rel (%p701) target = $region32
        $region31: #{encoder_io_forward.1} parent=11 // pred_region
          %s705 = ssub.s32 256, 256
          %706 = vsyncadd [#allocation10], %s705
          %s707 = sshll.u32 [#allocation11], 4
          %s708 = int_to_ptr.vmem [resolvable:$true] %s707
          %713 = dma.hbm_to_vmem [thread:$0]  %s5, 256, %s708, [#allocation10], 128, 128, 8
        $region32: #{encoder_io_forward.1} parent=11 // pred_fallthru
          _
        // Predicated region
        $region33: #{encoder_io_forward.1} parent=11 // pred_check
          %p714 = pneg %p196
        $region34: #{encoder_io_forward.1} parent=11 // pred_check_branch
          %716 = sbr.rel (%p714) target = $region36
        $region35: #{encoder_io_forward.1} parent=11 // pred_region
          %s718 = ssub.s32 16, 16
          %719 = vsyncadd [#allocation13], %s718
          %s721 = sshll.u32 [#allocation12], 4
          %s722 = int_to_ptr.vmem [resolvable:$true] %s721
          %724 = dma.hbm_to_vmem [thread:$0]  %s6, 16, %s722, [#allocation13]
        $region36: #{encoder_io_forward.1} parent=11 // pred_fallthru
          _
        // Predicated region
        $region37: #{encoder_io_forward.1} parent=11 // pred_check
          %p725 = pneg %p217
        $region38: #{encoder_io_forward.1} parent=11 // pred_check_branch
          %727 = sbr.rel (%p725) target = $region40
        $region39: #{encoder_io_forward.1} parent=11 // pred_region
          _
        $region40: #{encoder_io_forward.1} parent=11 // pred_fallthru
          _
        // Predicated region
        $region41: #{encoder_io_forward.1} parent=11 // pred_check
          %p728 = pneg %p238
        $region42: #{encoder_io_forward.1} parent=11 // pred_check_branch
          %730 = sbr.rel (%p728) target = $region44
        $region43: #{encoder_io_forward.1} parent=11 // pred_region
          %s732 = ssub.s32 16, 16
          %733 = vsyncadd [#allocation13], %s732
          %s735 = sshll.u32 [#allocation14], 4
          %s736 = int_to_ptr.vmem [resolvable:$true] %s735
          %738 = dma.hbm_to_vmem [thread:$0]  %s8, 16, %s736, [#allocation13]
        $region44: #{encoder_io_forward.1} parent=11 // pred_fallthru
          _
        // Predicated region
        $region45: #{encoder_io_forward.1} parent=11 // pred_check
          %p739 = pneg %p259
        $region46: #{encoder_io_forward.1} parent=11 // pred_check_branch
          %741 = sbr.rel (%p739) target = $region48
        $region47: #{encoder_io_forward.1} parent=11 // pred_region
          %s743 = ssub.s32 16, 16
          %744 = vsyncadd [#allocation16], %s743
          %s746 = sshll.u32 [#allocation15], 4
          %s747 = int_to_ptr.vmem [resolvable:$true] %s746
          %749 = dma.hbm_to_vmem [thread:$0]  %s9, 16, %s747, [#allocation16]
        $region48: #{encoder_io_forward.1} parent=11 // pred_fallthru
          _
        // Predicated region
        $region49: #{encoder_io_forward.1} parent=11 // pred_check
          %p750 = pneg %p280
        $region50: #{encoder_io_forward.1} parent=11 // pred_check_branch
          %752 = sbr.rel (%p750) target = $region52
        $region51: #{encoder_io_forward.1} parent=11 // pred_region
          %s754 = ssub.s32 16, 16
          %755 = vsyncadd [#allocation16], %s754
          %s757 = sshll.u32 [#allocation17], 4
          %s758 = int_to_ptr.vmem [resolvable:$true] %s757
          %760 = dma.hbm_to_vmem [thread:$0]  %s10, 16, %s758, [#allocation16]
        $region52: #{encoder_io_forward.1} parent=11 // pred_fallthru
          _
        // Predicated region
        $region53: #{encoder_io_forward.1} parent=11 // pred_check
          %p761 = pneg %p301
        $region54: #{encoder_io_forward.1} parent=11 // pred_check_branch
          %763 = sbr.rel (%p761) target = $region56
        $region55: #{encoder_io_forward.1} parent=11 // pred_region
          %s765 = ssub.s32 512, 512
          %766 = vsyncadd [#allocation19], %s765
          %s767 = sshll.u32 [#allocation18], 4
          %s768 = int_to_ptr.vmem [resolvable:$true] %s767
          %773 = dma.hbm_to_vmem [thread:$0]  %s11, 512, %s768, [#allocation19], 128, 128, 8
        $region56: #{encoder_io_forward.1} parent=11 // pred_fallthru
          _
        // Predicated region
        $region57: #{encoder_io_forward.1} parent=11 // pred_check
          %p774 = pneg %p322
        $region58: #{encoder_io_forward.1} parent=11 // pred_check_branch
          %776 = sbr.rel (%p774) target = $region60
        $region59: #{encoder_io_forward.1} parent=11 // pred_region
          %s778 = ssub.s32 16, 16
          %779 = vsyncadd [#allocation19], %s778
          %s781 = sshll.u32 [#allocation20], 4
          %s782 = int_to_ptr.vmem [resolvable:$true] %s781
          %784 = dma.hbm_to_vmem [thread:$0]  %s12, 16, %s782, [#allocation19]
        $region60: #{encoder_io_forward.1} parent=11 // pred_fallthru
          _
        // Predicated region
        $region61: #{encoder_io_forward.1} parent=11 // pred_check
          %p785 = pneg %p343
        $region62: #{encoder_io_forward.1} parent=11 // pred_check_branch
          %787 = sbr.rel (%p785) target = $region64
        $region63: #{encoder_io_forward.1} parent=11 // pred_region
          _
        $region64: #{encoder_io_forward.1} parent=11 // pred_fallthru
          _
        // Predicated region
        $region65: #{encoder_io_forward.1} parent=11 // pred_check
          %p788 = pneg %p364
        $region66: #{encoder_io_forward.1} parent=11 // pred_check_branch
          %790 = sbr.rel (%p788) target = $region68
        $region67: #{encoder_io_forward.1} parent=11 // pred_region
          %s792 = ssub.s32 16, 16
          %793 = vsyncadd [#allocation22], %s792
          %s795 = sshll.u32 [#allocation21], 4
          %s796 = int_to_ptr.vmem [resolvable:$true] %s795
          %798 = dma.hbm_to_vmem [thread:$0]  %s14, 16, %s796, [#allocation22]
        $region68: #{encoder_io_forward.1} parent=11 // pred_fallthru
          _
        // Predicated region
        $region69: #{encoder_io_forward.1} parent=11 // pred_check
          %p799 = pneg %p385
        $region70: #{encoder_io_forward.1} parent=11 // pred_check_branch
          %801 = sbr.rel (%p799) target = $region72
        $region71: #{encoder_io_forward.1} parent=11 // pred_region
          %s803 = ssub.s32 32, 32
          %804 = vsyncadd [#allocation22], %s803
          %s806 = sshll.u32 [#allocation23], 4
          %s807 = int_to_ptr.vmem [resolvable:$true] %s806
          %809 = dma.hbm_to_vmem [thread:$0]  %s15, 32, %s807, [#allocation22]
        $region72: #{encoder_io_forward.1} parent=11 // pred_fallthru
          _
        // Predicated region
        $region73: #{encoder_io_forward.1} parent=11 // pred_check
          %p810 = pneg %p406
        $region74: #{encoder_io_forward.1} parent=11 // pred_check_branch
          %812 = sbr.rel (%p810) target = $region76
        $region75: #{encoder_io_forward.1} parent=11 // pred_region
          %s814 = ssub.s32 32, 32
          %815 = vsyncadd [#allocation25], %s814
          %s817 = sshll.u32 [#allocation24], 4
          %s818 = int_to_ptr.vmem [resolvable:$true] %s817
          %820 = dma.hbm_to_vmem [thread:$0]  %s16, 32, %s818, [#allocation25]
        $region76: #{encoder_io_forward.1} parent=11 // pred_fallthru
          _
        // Predicated region
        $region77: #{encoder_io_forward.1} parent=11 // pred_check
          %p821 = pneg %p427
        $region78: #{encoder_io_forward.1} parent=11 // pred_check_branch
          %823 = sbr.rel (%p821) target = $region80
        $region79: #{encoder_io_forward.1} parent=11 // pred_region
          _
        $region80: #{encoder_io_forward.1} parent=11 // pred_fallthru
          _
        // Predicated region
        $region81: #{encoder_io_forward.1} parent=11 // pred_check
          %p824 = pneg %p448
        $region82: #{encoder_io_forward.1} parent=11 // pred_check_branch
          %826 = sbr.rel (%p824) target = $region84
        $region83: #{encoder_io_forward.1} parent=11 // pred_region
          %s828 = ssub.s32 32, 32
          %829 = vsyncadd [#allocation25], %s828
          %s831 = sshll.u32 [#allocation26], 4
          %s832 = int_to_ptr.vmem [resolvable:$true] %s831
          %834 = dma.hbm_to_vmem [thread:$0]  %s18, 32, %s832, [#allocation25]
        $region84: #{encoder_io_forward.1} parent=11 // pred_fallthru
          _
        // Predicated region
        $region85: #{encoder_io_forward.1} parent=11 // pred_check
          %p835 = pneg %p469
        $region86: #{encoder_io_forward.1} parent=11 // pred_check_branch
          %837 = sbr.rel (%p835) target = $region88
        $region87: #{encoder_io_forward.1} parent=11 // pred_region
          _
        $region88: #{encoder_io_forward.1} parent=11 // pred_fallthru
          _
        // Predicated region
        $region89: #{encoder_io_forward.1} parent=11 // pred_check
          %p838 = pneg %p490
        $region90: #{encoder_io_forward.1} parent=11 // pred_check_branch
          %840 = sbr.rel (%p838) target = $region92
        $region91: #{encoder_io_forward.1} parent=11 // pred_region
          _
        $region92: #{encoder_io_forward.1} parent=11 // pred_fallthru
          _
        // Predicated region
        $region93: #{encoder_io_forward.1} parent=11 // pred_check
          %p841 = pneg %p511
        $region94: #{encoder_io_forward.1} parent=11 // pred_check_branch
          %843 = sbr.rel (%p841) target = $region96
        $region95: #{encoder_io_forward.1} parent=11 // pred_region
          _
        $region96: #{encoder_io_forward.1} parent=11 // pred_fallthru
          _
        // Predicated region
        $region97: #{encoder_io_forward.1} parent=11 // pred_check
          %p844 = pneg %p532
        $region98: #{encoder_io_forward.1} parent=11 // pred_check_branch
          %846 = sbr.rel (%p844) target = $region100
        $region99: #{encoder_io_forward.1} parent=11 // pred_region
          _
        $region100: #{encoder_io_forward.1} parent=11 // pred_fallthru
          _
        // Predicated region
        $region101: #{encoder_io_forward.1} parent=11 // pred_check
          %p847 = pneg %p553
        $region102: #{encoder_io_forward.1} parent=11 // pred_check_branch
          %849 = sbr.rel (%p847) target = $region104
        $region103: #{encoder_io_forward.1} parent=11 // pred_region
          _
        $region104: #{encoder_io_forward.1} parent=11 // pred_fallthru
          _
        // Predicated region
        $region105: #{encoder_io_forward.1} parent=11 // pred_check
          %p850 = pneg %p574
        $region106: #{encoder_io_forward.1} parent=11 // pred_check_branch
          %852 = sbr.rel (%p850) target = $region108
        $region107: #{encoder_io_forward.1} parent=11 // pred_region
          _
        $region108: #{encoder_io_forward.1} parent=11 // pred_fallthru
          _
        // Predicated region
        $region109: #{encoder_io_forward.1} parent=11 // pred_check
          %p853 = pneg %p595
        $region110: #{encoder_io_forward.1} parent=11 // pred_check_branch
          %855 = sbr.rel (%p853) target = $region112
        $region111: #{encoder_io_forward.1} parent=11 // pred_region
          _
        $region112: #{encoder_io_forward.1} parent=11 // pred_fallthru
          _
        // Predicated region
        $region113: #{encoder_io_forward.1} parent=11 // pred_check
          %p856 = pneg %p616
        $region114: #{encoder_io_forward.1} parent=11 // pred_check_branch
          %858 = sbr.rel (%p856) target = $region116
        $region115: #{encoder_io_forward.1} parent=11 // pred_region
          _
        $region116: #{encoder_io_forward.1} parent=11 // pred_fallthru
          _
      $region12: #{encoder_io_forward.1} parent=5 // pred_fallthru
        _
      %p859 = scmp.lt.s32.totalorder %s44, 2
      // Predicated region
      $region117: #{encoder_io_forward.1} parent=5 // pred_check
        %p860 = pneg %p859
      $region118: #{encoder_io_forward.1} parent=5 // pred_check_branch
        %862 = sbr.rel (%p860) target = $region120
      $region119: #{encoder_io_forward.1} parent=5 // pred_region
        // Predicated region
        $region121: #{encoder_io_forward.1} parent=119 // pred_check
          %p863 = pneg %p64
        $region122: #{encoder_io_forward.1} parent=119 // pred_check_branch
          %865 = sbr.rel (%p863) target = $region124
        $region123: #{encoder_io_forward.1} parent=119 // pred_region
          %p866 = scmp.lt.s32.totalorder %s44, 1
          %s867 = scalar_select %p866, %s44, 1
          %s868 = smul.addr %s867, 2
          %s869 = smul.addr %s868, 8
          %s870 = scalar_lea.vmem %s0, %s869
        $region124: #{encoder_io_forward.1} parent=119 // pred_fallthru
          _
      $region120: #{encoder_io_forward.1} parent=5 // pred_fallthru
        _
      %p871 = scmp.le.s32.totalorder 1, %s44
      %p872 = scmp.lt.s32.totalorder %s44, 3
      %p873 = pnand %p871, %p872
      %p874 = pneg %p873
      // Predicated region
      $region125: #{encoder_io_forward.1} parent=5 // pred_check
        _
      $region126: #{encoder_io_forward.1} parent=5 // pred_check_branch
        %876 = sbr.rel (%p873) target = $region128
      $region127: #{encoder_io_forward.1} parent=5 // pred_region
        %s877 = ssub.s32 %s44, 1
        // Predicated region
        $region129: #{encoder_io_forward.1} parent=127 // pred_check
          %p878 = pneg %p91
        $region130: #{encoder_io_forward.1} parent=127 // pred_check_branch
          %880 = sbr.rel (%p878) target = $region132
        $region131: #{encoder_io_forward.1} parent=127 // pred_region
          %881 = dma.done [#allocation4], 128
        $region132: #{encoder_io_forward.1} parent=127 // pred_fallthru
          _
        // Predicated region
        $region133: #{encoder_io_forward.1} parent=127 // pred_check
          %p882 = pneg %p112
        $region134: #{encoder_io_forward.1} parent=127 // pred_check_branch
          %884 = sbr.rel (%p882) target = $region136
        $region135: #{encoder_io_forward.1} parent=127 // pred_region
          %885 = dma.done [#allocation7], 128
        $region136: #{encoder_io_forward.1} parent=127 // pred_fallthru
          _
        // Predicated region
        $region137: #{encoder_io_forward.1} parent=127 // pred_check
          %p886 = pneg %p133
        $region138: #{encoder_io_forward.1} parent=127 // pred_check_branch
          %888 = sbr.rel (%p886) target = $region140
        $region139: #{encoder_io_forward.1} parent=127 // pred_region
          %889 = dma.done [#allocation7], 16
        $region140: #{encoder_io_forward.1} parent=127 // pred_fallthru
          _
        // Predicated region
        $region141: #{encoder_io_forward.1} parent=127 // pred_check
          %p890 = pneg %p154
        $region142: #{encoder_io_forward.1} parent=127 // pred_check_branch
          %892 = sbr.rel (%p890) target = $region144
        $region143: #{encoder_io_forward.1} parent=127 // pred_region
          %893 = dma.done [#allocation10], 16
        $region144: #{encoder_io_forward.1} parent=127 // pred_fallthru
          _
        // Predicated region
        $region145: #{encoder_io_forward.1} parent=127 // pred_check
          %p894 = pneg %p175
        $region146: #{encoder_io_forward.1} parent=127 // pred_check_branch
          %896 = sbr.rel (%p894) target = $region148
        $region147: #{encoder_io_forward.1} parent=127 // pred_region
          %897 = dma.done [#allocation10], 256
        $region148: #{encoder_io_forward.1} parent=127 // pred_fallthru
          _
        // Predicated region
        $region149: #{encoder_io_forward.1} parent=127 // pred_check
          %p898 = pneg %p196
        $region150: #{encoder_io_forward.1} parent=127 // pred_check_branch
          %900 = sbr.rel (%p898) target = $region152
        $region151: #{encoder_io_forward.1} parent=127 // pred_region
          %901 = dma.done [#allocation13], 16
        $region152: #{encoder_io_forward.1} parent=127 // pred_fallthru
          _
        // Predicated region
        $region153: #{encoder_io_forward.1} parent=127 // pred_check
          %p902 = pneg %p238
        $region154: #{encoder_io_forward.1} parent=127 // pred_check_branch
          %904 = sbr.rel (%p902) target = $region156
        $region155: #{encoder_io_forward.1} parent=127 // pred_region
          %905 = dma.done [#allocation13], 16
        $region156: #{encoder_io_forward.1} parent=127 // pred_fallthru
          _
        // Predicated region
        $region157: #{encoder_io_forward.1} parent=127 // pred_check
          %p906 = pneg %p259
        $region158: #{encoder_io_forward.1} parent=127 // pred_check_branch
          %908 = sbr.rel (%p906) target = $region160
        $region159: #{encoder_io_forward.1} parent=127 // pred_region
          %909 = dma.done [#allocation16], 16
        $region160: #{encoder_io_forward.1} parent=127 // pred_fallthru
          _
        // Predicated region
        $region161: #{encoder_io_forward.1} parent=127 // pred_check
          %p910 = pneg %p280
        $region162: #{encoder_io_forward.1} parent=127 // pred_check_branch
          %912 = sbr.rel (%p910) target = $region164
        $region163: #{encoder_io_forward.1} parent=127 // pred_region
          %913 = dma.done [#allocation16], 16
        $region164: #{encoder_io_forward.1} parent=127 // pred_fallthru
          _
        // Predicated region
        $region165: #{encoder_io_forward.1} parent=127 // pred_check
          %p914 = pneg %p301
        $region166: #{encoder_io_forward.1} parent=127 // pred_check_branch
          %916 = sbr.rel (%p914) target = $region168
        $region167: #{encoder_io_forward.1} parent=127 // pred_region
          %917 = dma.done [#allocation19], 512
        $region168: #{encoder_io_forward.1} parent=127 // pred_fallthru
          _
        // Predicated region
        $region169: #{encoder_io_forward.1} parent=127 // pred_check
          %p918 = pneg %p322
        $region170: #{encoder_io_forward.1} parent=127 // pred_check_branch
          %920 = sbr.rel (%p918) target = $region172
        $region171: #{encoder_io_forward.1} parent=127 // pred_region
          %921 = dma.done [#allocation19], 16
        $region172: #{encoder_io_forward.1} parent=127 // pred_fallthru
          _
        // Predicated region
        $region173: #{encoder_io_forward.1} parent=127 // pred_check
          %p922 = pneg %p364
        $region174: #{encoder_io_forward.1} parent=127 // pred_check_branch
          %924 = sbr.rel (%p922) target = $region176
        $region175: #{encoder_io_forward.1} parent=127 // pred_region
          %925 = dma.done [#allocation22], 16
        $region176: #{encoder_io_forward.1} parent=127 // pred_fallthru
          _
        // Predicated region
        $region177: #{encoder_io_forward.1} parent=127 // pred_check
          %p926 = pneg %p385
        $region178: #{encoder_io_forward.1} parent=127 // pred_check_branch
          %928 = sbr.rel (%p926) target = $region180
        $region179: #{encoder_io_forward.1} parent=127 // pred_region
          %929 = dma.done [#allocation22], 32
        $region180: #{encoder_io_forward.1} parent=127 // pred_fallthru
          _
        // Predicated region
        $region181: #{encoder_io_forward.1} parent=127 // pred_check
          %p930 = pneg %p406
        $region182: #{encoder_io_forward.1} parent=127 // pred_check_branch
          %932 = sbr.rel (%p930) target = $region184
        $region183: #{encoder_io_forward.1} parent=127 // pred_region
          %933 = dma.done [#allocation25], 32
        $region184: #{encoder_io_forward.1} parent=127 // pred_fallthru
          _
        // Predicated region
        $region185: #{encoder_io_forward.1} parent=127 // pred_check
          %p934 = pneg %p448
        $region186: #{encoder_io_forward.1} parent=127 // pred_check_branch
          %936 = sbr.rel (%p934) target = $region188
        $region187: #{encoder_io_forward.1} parent=127 // pred_region
          %937 = dma.done [#allocation25], 32
        $region188: #{encoder_io_forward.1} parent=127 // pred_fallthru
          _
        %p938 = scmp.lt.s32.totalorder %s49, 1
        %s939 = scalar_select %p938, %s49, 1
        %s940 = smul.addr %s939, 2
        %s941 = smul.addr %s940, 8
        %s942 = scalar_lea.vmem %s0, %s941
        %p943 = pneg %p70
        %p944 = pneg %p67
        %p945 = pneg %p91
        %p946 = pneg %p88
        %p947 = pneg %p112
        %p948 = pneg %p109
        %p949 = pneg %p133
        %p950 = pneg %p130
        %p951 = pneg %p154
        %p952 = pneg %p151
        %p953 = pneg %p175
        %p954 = pneg %p172
        %p955 = pneg %p196
        %p956 = pneg %p193
        %p957 = pneg %p217
        %p958 = pneg %p214
        %p959 = pneg %p238
        %p960 = pneg %p235
        %p961 = pneg %p259
        %p962 = pneg %p256
        %p963 = pneg %p280
        %p964 = pneg %p277
        %p965 = pneg %p301
        %p966 = pneg %p298
        %p967 = pneg %p322
        %p968 = pneg %p319
        %p969 = pneg %p343
        %p970 = pneg %p340
        %p971 = pneg %p364
        %p972 = pneg %p361
        %p973 = pneg %p385
        %p974 = pneg %p382
        %p975 = pneg %p406
        %p976 = pneg %p403
        %p977 = pneg %p427
        %p978 = pneg %p424
        %p979 = pneg %p448
        %p980 = pneg %p445
        %p981 = pneg %p469
        %p982 = pneg %p466
        %p983 = pneg %p490
        %p984 = pneg %p487
        %p985 = pneg %p511
        %p986 = pneg %p508
        %p987 = pneg %p532
        %p988 = pneg %p529
        %p989 = pneg %p553
        %p990 = pneg %p550
        %p991 = pneg %p574
        %p992 = pneg %p571
        %p993 = pneg %p595
        %p994 = pneg %p592
        %p995 = pneg %p616
        %p996 = pneg %p613
        %p997 = pneg %p642
        %p998 = pneg %p639
        %s999 = sand.u32 %s629, 1
        %s1000 = scalar_lea.sflag [#allocation5], %s999
        %s1001 = sand.u32 %s629, 1
        %s1002 = smul.addr %s1001, 8
        %s1003 = scalar_lea.vmem [#allocation27], %s1002
        %p1004 = scmp.lt.s32.totalorder %s49, 1
        %s1005 = scalar_select %p1004, %s49, 1
        %s1006 = smul.addr %s1005, 2
        %s1007 = smul.addr %s1006, 8
        %s1008 = scalar_lea.vmem %s0, %s1007
        %v1009 = vld [vmem:[%s1008] sm:$0xff]
        %v1010 = vld [vmem:[%s1008 + $0x8] sm:$0xff]
        %v1011 = vld [vmem:[#allocation8] sm:$0x1]
        %v1012 = vld [vmem:[#allocation9] sm:$0x1]
        %vm1013 = vcmask 130048
        %v1014 = vsel %vm1013, %v1009, 0.0
        %1015 = vadd.xlane.f32.xlu0 %v1014
        %v1016 = vpop.xlane.xlu0 %1015
        %v1017 = vsel %vm1013, %v1010, 0.0
        %1018 = vadd.xlane.f32.xlu0 %v1017
        %v1019 = vpop.xlane.xlu0 %1018
        %v1020 = vrcp.pop 16.0
        %v1021 = vmul.f32 %v1016, %v1020
        %v1022 = vmul.f32 %v1019, %v1020
        %v1023 = vsub.f32 %v1009, %v1021
        %v1024 = vsub.f32 %v1010, %v1022
        %v1025 = vmul.f32 %v1023, %v1023
        %v1026 = vmul.f32 %v1024, %v1024
        %v1027 = vsel %vm1013, %v1025, 0.0
        %1028 = vadd.xlane.f32.xlu0 %v1027
        %v1029 = vpop.xlane.xlu0 %1028
        %v1030 = vsel %vm1013, %v1026, 0.0
        %1031 = vadd.xlane.f32.xlu0 %v1030
        %v1032 = vpop.xlane.xlu0 %1031
        %v1033 = vmul.f32 %v1029, %v1020
        %v1034 = vmul.f32 %v1032, %v1020
        %v1035 = vadd.f32 %v1033, 1e-05
        %v1036 = vadd.f32 %v1034, 1e-05
        %v1037 = vrsqrt.pop %v1035
        %v1038 = vrsqrt.pop %v1036
        %v1039 = vmul.f32 %v1023, %v1037
        %v1040 = vmul.f32 %v1024, %v1038
        %v1042 = vlaneseq
        %v1043 = vshrl.u32 %v1042, 7
        %v1044 = vsub.s32 0, %v1043
        %v1045 = vrot.slane %v1011, %v1044
        %v1047 = vmul.f32 %v1039, %v1045
        %v1048 = vmul.f32 %v1040, %v1045
        %v1050 = vlaneseq
        %v1051 = vshrl.u32 %v1050, 7
        %v1052 = vsub.s32 0, %v1051
        %v1053 = vrot.slane %v1012, %v1052
        %v1055 = vadd.f32 %v1047, %v1053
        %v1056 = vadd.f32 %v1048, %v1053
        %v1057 = vld [vmem:[#allocation11] sm:$0xff]
        %v1058 = vld [vmem:[#allocation11 + $0x8] sm:$0xff]
        %v1059 = vld [vmem:[#allocation12] sm:$0x1]
        %v1061 = vlaneseq
        %v1062 = vshrl.u32 %v1061, 7
        %v1063 = vsub.s32 0, %v1062
        %v1064 = vrot.slane %v1059, %v1063
        %v1067 = vsel %vm1013, %v1055, 0
        %v1070 = vsel %vm1013, %v1056, 0
        %1072 = vmatprep.subr.mxu0 0.0
        %1073 = vmatpush1.msra.mxu0 0.0
        %1074 = vmatprep.subr.mxu0 0.0
        %1075 = vmatpush1.msra.mxu0 0.0
        %1076 = vmatprep.subr.mxu0 0.0
        %1077 = vmatpush1.msra.mxu0 0.0
        %1078 = vmatprep.subr.mxu0 0.0
        %1079 = vmatpush1.msra.mxu0 0.0
        %1080 = vmatprep.subr.mxu0 0.0
        %1081 = vmatpush1.msra.mxu0 0.0
        %1082 = vmatprep.subr.mxu0 0.0
        %1083 = vmatpush1.msra.mxu0 0.0
        %1084 = vmatprep.subr.mxu0 0.0
        %1085 = vmatpush1.msra.mxu0 0.0
        %1086 = vmatprep.subr.mxu0 0.0
        %1087 = vmatpush1.msra.mxu0 0.0
        %1088 = vmatprep.subr.mxu0 0.0
        %1089 = vmatpush1.msra.mxu0 0.0
        %1090 = vmatprep.subr.mxu0 0.0
        %1091 = vmatpush1.msra.mxu0 0.0
        %1092 = vmatprep.subr.mxu0 0.0
        %1093 = vmatpush1.msra.mxu0 0.0
        %1094 = vmatprep.subr.mxu0 0.0
        %1095 = vmatpush1.msra.mxu0 0.0
        %1096 = vmatprep.subr.mxu0 0.0
        %1097 = vmatpush1.msra.mxu0 0.0
        %1098 = vmatprep.subr.mxu0 0.0
        %1099 = vmatpush1.msra.mxu0 0.0
        %1100 = vmatprep.subr.mxu0 0.0
        %1101 = vmatpush1.msra.mxu0 %v1058
        %1102 = vmatprep.subr.mxu0 0.0
        %1103 = vmatpush1.msra.mxu0 %v1057
        %1104 = vmatprep.subr.mxu0 0.0
        %1105 = vmatpush2.msra.mxu0 0.0
        %1106 = vmatprep.subr.mxu0 0.0
        %1107 = vmatpush2.msra.mxu0 0.0
        %1108 = vmatprep.subr.mxu0 0.0
        %1109 = vmatpush2.msra.mxu0 0.0
        %1110 = vmatprep.subr.mxu0 0.0
        %1111 = vmatpush2.msra.mxu0 0.0
        %1112 = vmatprep.subr.mxu0 0.0
        %1113 = vmatpush2.msra.mxu0 0.0
        %1114 = vmatprep.subr.mxu0 0.0
        %1115 = vmatpush2.msra.mxu0 0.0
        %1116 = vmatprep.subr.mxu0 0.0
        %1117 = vmatpush2.msra.mxu0 0.0
        %1118 = vmatprep.subr.mxu0 0.0
        %1119 = vmatpush2.msra.mxu0 0.0
        %1120 = vmatprep.subr.mxu0 0.0
        %1121 = vmatpush2.msra.mxu0 0.0
        %1122 = vmatprep.subr.mxu0 0.0
        %1123 = vmatpush2.msra.mxu0 0.0
        %1124 = vmatprep.subr.mxu0 0.0
        %1125 = vmatpush2.msra.mxu0 0.0
        %1126 = vmatprep.subr.mxu0 0.0
        %1127 = vmatpush2.msra.mxu0 0.0
        %1128 = vmatprep.subr.mxu0 0.0
        %1129 = vmatpush2.msra.mxu0 0.0
        %1130 = vmatprep.subr.mxu0 0.0
        %1131 = vmatpush2.msra.mxu0 0.0
        %1132 = vmatprep.subr.mxu0 0.0
        %1133 = vmatpush2.msra.mxu0 0.0
        %1134 = vmatprep.subr.mxu0 0.0
        %1135 = vmatpush2.msra.mxu0 0.0
        %1136 = vmatprep.mubr.f32.mxu0 0.0
        %1137 = vmatmul.mubr.f32.gmra.mxu0 %v1067
        %v1138 = vpop.f32.mrf.mxu0
        %v1139 = vadd.f32 %v1064, %v1138
        %v1140 = vpop.f32.mrf.mxu0
        %1141 = vmatprep.mubr.f32.mxu0 0.0
        %1142 = vmatmul.mubr.f32.gmra.mxu0 %v1070
        %v1143 = vpop.f32.mrf.mxu0
        %v1144 = vadd.f32 %v1064, %v1143
        %v1145 = vpop.f32.mrf.mxu0
        %1146 = vdwg.mxu0
        %v1147 = vld [vmem:[#allocation3] sm:$0xff]
        %vm1148 = vcmask 64512
        %v1150 = vsel %vm1148, %v1147, 0
        %v1153 = vsel %vm1148, %v1139, 0
        %v1156 = vsel %vm1148, %v1144, 0
        %1158 = vmatprep.subr.mxu0 0.0
        %1159 = vmatpush1.xpose.msra.mxu0 0.0
        %1160 = vmatprep.subr.mxu0 0.0
        %1161 = vmatpush1.xpose.msra.mxu0 0.0
        %1162 = vmatprep.subr.mxu0 0.0
        %1163 = vmatpush1.xpose.msra.mxu0 0.0
        %1164 = vmatprep.subr.mxu0 0.0
        %1165 = vmatpush1.xpose.msra.mxu0 0.0
        %1166 = vmatprep.subr.mxu0 0.0
        %1167 = vmatpush1.xpose.msra.mxu0 0.0
        %1168 = vmatprep.subr.mxu0 0.0
        %1169 = vmatpush1.xpose.msra.mxu0 0.0
        %1170 = vmatprep.subr.mxu0 0.0
        %1171 = vmatpush1.xpose.msra.mxu0 0.0
        %1172 = vmatprep.subr.mxu0 0.0
        %1173 = vmatpush1.xpose.msra.mxu0 0.0
        %1174 = vmatprep.subr.mxu0 0.0
        %1175 = vmatpush1.xpose.msra.mxu0 0.0
        %1176 = vmatprep.subr.mxu0 0.0
        %1177 = vmatpush1.xpose.msra.mxu0 0.0
        %1178 = vmatprep.subr.mxu0 0.0
        %1179 = vmatpush1.xpose.msra.mxu0 0.0
        %1180 = vmatprep.subr.mxu0 0.0
        %1181 = vmatpush1.xpose.msra.mxu0 0.0
        %1182 = vmatprep.subr.mxu0 0.0
        %1183 = vmatpush1.xpose.msra.mxu0 0.0
        %1184 = vmatprep.subr.mxu0 0.0
        %1185 = vmatpush1.xpose.msra.mxu0 0.0
        %1186 = vmatprep.subr.mxu0 0.0
        %1187 = vmatpush1.xpose.msra.mxu0 %v1156
        %1188 = vmatprep.subr.mxu0 0.0
        %1189 = vmatpush1.xpose.msra.mxu0 %v1153
        %1190 = vmatprep.subr.mxu0 0.0
        %1191 = vmatpush2.xpose.msra.mxu0 0.0
        %1192 = vmatprep.subr.mxu0 0.0
        %1193 = vmatpush2.xpose.msra.mxu0 0.0
        %1194 = vmatprep.subr.mxu0 0.0
        %1195 = vmatpush2.xpose.msra.mxu0 0.0
        %1196 = vmatprep.subr.mxu0 0.0
        %1197 = vmatpush2.xpose.msra.mxu0 0.0
        %1198 = vmatprep.subr.mxu0 0.0
        %1199 = vmatpush2.xpose.msra.mxu0 0.0
        %1200 = vmatprep.subr.mxu0 0.0
        %1201 = vmatpush2.xpose.msra.mxu0 0.0
        %1202 = vmatprep.subr.mxu0 0.0
        %1203 = vmatpush2.xpose.msra.mxu0 0.0
        %1204 = vmatprep.subr.mxu0 0.0
        %1205 = vmatpush2.xpose.msra.mxu0 0.0
        %1206 = vmatprep.subr.mxu0 0.0
        %1207 = vmatpush2.xpose.msra.mxu0 0.0
        %1208 = vmatprep.subr.mxu0 0.0
        %1209 = vmatpush2.xpose.msra.mxu0 0.0
        %1210 = vmatprep.subr.mxu0 0.0
        %1211 = vmatpush2.xpose.msra.mxu0 0.0
        %1212 = vmatprep.subr.mxu0 0.0
        %1213 = vmatpush2.xpose.msra.mxu0 0.0
        %1214 = vmatprep.subr.mxu0 0.0
        %1215 = vmatpush2.xpose.msra.mxu0 0.0
        %1216 = vmatprep.subr.mxu0 0.0
        %1217 = vmatpush2.xpose.msra.mxu0 0.0
        %1218 = vmatprep.subr.mxu0 0.0
        %1219 = vmatpush2.xpose.msra.mxu0 0.0
        %1220 = vmatprep.subr.mxu0 0.0
        %1221 = vmatpush2.xpose.msra.mxu0 0.0
        %1222 = vmatprep.mubr.f32.mxu0 0.0
        %1223 = vmatmul.mubr.f32.gmra.mxu0 %v1150
        %v1224 = vpop.f32.mrf.mxu0
        %v1225 = vadd.f32 0.0, %v1224
        %v1226 = vpop.f32.mrf.mxu0
        %1227 = vdwg.mxu0
        %v1228 = vmul.f32 %v1225, 0.35355338
        %v1229 = vsel %vm1013, %v1228, -inf
        %1230 = vmax.xlane.f32.xlu0 %v1229
        %v1231 = vpop.xlane.xlu0 %1230
        %v1232 = vsub.f32 %v1228, %v1231
        %v1233 = vmul.f32 %v1232, 1.442695
        %v1234 = vpow.pop %v1233
        %v1235 = vsel %vm1013, %v1234, 0.0
        %1236 = vadd.xlane.f32.xlu0 %v1235
        %v1237 = vpop.xlane.xlu0 %1236
        %v1238 = vrcp.pop %v1237
        %v1239 = vmul.f32 %v1234, %v1238
        %1240 = vrot.lane.b32.xlu0 %v1139, 96
        %v1241 = vpop.permute.xlu0 %1240
        %1242 = vrot.lane.b32.xlu0 %v1144, 96
        %v1243 = vpop.permute.xlu0 %1242
        %v1247 = vsel %vm1013, %v1239, 0
        %1249 = vmatprep.subr.mxu0 0.0
        %1250 = vmatpush1.msra.mxu0 0.0
        %1251 = vmatprep.subr.mxu0 0.0
        %1252 = vmatpush1.msra.mxu0 0.0
        %1253 = vmatprep.subr.mxu0 0.0
        %1254 = vmatpush1.msra.mxu0 0.0
        %1255 = vmatprep.subr.mxu0 0.0
        %1256 = vmatpush1.msra.mxu0 0.0
        %1257 = vmatprep.subr.mxu0 0.0
        %1258 = vmatpush1.msra.mxu0 0.0
        %1259 = vmatprep.subr.mxu0 0.0
        %1260 = vmatpush1.msra.mxu0 0.0
        %1261 = vmatprep.subr.mxu0 0.0
        %1262 = vmatpush1.msra.mxu0 0.0
        %1263 = vmatprep.subr.mxu0 0.0
        %1264 = vmatpush1.msra.mxu0 0.0
        %1265 = vmatprep.subr.mxu0 0.0
        %1266 = vmatpush1.msra.mxu0 0.0
        %1267 = vmatprep.subr.mxu0 0.0
        %1268 = vmatpush1.msra.mxu0 0.0
        %1269 = vmatprep.subr.mxu0 0.0
        %1270 = vmatpush1.msra.mxu0 0.0
        %1271 = vmatprep.subr.mxu0 0.0
        %1272 = vmatpush1.msra.mxu0 0.0
        %1273 = vmatprep.subr.mxu0 0.0
        %1274 = vmatpush1.msra.mxu0 0.0
        %1275 = vmatprep.subr.mxu0 0.0
        %1276 = vmatpush1.msra.mxu0 0.0
        %1277 = vmatprep.subr.mxu0 0.0
        %1278 = vmatpush1.msra.mxu0 %v1243
        %1279 = vmatprep.subr.mxu0 0.0
        %1280 = vmatpush1.msra.mxu0 %v1241
        %1281 = vmatprep.subr.mxu0 0.0
        %1282 = vmatpush2.msra.mxu0 0.0
        %1283 = vmatprep.subr.mxu0 0.0
        %1284 = vmatpush2.msra.mxu0 0.0
        %1285 = vmatprep.subr.mxu0 0.0
        %1286 = vmatpush2.msra.mxu0 0.0
        %1287 = vmatprep.subr.mxu0 0.0
        %1288 = vmatpush2.msra.mxu0 0.0
        %1289 = vmatprep.subr.mxu0 0.0
        %1290 = vmatpush2.msra.mxu0 0.0
        %1291 = vmatprep.subr.mxu0 0.0
        %1292 = vmatpush2.msra.mxu0 0.0
        %1293 = vmatprep.subr.mxu0 0.0
        %1294 = vmatpush2.msra.mxu0 0.0
        %1295 = vmatprep.subr.mxu0 0.0
        %1296 = vmatpush2.msra.mxu0 0.0
        %1297 = vmatprep.subr.mxu0 0.0
        %1298 = vmatpush2.msra.mxu0 0.0
        %1299 = vmatprep.subr.mxu0 0.0
        %1300 = vmatpush2.msra.mxu0 0.0
        %1301 = vmatprep.subr.mxu0 0.0
        %1302 = vmatpush2.msra.mxu0 0.0
        %1303 = vmatprep.subr.mxu0 0.0
        %1304 = vmatpush2.msra.mxu0 0.0
        %1305 = vmatprep.subr.mxu0 0.0
        %1306 = vmatpush2.msra.mxu0 0.0
        %1307 = vmatprep.subr.mxu0 0.0
        %1308 = vmatpush2.msra.mxu0 0.0
        %1309 = vmatprep.subr.mxu0 0.0
        %1310 = vmatpush2.msra.mxu0 0.0
        %1311 = vmatprep.subr.mxu0 0.0
        %1312 = vmatpush2.msra.mxu0 0.0
        %1313 = vmatprep.mubr.f32.mxu0 0.0
        %1314 = vmatmul.mubr.f32.gmra.mxu0 %v1247
        %v1315 = vpop.f32.mrf.mxu0
        %v1316 = vadd.f32 0.0, %v1315
        %v1317 = vpop.f32.mrf.mxu0
        %1318 = vdwg.mxu0
        %1319 = vst.msk [vmem:[#allocation2] sm:$0xff] %vm1148, %v1316
        %1320 = vrot.lane.b32.xlu0 %v1147, 120
        %v1321 = vpop.permute.xlu0 %1320
        %1322 = vrot.lane.b32.xlu0 %v1139, 120
        %v1323 = vpop.permute.xlu0 %1322
        %1324 = vrot.lane.b32.xlu0 %v1144, 120
        %v1325 = vpop.permute.xlu0 %1324
        %v1326 = vsel %vm1148, %v1321, 0
        %v1328 = vsel %vm1148, %v1323, 0
        %v1330 = vsel %vm1148, %v1325, 0
        %1332 = vmatprep.subr.mxu0 0.0
        %1333 = vmatpush1.xpose.msra.mxu0 0.0
        %1334 = vmatprep.subr.mxu0 0.0
        %1335 = vmatpush1.xpose.msra.mxu0 0.0
        %1336 = vmatprep.subr.mxu0 0.0
        %1337 = vmatpush1.xpose.msra.mxu0 0.0
        %1338 = vmatprep.subr.mxu0 0.0
        %1339 = vmatpush1.xpose.msra.mxu0 0.0
        %1340 = vmatprep.subr.mxu0 0.0
        %1341 = vmatpush1.xpose.msra.mxu0 0.0
        %1342 = vmatprep.subr.mxu0 0.0
        %1343 = vmatpush1.xpose.msra.mxu0 0.0
        %1344 = vmatprep.subr.mxu0 0.0
        %1345 = vmatpush1.xpose.msra.mxu0 0.0
        %1346 = vmatprep.subr.mxu0 0.0
        %1347 = vmatpush1.xpose.msra.mxu0 0.0
        %1348 = vmatprep.subr.mxu0 0.0
        %1349 = vmatpush1.xpose.msra.mxu0 0.0
        %1350 = vmatprep.subr.mxu0 0.0
        %1351 = vmatpush1.xpose.msra.mxu0 0.0
        %1352 = vmatprep.subr.mxu0 0.0
        %1353 = vmatpush1.xpose.msra.mxu0 0.0
        %1354 = vmatprep.subr.mxu0 0.0
        %1355 = vmatpush1.xpose.msra.mxu0 0.0
        %1356 = vmatprep.subr.mxu0 0.0
        %1357 = vmatpush1.xpose.msra.mxu0 0.0
        %1358 = vmatprep.subr.mxu0 0.0
        %1359 = vmatpush1.xpose.msra.mxu0 0.0
        %1360 = vmatprep.subr.mxu0 0.0
        %1361 = vmatpush1.xpose.msra.mxu0 %v1330
        %1362 = vmatprep.subr.mxu0 0.0
        %1363 = vmatpush1.xpose.msra.mxu0 %v1328
        %1364 = vmatprep.subr.mxu0 0.0
        %1365 = vmatpush2.xpose.msra.mxu0 0.0
        %1366 = vmatprep.subr.mxu0 0.0
        %1367 = vmatpush2.xpose.msra.mxu0 0.0
        %1368 = vmatprep.subr.mxu0 0.0
        %1369 = vmatpush2.xpose.msra.mxu0 0.0
        %1370 = vmatprep.subr.mxu0 0.0
        %1371 = vmatpush2.xpose.msra.mxu0 0.0
        %1372 = vmatprep.subr.mxu0 0.0
        %1373 = vmatpush2.xpose.msra.mxu0 0.0
        %1374 = vmatprep.subr.mxu0 0.0
        %1375 = vmatpush2.xpose.msra.mxu0 0.0
        %1376 = vmatprep.subr.mxu0 0.0
        %1377 = vmatpush2.xpose.msra.mxu0 0.0
        %1378 = vmatprep.subr.mxu0 0.0
        %1379 = vmatpush2.xpose.msra.mxu0 0.0
        %1380 = vmatprep.subr.mxu0 0.0
        %1381 = vmatpush2.xpose.msra.mxu0 0.0
        %1382 = vmatprep.subr.mxu0 0.0
        %1383 = vmatpush2.xpose.msra.mxu0 0.0
        %1384 = vmatprep.subr.mxu0 0.0
        %1385 = vmatpush2.xpose.msra.mxu0 0.0
        %1386 = vmatprep.subr.mxu0 0.0
        %1387 = vmatpush2.xpose.msra.mxu0 0.0
        %1388 = vmatprep.subr.mxu0 0.0
        %1389 = vmatpush2.xpose.msra.mxu0 0.0
        %1390 = vmatprep.subr.mxu0 0.0
        %1391 = vmatpush2.xpose.msra.mxu0 0.0
        %1392 = vmatprep.subr.mxu0 0.0
        %1393 = vmatpush2.xpose.msra.mxu0 0.0
        %1394 = vmatprep.subr.mxu0 0.0
        %1395 = vmatpush2.xpose.msra.mxu0 0.0
        %1396 = vmatprep.mubr.f32.mxu0 0.0
        %1397 = vmatmul.mubr.f32.gmra.mxu0 %v1326
        %v1398 = vpop.f32.mrf.mxu0
        %v1399 = vadd.f32 0.0, %v1398
        %v1400 = vpop.f32.mrf.mxu0
        %1401 = vdwg.mxu0
        %v1402 = vmul.f32 %v1399, 0.35355338
        %v1403 = vsel %vm1013, %v1402, -inf
        %1404 = vmax.xlane.f32.xlu0 %v1403
        %v1405 = vpop.xlane.xlu0 %1404
        %v1406 = vsub.f32 %v1402, %v1405
        %v1407 = vmul.f32 %v1406, 1.442695
        %v1408 = vpow.pop %v1407
        %v1409 = vsel %vm1013, %v1408, 0.0
        %1410 = vadd.xlane.f32.xlu0 %v1409
        %v1411 = vpop.xlane.xlu0 %1410
        %v1412 = vrcp.pop %v1411
        %v1413 = vmul.f32 %v1408, %v1412
        %1414 = vrot.lane.b32.xlu0 %v1139, 88
        %v1415 = vpop.permute.xlu0 %1414
        %1416 = vrot.lane.b32.xlu0 %v1144, 88
        %v1417 = vpop.permute.xlu0 %1416
        %v1421 = vsel %vm1013, %v1413, 0
        %1423 = vmatprep.subr.mxu0 0.0
        %1424 = vmatpush1.msra.mxu0 0.0
        %1425 = vmatprep.subr.mxu0 0.0
        %1426 = vmatpush1.msra.mxu0 0.0
        %1427 = vmatprep.subr.mxu0 0.0
        %1428 = vmatpush1.msra.mxu0 0.0
        %1429 = vmatprep.subr.mxu0 0.0
        %1430 = vmatpush1.msra.mxu0 0.0
        %1431 = vmatprep.subr.mxu0 0.0
        %1432 = vmatpush1.msra.mxu0 0.0
        %1433 = vmatprep.subr.mxu0 0.0
        %1434 = vmatpush1.msra.mxu0 0.0
        %1435 = vmatprep.subr.mxu0 0.0
        %1436 = vmatpush1.msra.mxu0 0.0
        %1437 = vmatprep.subr.mxu0 0.0
        %1438 = vmatpush1.msra.mxu0 0.0
        %1439 = vmatprep.subr.mxu0 0.0
        %1440 = vmatpush1.msra.mxu0 0.0
        %1441 = vmatprep.subr.mxu0 0.0
        %1442 = vmatpush1.msra.mxu0 0.0
        %1443 = vmatprep.subr.mxu0 0.0
        %1444 = vmatpush1.msra.mxu0 0.0
        %1445 = vmatprep.subr.mxu0 0.0
        %1446 = vmatpush1.msra.mxu0 0.0
        %1447 = vmatprep.subr.mxu0 0.0
        %1448 = vmatpush1.msra.mxu0 0.0
        %1449 = vmatprep.subr.mxu0 0.0
        %1450 = vmatpush1.msra.mxu0 0.0
        %1451 = vmatprep.subr.mxu0 0.0
        %1452 = vmatpush1.msra.mxu0 %v1417
        %1453 = vmatprep.subr.mxu0 0.0
        %1454 = vmatpush1.msra.mxu0 %v1415
        %1455 = vmatprep.subr.mxu0 0.0
        %1456 = vmatpush2.msra.mxu0 0.0
        %1457 = vmatprep.subr.mxu0 0.0
        %1458 = vmatpush2.msra.mxu0 0.0
        %1459 = vmatprep.subr.mxu0 0.0
        %1460 = vmatpush2.msra.mxu0 0.0
        %1461 = vmatprep.subr.mxu0 0.0
        %1462 = vmatpush2.msra.mxu0 0.0
        %1463 = vmatprep.subr.mxu0 0.0
        %1464 = vmatpush2.msra.mxu0 0.0
        %1465 = vmatprep.subr.mxu0 0.0
        %1466 = vmatpush2.msra.mxu0 0.0
        %1467 = vmatprep.subr.mxu0 0.0
        %1468 = vmatpush2.msra.mxu0 0.0
        %1469 = vmatprep.subr.mxu0 0.0
        %1470 = vmatpush2.msra.mxu0 0.0
        %1471 = vmatprep.subr.mxu0 0.0
        %1472 = vmatpush2.msra.mxu0 0.0
        %1473 = vmatprep.subr.mxu0 0.0
        %1474 = vmatpush2.msra.mxu0 0.0
        %1475 = vmatprep.subr.mxu0 0.0
        %1476 = vmatpush2.msra.mxu0 0.0
        %1477 = vmatprep.subr.mxu0 0.0
        %1478 = vmatpush2.msra.mxu0 0.0
        %1479 = vmatprep.subr.mxu0 0.0
        %1480 = vmatpush2.msra.mxu0 0.0
        %1481 = vmatprep.subr.mxu0 0.0
        %1482 = vmatpush2.msra.mxu0 0.0
        %1483 = vmatprep.subr.mxu0 0.0
        %1484 = vmatpush2.msra.mxu0 0.0
        %1485 = vmatprep.subr.mxu0 0.0
        %1486 = vmatpush2.msra.mxu0 0.0
        %1487 = vmatprep.mubr.f32.mxu0 0.0
        %1488 = vmatmul.mubr.f32.gmra.mxu0 %v1421
        %v1489 = vpop.f32.mrf.mxu0
        %v1490 = vadd.f32 0.0, %v1489
        %v1491 = vpop.f32.mrf.mxu0
        %1492 = vdwg.mxu0
        %1494 = vrot.lane.b32.xlu0 %v1490, 8
        %v1495 = vpop.permute.xlu0 %1494
        %vm1497 = vcmask 130112
        %1498 = vst.msk [vmem:[#allocation2] sm:$0xff] %vm1497, %v1495
        %1499 = vrot.lane.b32.xlu0 %v1147, 112
        %v1500 = vpop.permute.xlu0 %1499
        %1501 = vrot.lane.b32.xlu0 %v1139, 112
        %v1502 = vpop.permute.xlu0 %1501
        %1503 = vrot.lane.b32.xlu0 %v1144, 112
        %v1504 = vpop.permute.xlu0 %1503
        %v1505 = vsel %vm1148, %v1500, 0
        %v1507 = vsel %vm1148, %v1502, 0
        %v1509 = vsel %vm1148, %v1504, 0
        %1511 = vmatprep.subr.mxu0 0.0
        %1512 = vmatpush1.xpose.msra.mxu0 0.0
        %1513 = vmatprep.subr.mxu0 0.0
        %1514 = vmatpush1.xpose.msra.mxu0 0.0
        %1515 = vmatprep.subr.mxu0 0.0
        %1516 = vmatpush1.xpose.msra.mxu0 0.0
        %1517 = vmatprep.subr.mxu0 0.0
        %1518 = vmatpush1.xpose.msra.mxu0 0.0
        %1519 = vmatprep.subr.mxu0 0.0
        %1520 = vmatpush1.xpose.msra.mxu0 0.0
        %1521 = vmatprep.subr.mxu0 0.0
        %1522 = vmatpush1.xpose.msra.mxu0 0.0
        %1523 = vmatprep.subr.mxu0 0.0
        %1524 = vmatpush1.xpose.msra.mxu0 0.0
        %1525 = vmatprep.subr.mxu0 0.0
        %1526 = vmatpush1.xpose.msra.mxu0 0.0
        %1527 = vmatprep.subr.mxu0 0.0
        %1528 = vmatpush1.xpose.msra.mxu0 0.0
        %1529 = vmatprep.subr.mxu0 0.0
        %1530 = vmatpush1.xpose.msra.mxu0 0.0
        %1531 = vmatprep.subr.mxu0 0.0
        %1532 = vmatpush1.xpose.msra.mxu0 0.0
        %1533 = vmatprep.subr.mxu0 0.0
        %1534 = vmatpush1.xpose.msra.mxu0 0.0
        %1535 = vmatprep.subr.mxu0 0.0
        %1536 = vmatpush1.xpose.msra.mxu0 0.0
        %1537 = vmatprep.subr.mxu0 0.0
        %1538 = vmatpush1.xpose.msra.mxu0 0.0
        %1539 = vmatprep.subr.mxu0 0.0
        %1540 = vmatpush1.xpose.msra.mxu0 %v1509
        %1541 = vmatprep.subr.mxu0 0.0
        %1542 = vmatpush1.xpose.msra.mxu0 %v1507
        %1543 = vmatprep.subr.mxu0 0.0
        %1544 = vmatpush2.xpose.msra.mxu0 0.0
        %1545 = vmatprep.subr.mxu0 0.0
        %1546 = vmatpush2.xpose.msra.mxu0 0.0
        %1547 = vmatprep.subr.mxu0 0.0
        %1548 = vmatpush2.xpose.msra.mxu0 0.0
        %1549 = vmatprep.subr.mxu0 0.0
        %1550 = vmatpush2.xpose.msra.mxu0 0.0
        %1551 = vmatprep.subr.mxu0 0.0
        %1552 = vmatpush2.xpose.msra.mxu0 0.0
        %1553 = vmatprep.subr.mxu0 0.0
        %1554 = vmatpush2.xpose.msra.mxu0 0.0
        %1555 = vmatprep.subr.mxu0 0.0
        %1556 = vmatpush2.xpose.msra.mxu0 0.0
        %1557 = vmatprep.subr.mxu0 0.0
        %1558 = vmatpush2.xpose.msra.mxu0 0.0
        %1559 = vmatprep.subr.mxu0 0.0
        %1560 = vmatpush2.xpose.msra.mxu0 0.0
        %1561 = vmatprep.subr.mxu0 0.0
        %1562 = vmatpush2.xpose.msra.mxu0 0.0
        %1563 = vmatprep.subr.mxu0 0.0
        %1564 = vmatpush2.xpose.msra.mxu0 0.0
        %1565 = vmatprep.subr.mxu0 0.0
        %1566 = vmatpush2.xpose.msra.mxu0 0.0
        %1567 = vmatprep.subr.mxu0 0.0
        %1568 = vmatpush2.xpose.msra.mxu0 0.0
        %1569 = vmatprep.subr.mxu0 0.0
        %1570 = vmatpush2.xpose.msra.mxu0 0.0
        %1571 = vmatprep.subr.mxu0 0.0
        %1572 = vmatpush2.xpose.msra.mxu0 0.0
        %1573 = vmatprep.subr.mxu0 0.0
        %1574 = vmatpush2.xpose.msra.mxu0 0.0
        %1575 = vmatprep.mubr.f32.mxu0 0.0
        %1576 = vmatmul.mubr.f32.gmra.mxu0 %v1505
        %v1577 = vpop.f32.mrf.mxu0
        %v1578 = vadd.f32 0.0, %v1577
        %v1579 = vpop.f32.mrf.mxu0
        %1580 = vdwg.mxu0
        %v1581 = vmul.f32 %v1578, 0.35355338
        %v1582 = vsel %vm1013, %v1581, -inf
        %1583 = vmax.xlane.f32.xlu0 %v1582
        %v1584 = vpop.xlane.xlu0 %1583
        %v1585 = vsub.f32 %v1581, %v1584
        %v1586 = vmul.f32 %v1585, 1.442695
        %v1587 = vpow.pop %v1586
        %v1588 = vsel %vm1013, %v1587, 0.0
        %1589 = vadd.xlane.f32.xlu0 %v1588
        %v1590 = vpop.xlane.xlu0 %1589
        %v1591 = vrcp.pop %v1590
        %v1592 = vmul.f32 %v1587, %v1591
        %1593 = vrot.lane.b32.xlu0 %v1139, 80
        %v1594 = vpop.permute.xlu0 %1593
        %1595 = vrot.lane.b32.xlu0 %v1144, 80
        %v1596 = vpop.permute.xlu0 %1595
        %v1600 = vsel %vm1013, %v1592, 0
        %1602 = vmatprep.subr.mxu0 0.0
        %1603 = vmatpush1.msra.mxu0 0.0
        %1604 = vmatprep.subr.mxu0 0.0
        %1605 = vmatpush1.msra.mxu0 0.0
        %1606 = vmatprep.subr.mxu0 0.0
        %1607 = vmatpush1.msra.mxu0 0.0
        %1608 = vmatprep.subr.mxu0 0.0
        %1609 = vmatpush1.msra.mxu0 0.0
        %1610 = vmatprep.subr.mxu0 0.0
        %1611 = vmatpush1.msra.mxu0 0.0
        %1612 = vmatprep.subr.mxu0 0.0
        %1613 = vmatpush1.msra.mxu0 0.0
        %1614 = vmatprep.subr.mxu0 0.0
        %1615 = vmatpush1.msra.mxu0 0.0
        %1616 = vmatprep.subr.mxu0 0.0
        %1617 = vmatpush1.msra.mxu0 0.0
        %1618 = vmatprep.subr.mxu0 0.0
        %1619 = vmatpush1.msra.mxu0 0.0
        %1620 = vmatprep.subr.mxu0 0.0
        %1621 = vmatpush1.msra.mxu0 0.0
        %1622 = vmatprep.subr.mxu0 0.0
        %1623 = vmatpush1.msra.mxu0 0.0
        %1624 = vmatprep.subr.mxu0 0.0
        %1625 = vmatpush1.msra.mxu0 0.0
        %1626 = vmatprep.subr.mxu0 0.0
        %1627 = vmatpush1.msra.mxu0 0.0
        %1628 = vmatprep.subr.mxu0 0.0
        %1629 = vmatpush1.msra.mxu0 0.0
        %1630 = vmatprep.subr.mxu0 0.0
        %1631 = vmatpush1.msra.mxu0 %v1596
        %1632 = vmatprep.subr.mxu0 0.0
        %1633 = vmatpush1.msra.mxu0 %v1594
        %1634 = vmatprep.subr.mxu0 0.0
        %1635 = vmatpush2.msra.mxu0 0.0
        %1636 = vmatprep.subr.mxu0 0.0
        %1637 = vmatpush2.msra.mxu0 0.0
        %1638 = vmatprep.subr.mxu0 0.0
        %1639 = vmatpush2.msra.mxu0 0.0
        %1640 = vmatprep.subr.mxu0 0.0
        %1641 = vmatpush2.msra.mxu0 0.0
        %1642 = vmatprep.subr.mxu0 0.0
        %1643 = vmatpush2.msra.mxu0 0.0
        %1644 = vmatprep.subr.mxu0 0.0
        %1645 = vmatpush2.msra.mxu0 0.0
        %1646 = vmatprep.subr.mxu0 0.0
        %1647 = vmatpush2.msra.mxu0 0.0
        %1648 = vmatprep.subr.mxu0 0.0
        %1649 = vmatpush2.msra.mxu0 0.0
        %1650 = vmatprep.subr.mxu0 0.0
        %1651 = vmatpush2.msra.mxu0 0.0
        %1652 = vmatprep.subr.mxu0 0.0
        %1653 = vmatpush2.msra.mxu0 0.0
        %1654 = vmatprep.subr.mxu0 0.0
        %1655 = vmatpush2.msra.mxu0 0.0
        %1656 = vmatprep.subr.mxu0 0.0
        %1657 = vmatpush2.msra.mxu0 0.0
        %1658 = vmatprep.subr.mxu0 0.0
        %1659 = vmatpush2.msra.mxu0 0.0
        %1660 = vmatprep.subr.mxu0 0.0
        %1661 = vmatpush2.msra.mxu0 0.0
        %1662 = vmatprep.subr.mxu0 0.0
        %1663 = vmatpush2.msra.mxu0 0.0
        %1664 = vmatprep.subr.mxu0 0.0
        %1665 = vmatpush2.msra.mxu0 0.0
        %1666 = vmatprep.mubr.f32.mxu0 0.0
        %1667 = vmatmul.mubr.f32.gmra.mxu0 %v1600
        %v1668 = vpop.f32.mrf.mxu0
        %v1669 = vadd.f32 0.0, %v1668
        %v1670 = vpop.f32.mrf.mxu0
        %1671 = vdwg.mxu0
        %1673 = vrot.lane.b32.xlu0 %v1669, 16
        %v1674 = vpop.permute.xlu0 %1673
        %vm1676 = vcmask 195712
        %1677 = vst.msk [vmem:[#allocation2] sm:$0xff] %vm1676, %v1674
        %1678 = vrot.lane.b32.xlu0 %v1147, 104
        %v1679 = vpop.permute.xlu0 %1678
        %1680 = vrot.lane.b32.xlu0 %v1139, 104
        %v1681 = vpop.permute.xlu0 %1680
        %1682 = vrot.lane.b32.xlu0 %v1144, 104
        %v1683 = vpop.permute.xlu0 %1682
        %v1684 = vsel %vm1148, %v1679, 0
        %v1686 = vsel %vm1148, %v1681, 0
        %v1688 = vsel %vm1148, %v1683, 0
        %1690 = vmatprep.subr.mxu0 0.0
        %1691 = vmatpush1.xpose.msra.mxu0 0.0
        %1692 = vmatprep.subr.mxu0 0.0
        %1693 = vmatpush1.xpose.msra.mxu0 0.0
        %1694 = vmatprep.subr.mxu0 0.0
        %1695 = vmatpush1.xpose.msra.mxu0 0.0
        %1696 = vmatprep.subr.mxu0 0.0
        %1697 = vmatpush1.xpose.msra.mxu0 0.0
        %1698 = vmatprep.subr.mxu0 0.0
        %1699 = vmatpush1.xpose.msra.mxu0 0.0
        %1700 = vmatprep.subr.mxu0 0.0
        %1701 = vmatpush1.xpose.msra.mxu0 0.0
        %1702 = vmatprep.subr.mxu0 0.0
        %1703 = vmatpush1.xpose.msra.mxu0 0.0
        %1704 = vmatprep.subr.mxu0 0.0
        %1705 = vmatpush1.xpose.msra.mxu0 0.0
        %1706 = vmatprep.subr.mxu0 0.0
        %1707 = vmatpush1.xpose.msra.mxu0 0.0
        %1708 = vmatprep.subr.mxu0 0.0
        %1709 = vmatpush1.xpose.msra.mxu0 0.0
        %1710 = vmatprep.subr.mxu0 0.0
        %1711 = vmatpush1.xpose.msra.mxu0 0.0
        %1712 = vmatprep.subr.mxu0 0.0
        %1713 = vmatpush1.xpose.msra.mxu0 0.0
        %1714 = vmatprep.subr.mxu0 0.0
        %1715 = vmatpush1.xpose.msra.mxu0 0.0
        %1716 = vmatprep.subr.mxu0 0.0
        %1717 = vmatpush1.xpose.msra.mxu0 0.0
        %1718 = vmatprep.subr.mxu0 0.0
        %1719 = vmatpush1.xpose.msra.mxu0 %v1688
        %1720 = vmatprep.subr.mxu0 0.0
        %1721 = vmatpush1.xpose.msra.mxu0 %v1686
        %1722 = vmatprep.subr.mxu0 0.0
        %1723 = vmatpush2.xpose.msra.mxu0 0.0
        %1724 = vmatprep.subr.mxu0 0.0
        %1725 = vmatpush2.xpose.msra.mxu0 0.0
        %1726 = vmatprep.subr.mxu0 0.0
        %1727 = vmatpush2.xpose.msra.mxu0 0.0
        %1728 = vmatprep.subr.mxu0 0.0
        %1729 = vmatpush2.xpose.msra.mxu0 0.0
        %1730 = vmatprep.subr.mxu0 0.0
        %1731 = vmatpush2.xpose.msra.mxu0 0.0
        %1732 = vmatprep.subr.mxu0 0.0
        %1733 = vmatpush2.xpose.msra.mxu0 0.0
        %1734 = vmatprep.subr.mxu0 0.0
        %1735 = vmatpush2.xpose.msra.mxu0 0.0
        %1736 = vmatprep.subr.mxu0 0.0
        %1737 = vmatpush2.xpose.msra.mxu0 0.0
        %1738 = vmatprep.subr.mxu0 0.0
        %1739 = vmatpush2.xpose.msra.mxu0 0.0
        %1740 = vmatprep.subr.mxu0 0.0
        %1741 = vmatpush2.xpose.msra.mxu0 0.0
        %1742 = vmatprep.subr.mxu0 0.0
        %1743 = vmatpush2.xpose.msra.mxu0 0.0
        %1744 = vmatprep.subr.mxu0 0.0
        %1745 = vmatpush2.xpose.msra.mxu0 0.0
        %1746 = vmatprep.subr.mxu0 0.0
        %1747 = vmatpush2.xpose.msra.mxu0 0.0
        %1748 = vmatprep.subr.mxu0 0.0
        %1749 = vmatpush2.xpose.msra.mxu0 0.0
        %1750 = vmatprep.subr.mxu0 0.0
        %1751 = vmatpush2.xpose.msra.mxu0 0.0
        %1752 = vmatprep.subr.mxu0 0.0
        %1753 = vmatpush2.xpose.msra.mxu0 0.0
        %1754 = vmatprep.mubr.f32.mxu0 0.0
        %1755 = vmatmul.mubr.f32.gmra.mxu0 %v1684
        %v1756 = vpop.f32.mrf.mxu0
        %v1757 = vadd.f32 0.0, %v1756
        %v1758 = vpop.f32.mrf.mxu0
        %1759 = vdwg.mxu0
        %v1760 = vmul.f32 %v1757, 0.35355338
        %v1761 = vsel %vm1013, %v1760, -inf
        %1762 = vmax.xlane.f32.xlu0 %v1761
        %v1763 = vpop.xlane.xlu0 %1762
        %v1764 = vsub.f32 %v1760, %v1763
        %v1765 = vmul.f32 %v1764, 1.442695
        %v1766 = vpow.pop %v1765
        %v1767 = vsel %vm1013, %v1766, 0.0
        %1768 = vadd.xlane.f32.xlu0 %v1767
        %v1769 = vpop.xlane.xlu0 %1768
        %v1770 = vrcp.pop %v1769
        %v1771 = vmul.f32 %v1766, %v1770
        %1772 = vrot.lane.b32.xlu0 %v1139, 72
        %v1773 = vpop.permute.xlu0 %1772
        %1774 = vrot.lane.b32.xlu0 %v1144, 72
        %v1775 = vpop.permute.xlu0 %1774
        %v1779 = vsel %vm1013, %v1771, 0
        %1781 = vmatprep.subr.mxu0 0.0
        %1782 = vmatpush1.msra.mxu0 0.0
        %1783 = vmatprep.subr.mxu0 0.0
        %1784 = vmatpush1.msra.mxu0 0.0
        %1785 = vmatprep.subr.mxu0 0.0
        %1786 = vmatpush1.msra.mxu0 0.0
        %1787 = vmatprep.subr.mxu0 0.0
        %1788 = vmatpush1.msra.mxu0 0.0
        %1789 = vmatprep.subr.mxu0 0.0
        %1790 = vmatpush1.msra.mxu0 0.0
        %1791 = vmatprep.subr.mxu0 0.0
        %1792 = vmatpush1.msra.mxu0 0.0
        %1793 = vmatprep.subr.mxu0 0.0
        %1794 = vmatpush1.msra.mxu0 0.0
        %1795 = vmatprep.subr.mxu0 0.0
        %1796 = vmatpush1.msra.mxu0 0.0
        %1797 = vmatprep.subr.mxu0 0.0
        %1798 = vmatpush1.msra.mxu0 0.0
        %1799 = vmatprep.subr.mxu0 0.0
        %1800 = vmatpush1.msra.mxu0 0.0
        %1801 = vmatprep.subr.mxu0 0.0
        %1802 = vmatpush1.msra.mxu0 0.0
        %1803 = vmatprep.subr.mxu0 0.0
        %1804 = vmatpush1.msra.mxu0 0.0
        %1805 = vmatprep.subr.mxu0 0.0
        %1806 = vmatpush1.msra.mxu0 0.0
        %1807 = vmatprep.subr.mxu0 0.0
        %1808 = vmatpush1.msra.mxu0 0.0
        %1809 = vmatprep.subr.mxu0 0.0
        %1810 = vmatpush1.msra.mxu0 %v1775
        %1811 = vmatprep.subr.mxu0 0.0
        %1812 = vmatpush1.msra.mxu0 %v1773
        %1813 = vmatprep.subr.mxu0 0.0
        %1814 = vmatpush2.msra.mxu0 0.0
        %1815 = vmatprep.subr.mxu0 0.0
        %1816 = vmatpush2.msra.mxu0 0.0
        %1817 = vmatprep.subr.mxu0 0.0
        %1818 = vmatpush2.msra.mxu0 0.0
        %1819 = vmatprep.subr.mxu0 0.0
        %1820 = vmatpush2.msra.mxu0 0.0
        %1821 = vmatprep.subr.mxu0 0.0
        %1822 = vmatpush2.msra.mxu0 0.0
        %1823 = vmatprep.subr.mxu0 0.0
        %1824 = vmatpush2.msra.mxu0 0.0
        %1825 = vmatprep.subr.mxu0 0.0
        %1826 = vmatpush2.msra.mxu0 0.0
        %1827 = vmatprep.subr.mxu0 0.0
        %1828 = vmatpush2.msra.mxu0 0.0
        %1829 = vmatprep.subr.mxu0 0.0
        %1830 = vmatpush2.msra.mxu0 0.0
        %1831 = vmatprep.subr.mxu0 0.0
        %1832 = vmatpush2.msra.mxu0 0.0
        %1833 = vmatprep.subr.mxu0 0.0
        %1834 = vmatpush2.msra.mxu0 0.0
        %1835 = vmatprep.subr.mxu0 0.0
        %1836 = vmatpush2.msra.mxu0 0.0
        %1837 = vmatprep.subr.mxu0 0.0
        %1838 = vmatpush2.msra.mxu0 0.0
        %1839 = vmatprep.subr.mxu0 0.0
        %1840 = vmatpush2.msra.mxu0 0.0
        %1841 = vmatprep.subr.mxu0 0.0
        %1842 = vmatpush2.msra.mxu0 0.0
        %1843 = vmatprep.subr.mxu0 0.0
        %1844 = vmatpush2.msra.mxu0 0.0
        %1845 = vmatprep.mubr.f32.mxu0 0.0
        %1846 = vmatmul.mubr.f32.gmra.mxu0 %v1779
        %v1847 = vpop.f32.mrf.mxu0
        %v1848 = vadd.f32 0.0, %v1847
        %v1849 = vpop.f32.mrf.mxu0
        %1850 = vdwg.mxu0
        %1852 = vrot.lane.b32.xlu0 %v1848, 24
        %v1853 = vpop.permute.xlu0 %1852
        %vm1855 = vcmask 261312
        %1856 = vst.msk [vmem:[#allocation2] sm:$0xff] %vm1855, %v1853
        %v1857 = vld [vmem:[#allocation2] sm:$0xff]
        %v1858 = vld [vmem:[%s7] sm:$0xff]
        %v1859 = vld [vmem:[%s7 + $0x8] sm:$0xff]
        %v1860 = vld [vmem:[%s7 + $0x10] sm:$0xff]
        %v1861 = vld [vmem:[%s7 + $0x18] sm:$0xff]
        %v1862 = vld [vmem:[#allocation14] sm:$0x1]
        %v1864 = vlaneseq
        %v1865 = vshrl.u32 %v1864, 7
        %v1866 = vsub.s32 0, %v1865
        %v1867 = vrot.slane %v1862, %v1866
        %vm1869 = vcmask 261120
        %v1871 = vsel %vm1869, %v1857, 0
        %1873 = vmatprep.subr.mxu0 0.0
        %1874 = vmatpush1.msra.mxu0 0.0
        %1875 = vmatprep.subr.mxu0 0.0
        %1876 = vmatpush1.msra.mxu0 0.0
        %1877 = vmatprep.subr.mxu0 0.0
        %1878 = vmatpush1.msra.mxu0 0.0
        %1879 = vmatprep.subr.mxu0 0.0
        %1880 = vmatpush1.msra.mxu0 0.0
        %1881 = vmatprep.subr.mxu0 0.0
        %1882 = vmatpush1.msra.mxu0 0.0
        %1883 = vmatprep.subr.mxu0 0.0
        %1884 = vmatpush1.msra.mxu0 0.0
        %1885 = vmatprep.subr.mxu0 0.0
        %1886 = vmatpush1.msra.mxu0 0.0
        %1887 = vmatprep.subr.mxu0 0.0
        %1888 = vmatpush1.msra.mxu0 0.0
        %1889 = vmatprep.subr.mxu0 0.0
        %1890 = vmatpush1.msra.mxu0 0.0
        %1891 = vmatprep.subr.mxu0 0.0
        %1892 = vmatpush1.msra.mxu0 0.0
        %1893 = vmatprep.subr.mxu0 0.0
        %1894 = vmatpush1.msra.mxu0 0.0
        %1895 = vmatprep.subr.mxu0 0.0
        %1896 = vmatpush1.msra.mxu0 0.0
        %1897 = vmatprep.subr.mxu0 0.0
        %1898 = vmatpush1.msra.mxu0 %v1861
        %1899 = vmatprep.subr.mxu0 0.0
        %1900 = vmatpush1.msra.mxu0 %v1860
        %1901 = vmatprep.subr.mxu0 0.0
        %1902 = vmatpush1.msra.mxu0 %v1859
        %1903 = vmatprep.subr.mxu0 0.0
        %1904 = vmatpush1.msra.mxu0 %v1858
        %1905 = vmatprep.subr.mxu0 0.0
        %1906 = vmatpush2.msra.mxu0 0.0
        %1907 = vmatprep.subr.mxu0 0.0
        %1908 = vmatpush2.msra.mxu0 0.0
        %1909 = vmatprep.subr.mxu0 0.0
        %1910 = vmatpush2.msra.mxu0 0.0
        %1911 = vmatprep.subr.mxu0 0.0
        %1912 = vmatpush2.msra.mxu0 0.0
        %1913 = vmatprep.subr.mxu0 0.0
        %1914 = vmatpush2.msra.mxu0 0.0
        %1915 = vmatprep.subr.mxu0 0.0
        %1916 = vmatpush2.msra.mxu0 0.0
        %1917 = vmatprep.subr.mxu0 0.0
        %1918 = vmatpush2.msra.mxu0 0.0
        %1919 = vmatprep.subr.mxu0 0.0
        %1920 = vmatpush2.msra.mxu0 0.0
        %1921 = vmatprep.subr.mxu0 0.0
        %1922 = vmatpush2.msra.mxu0 0.0
        %1923 = vmatprep.subr.mxu0 0.0
        %1924 = vmatpush2.msra.mxu0 0.0
        %1925 = vmatprep.subr.mxu0 0.0
        %1926 = vmatpush2.msra.mxu0 0.0
        %1927 = vmatprep.subr.mxu0 0.0
        %1928 = vmatpush2.msra.mxu0 0.0
        %1929 = vmatprep.subr.mxu0 0.0
        %1930 = vmatpush2.msra.mxu0 0.0
        %1931 = vmatprep.subr.mxu0 0.0
        %1932 = vmatpush2.msra.mxu0 0.0
        %1933 = vmatprep.subr.mxu0 0.0
        %1934 = vmatpush2.msra.mxu0 0.0
        %1935 = vmatprep.subr.mxu0 0.0
        %1936 = vmatpush2.msra.mxu0 0.0
        %1937 = vmatprep.mubr.f32.mxu0 0.0
        %1938 = vmatmul.mubr.f32.gmra.mxu0 %v1871
        %v1939 = vpop.f32.mrf.mxu0
        %v1940 = vadd.f32 %v1867, %v1939
        %v1941 = vpop.f32.mrf.mxu0
        %1942 = vdwg.mxu0
        %v1943 = vld [vmem:[#allocation6] sm:$0xff]
        %v1944 = vadd.f32 %v1943, %v1940
        %v1945 = vld [vmem:[#allocation15] sm:$0x1]
        %v1946 = vld [vmem:[#allocation17] sm:$0x1]
        %v1947 = vsel %vm1869, %v1944, 0.0
        %1948 = vadd.xlane.f32.xlu0 %v1947
        %v1949 = vpop.xlane.xlu0 %1948
        %v1950 = vrcp.pop 32.0
        %v1951 = vmul.f32 %v1949, %v1950
        %v1952 = vsub.f32 %v1944, %v1951
        %v1953 = vmul.f32 %v1952, %v1952
        %v1954 = vsel %vm1869, %v1953, 0.0
        %1955 = vadd.xlane.f32.xlu0 %v1954
        %v1956 = vpop.xlane.xlu0 %1955
        %v1957 = vmul.f32 %v1956, %v1950
        %v1958 = vadd.f32 %v1957, 1e-05
        %v1959 = vrsqrt.pop %v1958
        %v1960 = vmul.f32 %v1952, %v1959
        %v1962 = vlaneseq
        %v1963 = vshrl.u32 %v1962, 7
        %v1964 = vsub.s32 0, %v1963
        %v1965 = vrot.slane %v1945, %v1964
        %v1967 = vmul.f32 %v1960, %v1965
        %v1969 = vlaneseq
        %v1970 = vshrl.u32 %v1969, 7
        %v1971 = vsub.s32 0, %v1970
        %v1972 = vrot.slane %v1946, %v1971
        %v1974 = vadd.f32 %v1967, %v1972
        %v1975 = vld [vmem:[#allocation18] sm:$0xff]
        %v1976 = vld [vmem:[#allocation18 + $0x8] sm:$0xff]
        %v1977 = vld [vmem:[#allocation18 + $0x10] sm:$0xff]
        %v1978 = vld [vmem:[#allocation18 + $0x18] sm:$0xff]
        %v1979 = vld [vmem:[#allocation20] sm:$0x1]
        %v1981 = vlaneseq
        %v1982 = vshrl.u32 %v1981, 7
        %v1983 = vsub.s32 0, %v1982
        %v1984 = vrot.slane %v1979, %v1983
        %v1987 = vsel %vm1869, %v1974, 0
        %1989 = vmatprep.subr.mxu0 0.0
        %1990 = vmatpush1.msra.mxu0 0.0
        %1991 = vmatprep.subr.mxu0 0.0
        %1992 = vmatpush1.msra.mxu0 0.0
        %1993 = vmatprep.subr.mxu0 0.0
        %1994 = vmatpush1.msra.mxu0 0.0
        %1995 = vmatprep.subr.mxu0 0.0
        %1996 = vmatpush1.msra.mxu0 0.0
        %1997 = vmatprep.subr.mxu0 0.0
        %1998 = vmatpush1.msra.mxu0 0.0
        %1999 = vmatprep.subr.mxu0 0.0
        %2000 = vmatpush1.msra.mxu0 0.0
        %2001 = vmatprep.subr.mxu0 0.0
        %2002 = vmatpush1.msra.mxu0 0.0
        %2003 = vmatprep.subr.mxu0 0.0
        %2004 = vmatpush1.msra.mxu0 0.0
        %2005 = vmatprep.subr.mxu0 0.0
        %2006 = vmatpush1.msra.mxu0 0.0
        %2007 = vmatprep.subr.mxu0 0.0
        %2008 = vmatpush1.msra.mxu0 0.0
        %2009 = vmatprep.subr.mxu0 0.0
        %2010 = vmatpush1.msra.mxu0 0.0
        %2011 = vmatprep.subr.mxu0 0.0
        %2012 = vmatpush1.msra.mxu0 0.0
        %2013 = vmatprep.subr.mxu0 0.0
        %2014 = vmatpush1.msra.mxu0 %v1978
        %2015 = vmatprep.subr.mxu0 0.0
        %2016 = vmatpush1.msra.mxu0 %v1977
        %2017 = vmatprep.subr.mxu0 0.0
        %2018 = vmatpush1.msra.mxu0 %v1976
        %2019 = vmatprep.subr.mxu0 0.0
        %2020 = vmatpush1.msra.mxu0 %v1975
        %2021 = vmatprep.subr.mxu0 0.0
        %2022 = vmatpush2.msra.mxu0 0.0
        %2023 = vmatprep.subr.mxu0 0.0
        %2024 = vmatpush2.msra.mxu0 0.0
        %2025 = vmatprep.subr.mxu0 0.0
        %2026 = vmatpush2.msra.mxu0 0.0
        %2027 = vmatprep.subr.mxu0 0.0
        %2028 = vmatpush2.msra.mxu0 0.0
        %2029 = vmatprep.subr.mxu0 0.0
        %2030 = vmatpush2.msra.mxu0 0.0
        %2031 = vmatprep.subr.mxu0 0.0
        %2032 = vmatpush2.msra.mxu0 0.0
        %2033 = vmatprep.subr.mxu0 0.0
        %2034 = vmatpush2.msra.mxu0 0.0
        %2035 = vmatprep.subr.mxu0 0.0
        %2036 = vmatpush2.msra.mxu0 0.0
        %2037 = vmatprep.subr.mxu0 0.0
        %2038 = vmatpush2.msra.mxu0 0.0
        %2039 = vmatprep.subr.mxu0 0.0
        %2040 = vmatpush2.msra.mxu0 0.0
        %2041 = vmatprep.subr.mxu0 0.0
        %2042 = vmatpush2.msra.mxu0 0.0
        %2043 = vmatprep.subr.mxu0 0.0
        %2044 = vmatpush2.msra.mxu0 0.0
        %2045 = vmatprep.subr.mxu0 0.0
        %2046 = vmatpush2.msra.mxu0 0.0
        %2047 = vmatprep.subr.mxu0 0.0
        %2048 = vmatpush2.msra.mxu0 0.0
        %2049 = vmatprep.subr.mxu0 0.0
        %2050 = vmatpush2.msra.mxu0 0.0
        %2051 = vmatprep.subr.mxu0 0.0
        %2052 = vmatpush2.msra.mxu0 0.0
        %2053 = vmatprep.mubr.f32.mxu0 0.0
        %2054 = vmatmul.mubr.f32.gmra.mxu0 %v1987
        %v2055 = vpop.f32.mrf.mxu0
        %v2056 = vadd.f32 %v1984, %v2055
        %v2057 = vpop.f32.mrf.mxu0
        %2058 = vdwg.mxu0
        %v2059 = vmax.f32 %v2056, 0.0
        %v2060 = vld [vmem:[%s13] sm:$0xff]
        %v2061 = vld [vmem:[%s13 + $0x8] sm:$0xff]
        %v2062 = vld [vmem:[%s13 + $0x10] sm:$0xff]
        %v2063 = vld [vmem:[%s13 + $0x18] sm:$0xff]
        %v2064 = vld [vmem:[%s13 + $0x20] sm:$0xff]
        %v2065 = vld [vmem:[%s13 + $0x28] sm:$0xff]
        %v2066 = vld [vmem:[%s13 + $0x30] sm:$0xff]
        %v2067 = vld [vmem:[%s13 + $0x38] sm:$0xff]
        %v2068 = vld [vmem:[#allocation21] sm:$0x1]
        %v2070 = vlaneseq
        %v2071 = vshrl.u32 %v2070, 7
        %v2072 = vsub.s32 0, %v2071
        %v2073 = vrot.slane %v2068, %v2072
        %vm2075 = vcmask 523264
        %v2077 = vsel %vm2075, %v2059, 0
        %2079 = vmatprep.subr.mxu0 0.0
        %2080 = vmatpush1.msra.mxu0 0.0
        %2081 = vmatprep.subr.mxu0 0.0
        %2082 = vmatpush1.msra.mxu0 0.0
        %2083 = vmatprep.subr.mxu0 0.0
        %2084 = vmatpush1.msra.mxu0 0.0
        %2085 = vmatprep.subr.mxu0 0.0
        %2086 = vmatpush1.msra.mxu0 0.0
        %2087 = vmatprep.subr.mxu0 0.0
        %2088 = vmatpush1.msra.mxu0 0.0
        %2089 = vmatprep.subr.mxu0 0.0
        %2090 = vmatpush1.msra.mxu0 0.0
        %2091 = vmatprep.subr.mxu0 0.0
        %2092 = vmatpush1.msra.mxu0 0.0
        %2093 = vmatprep.subr.mxu0 0.0
        %2094 = vmatpush1.msra.mxu0 0.0
        %2095 = vmatprep.subr.mxu0 0.0
        %2096 = vmatpush1.msra.mxu0 %v2067
        %2097 = vmatprep.subr.mxu0 0.0
        %2098 = vmatpush1.msra.mxu0 %v2066
        %2099 = vmatprep.subr.mxu0 0.0
        %2100 = vmatpush1.msra.mxu0 %v2065
        %2101 = vmatprep.subr.mxu0 0.0
        %2102 = vmatpush1.msra.mxu0 %v2064
        %2103 = vmatprep.subr.mxu0 0.0
        %2104 = vmatpush1.msra.mxu0 %v2063
        %2105 = vmatprep.subr.mxu0 0.0
        %2106 = vmatpush1.msra.mxu0 %v2062
        %2107 = vmatprep.subr.mxu0 0.0
        %2108 = vmatpush1.msra.mxu0 %v2061
        %2109 = vmatprep.subr.mxu0 0.0
        %2110 = vmatpush1.msra.mxu0 %v2060
        %2111 = vmatprep.subr.mxu0 0.0
        %2112 = vmatpush2.msra.mxu0 0.0
        %2113 = vmatprep.subr.mxu0 0.0
        %2114 = vmatpush2.msra.mxu0 0.0
        %2115 = vmatprep.subr.mxu0 0.0
        %2116 = vmatpush2.msra.mxu0 0.0
        %2117 = vmatprep.subr.mxu0 0.0
        %2118 = vmatpush2.msra.mxu0 0.0
        %2119 = vmatprep.subr.mxu0 0.0
        %2120 = vmatpush2.msra.mxu0 0.0
        %2121 = vmatprep.subr.mxu0 0.0
        %2122 = vmatpush2.msra.mxu0 0.0
        %2123 = vmatprep.subr.mxu0 0.0
        %2124 = vmatpush2.msra.mxu0 0.0
        %2125 = vmatprep.subr.mxu0 0.0
        %2126 = vmatpush2.msra.mxu0 0.0
        %2127 = vmatprep.subr.mxu0 0.0
        %2128 = vmatpush2.msra.mxu0 0.0
        %2129 = vmatprep.subr.mxu0 0.0
        %2130 = vmatpush2.msra.mxu0 0.0
        %2131 = vmatprep.subr.mxu0 0.0
        %2132 = vmatpush2.msra.mxu0 0.0
        %2133 = vmatprep.subr.mxu0 0.0
        %2134 = vmatpush2.msra.mxu0 0.0
        %2135 = vmatprep.subr.mxu0 0.0
        %2136 = vmatpush2.msra.mxu0 0.0
        %2137 = vmatprep.subr.mxu0 0.0
        %2138 = vmatpush2.msra.mxu0 0.0
        %2139 = vmatprep.subr.mxu0 0.0
        %2140 = vmatpush2.msra.mxu0 0.0
        %2141 = vmatprep.subr.mxu0 0.0
        %2142 = vmatpush2.msra.mxu0 0.0
        %2143 = vmatprep.mubr.f32.mxu0 0.0
        %2144 = vmatmul.mubr.f32.gmra.mxu0 %v2077
        %v2145 = vpop.f32.mrf.mxu0
        %v2146 = vadd.f32 %v2073, %v2145
        %v2147 = vpop.f32.mrf.mxu0
        %2148 = vdwg.mxu0
        %v2149 = vadd.f32 %v1944, %v2146
        %v2150 = vld [vmem:[#allocation23] sm:$0x1]
        %v2151 = vld [vmem:[#allocation24] sm:$0x1]
        %v2152 = vsel %vm1869, %v2149, 0.0
        %2153 = vadd.xlane.f32.xlu0 %v2152
        %v2154 = vpop.xlane.xlu0 %2153
        %v2155 = vmul.f32 %v2154, %v1950
        %v2156 = vsub.f32 %v2149, %v2155
        %v2157 = vmul.f32 %v2156, %v2156
        %v2158 = vsel %vm1869, %v2157, 0.0
        %2159 = vadd.xlane.f32.xlu0 %v2158
        %v2160 = vpop.xlane.xlu0 %2159
        %v2161 = vmul.f32 %v2160, %v1950
        %v2162 = vadd.f32 %v2161, 1e-05
        %v2163 = vrsqrt.pop %v2162
        %v2164 = vmul.f32 %v2156, %v2163
        %v2165 = vlaneseq
        %v2166 = vshrl.u32 %v2165, 7
        %v2167 = vsub.s32 0, %v2166
        %v2168 = vrot.slane %v2150, %v2167
        %v2169 = vmul.f32 %v2164, %v2168
        %v2170 = vlaneseq
        %v2171 = vshrl.u32 %v2170, 7
        %v2172 = vsub.s32 0, %v2171
        %v2173 = vrot.slane %v2151, %v2172
        %v2174 = vadd.f32 %v2169, %v2173
        %v2175 = vld [vmem:[%s17] sm:$0xff]
        %v2176 = vld [vmem:[%s17 + $0x8] sm:$0xff]
        %v2177 = vld [vmem:[%s17 + $0x10] sm:$0xff]
        %v2178 = vld [vmem:[%s17 + $0x18] sm:$0xff]
        %v2179 = vld [vmem:[#allocation26] sm:$0x1]
        %v2180 = vlaneseq
        %v2181 = vshrl.u32 %v2180, 7
        %v2182 = vsub.s32 0, %v2181
        %v2183 = vrot.slane %v2179, %v2182
        %v2185 = vsel %vm1869, %v2174, 0
        %2187 = vmatprep.subr.mxu0 0.0
        %2188 = vmatpush1.msra.mxu0 0.0
        %2189 = vmatprep.subr.mxu0 0.0
        %2190 = vmatpush1.msra.mxu0 0.0
        %2191 = vmatprep.subr.mxu0 0.0
        %2192 = vmatpush1.msra.mxu0 0.0
        %2193 = vmatprep.subr.mxu0 0.0
        %2194 = vmatpush1.msra.mxu0 0.0
        %2195 = vmatprep.subr.mxu0 0.0
        %2196 = vmatpush1.msra.mxu0 0.0
        %2197 = vmatprep.subr.mxu0 0.0
        %2198 = vmatpush1.msra.mxu0 0.0
        %2199 = vmatprep.subr.mxu0 0.0
        %2200 = vmatpush1.msra.mxu0 0.0
        %2201 = vmatprep.subr.mxu0 0.0
        %2202 = vmatpush1.msra.mxu0 0.0
        %2203 = vmatprep.subr.mxu0 0.0
        %2204 = vmatpush1.msra.mxu0 0.0
        %2205 = vmatprep.subr.mxu0 0.0
        %2206 = vmatpush1.msra.mxu0 0.0
        %2207 = vmatprep.subr.mxu0 0.0
        %2208 = vmatpush1.msra.mxu0 0.0
        %2209 = vmatprep.subr.mxu0 0.0
        %2210 = vmatpush1.msra.mxu0 0.0
        %2211 = vmatprep.subr.mxu0 0.0
        %2212 = vmatpush1.msra.mxu0 %v2178
        %2213 = vmatprep.subr.mxu0 0.0
        %2214 = vmatpush1.msra.mxu0 %v2177
        %2215 = vmatprep.subr.mxu0 0.0
        %2216 = vmatpush1.msra.mxu0 %v2176
        %2217 = vmatprep.subr.mxu0 0.0
        %2218 = vmatpush1.msra.mxu0 %v2175
        %2219 = vmatprep.subr.mxu0 0.0
        %2220 = vmatpush2.msra.mxu0 0.0
        %2221 = vmatprep.subr.mxu0 0.0
        %2222 = vmatpush2.msra.mxu0 0.0
        %2223 = vmatprep.subr.mxu0 0.0
        %2224 = vmatpush2.msra.mxu0 0.0
        %2225 = vmatprep.subr.mxu0 0.0
        %2226 = vmatpush2.msra.mxu0 0.0
        %2227 = vmatprep.subr.mxu0 0.0
        %2228 = vmatpush2.msra.mxu0 0.0
        %2229 = vmatprep.subr.mxu0 0.0
        %2230 = vmatpush2.msra.mxu0 0.0
        %2231 = vmatprep.subr.mxu0 0.0
        %2232 = vmatpush2.msra.mxu0 0.0
        %2233 = vmatprep.subr.mxu0 0.0
        %2234 = vmatpush2.msra.mxu0 0.0
        %2235 = vmatprep.subr.mxu0 0.0
        %2236 = vmatpush2.msra.mxu0 0.0
        %2237 = vmatprep.subr.mxu0 0.0
        %2238 = vmatpush2.msra.mxu0 0.0
        %2239 = vmatprep.subr.mxu0 0.0
        %2240 = vmatpush2.msra.mxu0 0.0
        %2241 = vmatprep.subr.mxu0 0.0
        %2242 = vmatpush2.msra.mxu0 0.0
        %2243 = vmatprep.subr.mxu0 0.0
        %2244 = vmatpush2.msra.mxu0 0.0
        %2245 = vmatprep.subr.mxu0 0.0
        %2246 = vmatpush2.msra.mxu0 0.0
        %2247 = vmatprep.subr.mxu0 0.0
        %2248 = vmatpush2.msra.mxu0 0.0
        %2249 = vmatprep.subr.mxu0 0.0
        %2250 = vmatpush2.msra.mxu0 0.0
        %2251 = vmatprep.mubr.f32.mxu0 0.0
        %2252 = vmatmul.mubr.f32.gmra.mxu0 %v2185
        %v2253 = vpop.f32.mrf.mxu0
        %v2254 = vadd.f32 %v2183, %v2253
        %v2255 = vpop.f32.mrf.mxu0
        %2256 = vdwg.mxu0
        %2258 = vrot.lane.b32.xlu0 %v2254, 96
        %v2259 = vpop.permute.xlu0 %2258
        %v2260 = vsel %vm1148, %v2254, 0
        %v2262 = vsel %vm1148, %v2259, 0
        %2264 = vmatprep.subr.mxu0 0.0
        %2265 = vmatpush1.xpose.msra.mxu0 0.0
        %2266 = vmatprep.subr.mxu0 0.0
        %2267 = vmatpush1.xpose.msra.mxu0 0.0
        %2268 = vmatprep.subr.mxu0 0.0
        %2269 = vmatpush1.xpose.msra.mxu0 0.0
        %2270 = vmatprep.subr.mxu0 0.0
        %2271 = vmatpush1.xpose.msra.mxu0 0.0
        %2272 = vmatprep.subr.mxu0 0.0
        %2273 = vmatpush1.xpose.msra.mxu0 0.0
        %2274 = vmatprep.subr.mxu0 0.0
        %2275 = vmatpush1.xpose.msra.mxu0 0.0
        %2276 = vmatprep.subr.mxu0 0.0
        %2277 = vmatpush1.xpose.msra.mxu0 0.0
        %2278 = vmatprep.subr.mxu0 0.0
        %2279 = vmatpush1.xpose.msra.mxu0 0.0
        %2280 = vmatprep.subr.mxu0 0.0
        %2281 = vmatpush1.xpose.msra.mxu0 0.0
        %2282 = vmatprep.subr.mxu0 0.0
        %2283 = vmatpush1.xpose.msra.mxu0 0.0
        %2284 = vmatprep.subr.mxu0 0.0
        %2285 = vmatpush1.xpose.msra.mxu0 0.0
        %2286 = vmatprep.subr.mxu0 0.0
        %2287 = vmatpush1.xpose.msra.mxu0 0.0
        %2288 = vmatprep.subr.mxu0 0.0
        %2289 = vmatpush1.xpose.msra.mxu0 0.0
        %2290 = vmatprep.subr.mxu0 0.0
        %2291 = vmatpush1.xpose.msra.mxu0 0.0
        %2292 = vmatprep.subr.mxu0 0.0
        %2293 = vmatpush1.xpose.msra.mxu0 0.0
        %2294 = vmatprep.subr.mxu0 0.0
        %2295 = vmatpush1.xpose.msra.mxu0 %v2262
        %2296 = vmatprep.subr.mxu0 0.0
        %2297 = vmatpush2.xpose.msra.mxu0 0.0
        %2298 = vmatprep.subr.mxu0 0.0
        %2299 = vmatpush2.xpose.msra.mxu0 0.0
        %2300 = vmatprep.subr.mxu0 0.0
        %2301 = vmatpush2.xpose.msra.mxu0 0.0
        %2302 = vmatprep.subr.mxu0 0.0
        %2303 = vmatpush2.xpose.msra.mxu0 0.0
        %2304 = vmatprep.subr.mxu0 0.0
        %2305 = vmatpush2.xpose.msra.mxu0 0.0
        %2306 = vmatprep.subr.mxu0 0.0
        %2307 = vmatpush2.xpose.msra.mxu0 0.0
        %2308 = vmatprep.subr.mxu0 0.0
        %2309 = vmatpush2.xpose.msra.mxu0 0.0
        %2310 = vmatprep.subr.mxu0 0.0
        %2311 = vmatpush2.xpose.msra.mxu0 0.0
        %2312 = vmatprep.subr.mxu0 0.0
        %2313 = vmatpush2.xpose.msra.mxu0 0.0
        %2314 = vmatprep.subr.mxu0 0.0
        %2315 = vmatpush2.xpose.msra.mxu0 0.0
        %2316 = vmatprep.subr.mxu0 0.0
        %2317 = vmatpush2.xpose.msra.mxu0 0.0
        %2318 = vmatprep.subr.mxu0 0.0
        %2319 = vmatpush2.xpose.msra.mxu0 0.0
        %2320 = vmatprep.subr.mxu0 0.0
        %2321 = vmatpush2.xpose.msra.mxu0 0.0
        %2322 = vmatprep.subr.mxu0 0.0
        %2323 = vmatpush2.xpose.msra.mxu0 0.0
        %2324 = vmatprep.subr.mxu0 0.0
        %2325 = vmatpush2.xpose.msra.mxu0 0.0
        %2326 = vmatprep.subr.mxu0 0.0
        %2327 = vmatpush2.xpose.msra.mxu0 0.0
        %2328 = vmatprep.mubr.f32.mxu0 0.0
        %2329 = vmatmul.mubr.f32.gmra.mxu0 %v2260
        %v2330 = vpop.f32.mrf.mxu0
        %v2331 = vadd.f32 0.0, %v2330
        %v2332 = vpop.f32.mrf.mxu0
        %2333 = vdwg.mxu0
        %v2334 = vmul.f32 %v2331, 0.35355338
        %v2335 = vsel %vm1148, %v2334, -inf
        %2336 = vmax.xlane.f32.xlu0 %v2335
        %v2337 = vpop.xlane.xlu0 %2336
        %v2338 = vsub.f32 %v2334, %v2337
        %v2339 = vmul.f32 %v2338, 1.442695
        %v2340 = vpow.pop %v2339
        %v2341 = vsel %vm1148, %v2340, 0.0
        %2342 = vadd.xlane.f32.xlu0 %v2341
        %v2343 = vpop.xlane.xlu0 %2342
        %v2344 = vrcp.pop %v2343
        %v2345 = vmul.f32 %v2340, %v2344
        %2346 = vrot.lane.b32.xlu0 %v2254, 64
        %v2347 = vpop.permute.xlu0 %2346
        %v2350 = vsel %vm1148, %v2345, 0
        %2352 = vmatprep.subr.mxu0 0.0
        %2353 = vmatpush1.msra.mxu0 0.0
        %2354 = vmatprep.subr.mxu0 0.0
        %2355 = vmatpush1.msra.mxu0 0.0
        %2356 = vmatprep.subr.mxu0 0.0
        %2357 = vmatpush1.msra.mxu0 0.0
        %2358 = vmatprep.subr.mxu0 0.0
        %2359 = vmatpush1.msra.mxu0 0.0
        %2360 = vmatprep.subr.mxu0 0.0
        %2361 = vmatpush1.msra.mxu0 0.0
        %2362 = vmatprep.subr.mxu0 0.0
        %2363 = vmatpush1.msra.mxu0 0.0
        %2364 = vmatprep.subr.mxu0 0.0
        %2365 = vmatpush1.msra.mxu0 0.0
        %2366 = vmatprep.subr.mxu0 0.0
        %2367 = vmatpush1.msra.mxu0 0.0
        %2368 = vmatprep.subr.mxu0 0.0
        %2369 = vmatpush1.msra.mxu0 0.0
        %2370 = vmatprep.subr.mxu0 0.0
        %2371 = vmatpush1.msra.mxu0 0.0
        %2372 = vmatprep.subr.mxu0 0.0
        %2373 = vmatpush1.msra.mxu0 0.0
        %2374 = vmatprep.subr.mxu0 0.0
        %2375 = vmatpush1.msra.mxu0 0.0
        %2376 = vmatprep.subr.mxu0 0.0
        %2377 = vmatpush1.msra.mxu0 0.0
        %2378 = vmatprep.subr.mxu0 0.0
        %2379 = vmatpush1.msra.mxu0 0.0
        %2380 = vmatprep.subr.mxu0 0.0
        %2381 = vmatpush1.msra.mxu0 0.0
        %2382 = vmatprep.subr.mxu0 0.0
        %2383 = vmatpush1.msra.mxu0 %v2347
        %2384 = vmatprep.subr.mxu0 0.0
        %2385 = vmatpush2.msra.mxu0 0.0
        %2386 = vmatprep.subr.mxu0 0.0
        %2387 = vmatpush2.msra.mxu0 0.0
        %2388 = vmatprep.subr.mxu0 0.0
        %2389 = vmatpush2.msra.mxu0 0.0
        %2390 = vmatprep.subr.mxu0 0.0
        %2391 = vmatpush2.msra.mxu0 0.0
        %2392 = vmatprep.subr.mxu0 0.0
        %2393 = vmatpush2.msra.mxu0 0.0
        %2394 = vmatprep.subr.mxu0 0.0
        %2395 = vmatpush2.msra.mxu0 0.0
        %2396 = vmatprep.subr.mxu0 0.0
        %2397 = vmatpush2.msra.mxu0 0.0
        %2398 = vmatprep.subr.mxu0 0.0
        %2399 = vmatpush2.msra.mxu0 0.0
        %2400 = vmatprep.subr.mxu0 0.0
        %2401 = vmatpush2.msra.mxu0 0.0
        %2402 = vmatprep.subr.mxu0 0.0
        %2403 = vmatpush2.msra.mxu0 0.0
        %2404 = vmatprep.subr.mxu0 0.0
        %2405 = vmatpush2.msra.mxu0 0.0
        %2406 = vmatprep.subr.mxu0 0.0
        %2407 = vmatpush2.msra.mxu0 0.0
        %2408 = vmatprep.subr.mxu0 0.0
        %2409 = vmatpush2.msra.mxu0 0.0
        %2410 = vmatprep.subr.mxu0 0.0
        %2411 = vmatpush2.msra.mxu0 0.0
        %2412 = vmatprep.subr.mxu0 0.0
        %2413 = vmatpush2.msra.mxu0 0.0
        %2414 = vmatprep.subr.mxu0 0.0
        %2415 = vmatpush2.msra.mxu0 0.0
        %2416 = vmatprep.mubr.f32.mxu0 0.0
        %2417 = vmatmul.mubr.f32.gmra.mxu0 %v2350
        %v2418 = vpop.f32.mrf.mxu0
        %v2419 = vadd.f32 0.0, %v2418
        %v2420 = vpop.f32.mrf.mxu0
        %2421 = vdwg.mxu0
        %2422 = vst.msk [vmem:[#allocation2] sm:$0xff] %vm1148, %v2419
        %2423 = vrot.lane.b32.xlu0 %v2254, 120
        %v2424 = vpop.permute.xlu0 %2423
        %2425 = vrot.lane.b32.xlu0 %v2254, 88
        %v2426 = vpop.permute.xlu0 %2425
        %v2427 = vsel %vm1148, %v2424, 0
        %v2429 = vsel %vm1148, %v2426, 0
        %2431 = vmatprep.subr.mxu0 0.0
        %2432 = vmatpush1.xpose.msra.mxu0 0.0
        %2433 = vmatprep.subr.mxu0 0.0
        %2434 = vmatpush1.xpose.msra.mxu0 0.0
        %2435 = vmatprep.subr.mxu0 0.0
        %2436 = vmatpush1.xpose.msra.mxu0 0.0
        %2437 = vmatprep.subr.mxu0 0.0
        %2438 = vmatpush1.xpose.msra.mxu0 0.0
        %2439 = vmatprep.subr.mxu0 0.0
        %2440 = vmatpush1.xpose.msra.mxu0 0.0
        %2441 = vmatprep.subr.mxu0 0.0
        %2442 = vmatpush1.xpose.msra.mxu0 0.0
        %2443 = vmatprep.subr.mxu0 0.0
        %2444 = vmatpush1.xpose.msra.mxu0 0.0
        %2445 = vmatprep.subr.mxu0 0.0
        %2446 = vmatpush1.xpose.msra.mxu0 0.0
        %2447 = vmatprep.subr.mxu0 0.0
        %2448 = vmatpush1.xpose.msra.mxu0 0.0
        %2449 = vmatprep.subr.mxu0 0.0
        %2450 = vmatpush1.xpose.msra.mxu0 0.0
        %2451 = vmatprep.subr.mxu0 0.0
        %2452 = vmatpush1.xpose.msra.mxu0 0.0
        %2453 = vmatprep.subr.mxu0 0.0
        %2454 = vmatpush1.xpose.msra.mxu0 0.0
        %2455 = vmatprep.subr.mxu0 0.0
        %2456 = vmatpush1.xpose.msra.mxu0 0.0
        %2457 = vmatprep.subr.mxu0 0.0
        %2458 = vmatpush1.xpose.msra.mxu0 0.0
        %2459 = vmatprep.subr.mxu0 0.0
        %2460 = vmatpush1.xpose.msra.mxu0 0.0
        %2461 = vmatprep.subr.mxu0 0.0
        %2462 = vmatpush1.xpose.msra.mxu0 %v2429
        %2463 = vmatprep.subr.mxu0 0.0
        %2464 = vmatpush2.xpose.msra.mxu0 0.0
        %2465 = vmatprep.subr.mxu0 0.0
        %2466 = vmatpush2.xpose.msra.mxu0 0.0
        %2467 = vmatprep.subr.mxu0 0.0
        %2468 = vmatpush2.xpose.msra.mxu0 0.0
        %2469 = vmatprep.subr.mxu0 0.0
        %2470 = vmatpush2.xpose.msra.mxu0 0.0
        %2471 = vmatprep.subr.mxu0 0.0
        %2472 = vmatpush2.xpose.msra.mxu0 0.0
        %2473 = vmatprep.subr.mxu0 0.0
        %2474 = vmatpush2.xpose.msra.mxu0 0.0
        %2475 = vmatprep.subr.mxu0 0.0
        %2476 = vmatpush2.xpose.msra.mxu0 0.0
        %2477 = vmatprep.subr.mxu0 0.0
        %2478 = vmatpush2.xpose.msra.mxu0 0.0
        %2479 = vmatprep.subr.mxu0 0.0
        %2480 = vmatpush2.xpose.msra.mxu0 0.0
        %2481 = vmatprep.subr.mxu0 0.0
        %2482 = vmatpush2.xpose.msra.mxu0 0.0
        %2483 = vmatprep.subr.mxu0 0.0
        %2484 = vmatpush2.xpose.msra.mxu0 0.0
        %2485 = vmatprep.subr.mxu0 0.0
        %2486 = vmatpush2.xpose.msra.mxu0 0.0
        %2487 = vmatprep.subr.mxu0 0.0
        %2488 = vmatpush2.xpose.msra.mxu0 0.0
        %2489 = vmatprep.subr.mxu0 0.0
        %2490 = vmatpush2.xpose.msra.mxu0 0.0
        %2491 = vmatprep.subr.mxu0 0.0
        %2492 = vmatpush2.xpose.msra.mxu0 0.0
        %2493 = vmatprep.subr.mxu0 0.0
        %2494 = vmatpush2.xpose.msra.mxu0 0.0
        %2495 = vmatprep.mubr.f32.mxu0 0.0
        %2496 = vmatmul.mubr.f32.gmra.mxu0 %v2427
        %v2497 = vpop.f32.mrf.mxu0
        %v2498 = vadd.f32 0.0, %v2497
        %v2499 = vpop.f32.mrf.mxu0
        %2500 = vdwg.mxu0
        %v2501 = vmul.f32 %v2498, 0.35355338
        %v2502 = vsel %vm1148, %v2501, -inf
        %2503 = vmax.xlane.f32.xlu0 %v2502
        %v2504 = vpop.xlane.xlu0 %2503
        %v2505 = vsub.f32 %v2501, %v2504
        %v2506 = vmul.f32 %v2505, 1.442695
        %v2507 = vpow.pop %v2506
        %v2508 = vsel %vm1148, %v2507, 0.0
        %2509 = vadd.xlane.f32.xlu0 %v2508
        %v2510 = vpop.xlane.xlu0 %2509
        %v2511 = vrcp.pop %v2510
        %v2512 = vmul.f32 %v2507, %v2511
        %2513 = vrot.lane.b32.xlu0 %v2254, 56
        %v2514 = vpop.permute.xlu0 %2513
        %v2517 = vsel %vm1148, %v2512, 0
        %2519 = vmatprep.subr.mxu0 0.0
        %2520 = vmatpush1.msra.mxu0 0.0
        %2521 = vmatprep.subr.mxu0 0.0
        %2522 = vmatpush1.msra.mxu0 0.0
        %2523 = vmatprep.subr.mxu0 0.0
        %2524 = vmatpush1.msra.mxu0 0.0
        %2525 = vmatprep.subr.mxu0 0.0
        %2526 = vmatpush1.msra.mxu0 0.0
        %2527 = vmatprep.subr.mxu0 0.0
        %2528 = vmatpush1.msra.mxu0 0.0
        %2529 = vmatprep.subr.mxu0 0.0
        %2530 = vmatpush1.msra.mxu0 0.0
        %2531 = vmatprep.subr.mxu0 0.0
        %2532 = vmatpush1.msra.mxu0 0.0
        %2533 = vmatprep.subr.mxu0 0.0
        %2534 = vmatpush1.msra.mxu0 0.0
        %2535 = vmatprep.subr.mxu0 0.0
        %2536 = vmatpush1.msra.mxu0 0.0
        %2537 = vmatprep.subr.mxu0 0.0
        %2538 = vmatpush1.msra.mxu0 0.0
        %2539 = vmatprep.subr.mxu0 0.0
        %2540 = vmatpush1.msra.mxu0 0.0
        %2541 = vmatprep.subr.mxu0 0.0
        %2542 = vmatpush1.msra.mxu0 0.0
        %2543 = vmatprep.subr.mxu0 0.0
        %2544 = vmatpush1.msra.mxu0 0.0
        %2545 = vmatprep.subr.mxu0 0.0
        %2546 = vmatpush1.msra.mxu0 0.0
        %2547 = vmatprep.subr.mxu0 0.0
        %2548 = vmatpush1.msra.mxu0 0.0
        %2549 = vmatprep.subr.mxu0 0.0
        %2550 = vmatpush1.msra.mxu0 %v2514
        %2551 = vmatprep.subr.mxu0 0.0
        %2552 = vmatpush2.msra.mxu0 0.0
        %2553 = vmatprep.subr.mxu0 0.0
        %2554 = vmatpush2.msra.mxu0 0.0
        %2555 = vmatprep.subr.mxu0 0.0
        %2556 = vmatpush2.msra.mxu0 0.0
        %2557 = vmatprep.subr.mxu0 0.0
        %2558 = vmatpush2.msra.mxu0 0.0
        %2559 = vmatprep.subr.mxu0 0.0
        %2560 = vmatpush2.msra.mxu0 0.0
        %2561 = vmatprep.subr.mxu0 0.0
        %2562 = vmatpush2.msra.mxu0 0.0
        %2563 = vmatprep.subr.mxu0 0.0
        %2564 = vmatpush2.msra.mxu0 0.0
        %2565 = vmatprep.subr.mxu0 0.0
        %2566 = vmatpush2.msra.mxu0 0.0
        %2567 = vmatprep.subr.mxu0 0.0
        %2568 = vmatpush2.msra.mxu0 0.0
        %2569 = vmatprep.subr.mxu0 0.0
        %2570 = vmatpush2.msra.mxu0 0.0
        %2571 = vmatprep.subr.mxu0 0.0
        %2572 = vmatpush2.msra.mxu0 0.0
        %2573 = vmatprep.subr.mxu0 0.0
        %2574 = vmatpush2.msra.mxu0 0.0
        %2575 = vmatprep.subr.mxu0 0.0
        %2576 = vmatpush2.msra.mxu0 0.0
        %2577 = vmatprep.subr.mxu0 0.0
        %2578 = vmatpush2.msra.mxu0 0.0
        %2579 = vmatprep.subr.mxu0 0.0
        %2580 = vmatpush2.msra.mxu0 0.0
        %2581 = vmatprep.subr.mxu0 0.0
        %2582 = vmatpush2.msra.mxu0 0.0
        %2583 = vmatprep.mubr.f32.mxu0 0.0
        %2584 = vmatmul.mubr.f32.gmra.mxu0 %v2517
        %v2585 = vpop.f32.mrf.mxu0
        %v2586 = vadd.f32 0.0, %v2585
        %v2587 = vpop.f32.mrf.mxu0
        %2588 = vdwg.mxu0
        %2590 = vrot.lane.b32.xlu0 %v2586, 8
        %v2591 = vpop.permute.xlu0 %2590
        %2593 = vst.msk [vmem:[#allocation2] sm:$0xff] %vm1497, %v2591
        %2594 = vrot.lane.b32.xlu0 %v2254, 112
        %v2595 = vpop.permute.xlu0 %2594
        %2596 = vrot.lane.b32.xlu0 %v2254, 80
        %v2597 = vpop.permute.xlu0 %2596
        %v2598 = vsel %vm1148, %v2595, 0
        %v2600 = vsel %vm1148, %v2597, 0
        %2602 = vmatprep.subr.mxu0 0.0
        %2603 = vmatpush1.xpose.msra.mxu0 0.0
        %2604 = vmatprep.subr.mxu0 0.0
        %2605 = vmatpush1.xpose.msra.mxu0 0.0
        %2606 = vmatprep.subr.mxu0 0.0
        %2607 = vmatpush1.xpose.msra.mxu0 0.0
        %2608 = vmatprep.subr.mxu0 0.0
        %2609 = vmatpush1.xpose.msra.mxu0 0.0
        %2610 = vmatprep.subr.mxu0 0.0
        %2611 = vmatpush1.xpose.msra.mxu0 0.0
        %2612 = vmatprep.subr.mxu0 0.0
        %2613 = vmatpush1.xpose.msra.mxu0 0.0
        %2614 = vmatprep.subr.mxu0 0.0
        %2615 = vmatpush1.xpose.msra.mxu0 0.0
        %2616 = vmatprep.subr.mxu0 0.0
        %2617 = vmatpush1.xpose.msra.mxu0 0.0
        %2618 = vmatprep.subr.mxu0 0.0
        %2619 = vmatpush1.xpose.msra.mxu0 0.0
        %2620 = vmatprep.subr.mxu0 0.0
        %2621 = vmatpush1.xpose.msra.mxu0 0.0
        %2622 = vmatprep.subr.mxu0 0.0
        %2623 = vmatpush1.xpose.msra.mxu0 0.0
        %2624 = vmatprep.subr.mxu0 0.0
        %2625 = vmatpush1.xpose.msra.mxu0 0.0
        %2626 = vmatprep.subr.mxu0 0.0
        %2627 = vmatpush1.xpose.msra.mxu0 0.0
        %2628 = vmatprep.subr.mxu0 0.0
        %2629 = vmatpush1.xpose.msra.mxu0 0.0
        %2630 = vmatprep.subr.mxu0 0.0
        %2631 = vmatpush1.xpose.msra.mxu0 0.0
        %2632 = vmatprep.subr.mxu0 0.0
        %2633 = vmatpush1.xpose.msra.mxu0 %v2600
        %2634 = vmatprep.subr.mxu0 0.0
        %2635 = vmatpush2.xpose.msra.mxu0 0.0
        %2636 = vmatprep.subr.mxu0 0.0
        %2637 = vmatpush2.xpose.msra.mxu0 0.0
        %2638 = vmatprep.subr.mxu0 0.0
        %2639 = vmatpush2.xpose.msra.mxu0 0.0
        %2640 = vmatprep.subr.mxu0 0.0
        %2641 = vmatpush2.xpose.msra.mxu0 0.0
        %2642 = vmatprep.subr.mxu0 0.0
        %2643 = vmatpush2.xpose.msra.mxu0 0.0
        %2644 = vmatprep.subr.mxu0 0.0
        %2645 = vmatpush2.xpose.msra.mxu0 0.0
        %2646 = vmatprep.subr.mxu0 0.0
        %2647 = vmatpush2.xpose.msra.mxu0 0.0
        %2648 = vmatprep.subr.mxu0 0.0
        %2649 = vmatpush2.xpose.msra.mxu0 0.0
        %2650 = vmatprep.subr.mxu0 0.0
        %2651 = vmatpush2.xpose.msra.mxu0 0.0
        %2652 = vmatprep.subr.mxu0 0.0
        %2653 = vmatpush2.xpose.msra.mxu0 0.0
        %2654 = vmatprep.subr.mxu0 0.0
        %2655 = vmatpush2.xpose.msra.mxu0 0.0
        %2656 = vmatprep.subr.mxu0 0.0
        %2657 = vmatpush2.xpose.msra.mxu0 0.0
        %2658 = vmatprep.subr.mxu0 0.0
        %2659 = vmatpush2.xpose.msra.mxu0 0.0
        %2660 = vmatprep.subr.mxu0 0.0
        %2661 = vmatpush2.xpose.msra.mxu0 0.0
        %2662 = vmatprep.subr.mxu0 0.0
        %2663 = vmatpush2.xpose.msra.mxu0 0.0
        %2664 = vmatprep.subr.mxu0 0.0
        %2665 = vmatpush2.xpose.msra.mxu0 0.0
        %2666 = vmatprep.mubr.f32.mxu0 0.0
        %2667 = vmatmul.mubr.f32.gmra.mxu0 %v2598
        %v2668 = vpop.f32.mrf.mxu0
        %v2669 = vadd.f32 0.0, %v2668
        %v2670 = vpop.f32.mrf.mxu0
        %2671 = vdwg.mxu0
        %v2672 = vmul.f32 %v2669, 0.35355338
        %v2673 = vsel %vm1148, %v2672, -inf
        %2674 = vmax.xlane.f32.xlu0 %v2673
        %v2675 = vpop.xlane.xlu0 %2674
        %v2676 = vsub.f32 %v2672, %v2675
        %v2677 = vmul.f32 %v2676, 1.442695
        %v2678 = vpow.pop %v2677
        %v2679 = vsel %vm1148, %v2678, 0.0
        %2680 = vadd.xlane.f32.xlu0 %v2679
        %v2681 = vpop.xlane.xlu0 %2680
        %v2682 = vrcp.pop %v2681
        %v2683 = vmul.f32 %v2678, %v2682
        %2684 = vrot.lane.b32.xlu0 %v2254, 48
        %v2685 = vpop.permute.xlu0 %2684
        %v2688 = vsel %vm1148, %v2683, 0
        %2690 = vmatprep.subr.mxu0 0.0
        %2691 = vmatpush1.msra.mxu0 0.0
        %2692 = vmatprep.subr.mxu0 0.0
        %2693 = vmatpush1.msra.mxu0 0.0
        %2694 = vmatprep.subr.mxu0 0.0
        %2695 = vmatpush1.msra.mxu0 0.0
        %2696 = vmatprep.subr.mxu0 0.0
        %2697 = vmatpush1.msra.mxu0 0.0
        %2698 = vmatprep.subr.mxu0 0.0
        %2699 = vmatpush1.msra.mxu0 0.0
        %2700 = vmatprep.subr.mxu0 0.0
        %2701 = vmatpush1.msra.mxu0 0.0
        %2702 = vmatprep.subr.mxu0 0.0
        %2703 = vmatpush1.msra.mxu0 0.0
        %2704 = vmatprep.subr.mxu0 0.0
        %2705 = vmatpush1.msra.mxu0 0.0
        %2706 = vmatprep.subr.mxu0 0.0
        %2707 = vmatpush1.msra.mxu0 0.0
        %2708 = vmatprep.subr.mxu0 0.0
        %2709 = vmatpush1.msra.mxu0 0.0
        %2710 = vmatprep.subr.mxu0 0.0
        %2711 = vmatpush1.msra.mxu0 0.0
        %2712 = vmatprep.subr.mxu0 0.0
        %2713 = vmatpush1.msra.mxu0 0.0
        %2714 = vmatprep.subr.mxu0 0.0
        %2715 = vmatpush1.msra.mxu0 0.0
        %2716 = vmatprep.subr.mxu0 0.0
        %2717 = vmatpush1.msra.mxu0 0.0
        %2718 = vmatprep.subr.mxu0 0.0
        %2719 = vmatpush1.msra.mxu0 0.0
        %2720 = vmatprep.subr.mxu0 0.0
        %2721 = vmatpush1.msra.mxu0 %v2685
        %2722 = vmatprep.subr.mxu0 0.0
        %2723 = vmatpush2.msra.mxu0 0.0
        %2724 = vmatprep.subr.mxu0 0.0
        %2725 = vmatpush2.msra.mxu0 0.0
        %2726 = vmatprep.subr.mxu0 0.0
        %2727 = vmatpush2.msra.mxu0 0.0
        %2728 = vmatprep.subr.mxu0 0.0
        %2729 = vmatpush2.msra.mxu0 0.0
        %2730 = vmatprep.subr.mxu0 0.0
        %2731 = vmatpush2.msra.mxu0 0.0
        %2732 = vmatprep.subr.mxu0 0.0
        %2733 = vmatpush2.msra.mxu0 0.0
        %2734 = vmatprep.subr.mxu0 0.0
        %2735 = vmatpush2.msra.mxu0 0.0
        %2736 = vmatprep.subr.mxu0 0.0
        %2737 = vmatpush2.msra.mxu0 0.0
        %2738 = vmatprep.subr.mxu0 0.0
        %2739 = vmatpush2.msra.mxu0 0.0
        %2740 = vmatprep.subr.mxu0 0.0
        %2741 = vmatpush2.msra.mxu0 0.0
        %2742 = vmatprep.subr.mxu0 0.0
        %2743 = vmatpush2.msra.mxu0 0.0
        %2744 = vmatprep.subr.mxu0 0.0
        %2745 = vmatpush2.msra.mxu0 0.0
        %2746 = vmatprep.subr.mxu0 0.0
        %2747 = vmatpush2.msra.mxu0 0.0
        %2748 = vmatprep.subr.mxu0 0.0
        %2749 = vmatpush2.msra.mxu0 0.0
        %2750 = vmatprep.subr.mxu0 0.0
        %2751 = vmatpush2.msra.mxu0 0.0
        %2752 = vmatprep.subr.mxu0 0.0
        %2753 = vmatpush2.msra.mxu0 0.0
        %2754 = vmatprep.mubr.f32.mxu0 0.0
        %2755 = vmatmul.mubr.f32.gmra.mxu0 %v2688
        %v2756 = vpop.f32.mrf.mxu0
        %v2757 = vadd.f32 0.0, %v2756
        %v2758 = vpop.f32.mrf.mxu0
        %2759 = vdwg.mxu0
        %2761 = vrot.lane.b32.xlu0 %v2757, 16
        %v2762 = vpop.permute.xlu0 %2761
        %2764 = vst.msk [vmem:[#allocation2] sm:$0xff] %vm1676, %v2762
        %2765 = vrot.lane.b32.xlu0 %v2254, 104
        %v2766 = vpop.permute.xlu0 %2765
        %2767 = vrot.lane.b32.xlu0 %v2254, 72
        %v2768 = vpop.permute.xlu0 %2767
        %v2769 = vsel %vm1148, %v2766, 0
        %v2771 = vsel %vm1148, %v2768, 0
        %2773 = vmatprep.subr.mxu0 0.0
        %2774 = vmatpush1.xpose.msra.mxu0 0.0
        %2775 = vmatprep.subr.mxu0 0.0
        %2776 = vmatpush1.xpose.msra.mxu0 0.0
        %2777 = vmatprep.subr.mxu0 0.0
        %2778 = vmatpush1.xpose.msra.mxu0 0.0
        %2779 = vmatprep.subr.mxu0 0.0
        %2780 = vmatpush1.xpose.msra.mxu0 0.0
        %2781 = vmatprep.subr.mxu0 0.0
        %2782 = vmatpush1.xpose.msra.mxu0 0.0
        %2783 = vmatprep.subr.mxu0 0.0
        %2784 = vmatpush1.xpose.msra.mxu0 0.0
        %2785 = vmatprep.subr.mxu0 0.0
        %2786 = vmatpush1.xpose.msra.mxu0 0.0
        %2787 = vmatprep.subr.mxu0 0.0
        %2788 = vmatpush1.xpose.msra.mxu0 0.0
        %2789 = vmatprep.subr.mxu0 0.0
        %2790 = vmatpush1.xpose.msra.mxu0 0.0
        %2791 = vmatprep.subr.mxu0 0.0
        %2792 = vmatpush1.xpose.msra.mxu0 0.0
        %2793 = vmatprep.subr.mxu0 0.0
        %2794 = vmatpush1.xpose.msra.mxu0 0.0
        %2795 = vmatprep.subr.mxu0 0.0
        %2796 = vmatpush1.xpose.msra.mxu0 0.0
        %2797 = vmatprep.subr.mxu0 0.0
        %2798 = vmatpush1.xpose.msra.mxu0 0.0
        %2799 = vmatprep.subr.mxu0 0.0
        %2800 = vmatpush1.xpose.msra.mxu0 0.0
        %2801 = vmatprep.subr.mxu0 0.0
        %2802 = vmatpush1.xpose.msra.mxu0 0.0
        %2803 = vmatprep.subr.mxu0 0.0
        %2804 = vmatpush1.xpose.msra.mxu0 %v2771
        %2805 = vmatprep.subr.mxu0 0.0
        %2806 = vmatpush2.xpose.msra.mxu0 0.0
        %2807 = vmatprep.subr.mxu0 0.0
        %2808 = vmatpush2.xpose.msra.mxu0 0.0
        %2809 = vmatprep.subr.mxu0 0.0
        %2810 = vmatpush2.xpose.msra.mxu0 0.0
        %2811 = vmatprep.subr.mxu0 0.0
        %2812 = vmatpush2.xpose.msra.mxu0 0.0
        %2813 = vmatprep.subr.mxu0 0.0
        %2814 = vmatpush2.xpose.msra.mxu0 0.0
        %2815 = vmatprep.subr.mxu0 0.0
        %2816 = vmatpush2.xpose.msra.mxu0 0.0
        %2817 = vmatprep.subr.mxu0 0.0
        %2818 = vmatpush2.xpose.msra.mxu0 0.0
        %2819 = vmatprep.subr.mxu0 0.0
        %2820 = vmatpush2.xpose.msra.mxu0 0.0
        %2821 = vmatprep.subr.mxu0 0.0
        %2822 = vmatpush2.xpose.msra.mxu0 0.0
        %2823 = vmatprep.subr.mxu0 0.0
        %2824 = vmatpush2.xpose.msra.mxu0 0.0
        %2825 = vmatprep.subr.mxu0 0.0
        %2826 = vmatpush2.xpose.msra.mxu0 0.0
        %2827 = vmatprep.subr.mxu0 0.0
        %2828 = vmatpush2.xpose.msra.mxu0 0.0
        %2829 = vmatprep.subr.mxu0 0.0
        %2830 = vmatpush2.xpose.msra.mxu0 0.0
        %2831 = vmatprep.subr.mxu0 0.0
        %2832 = vmatpush2.xpose.msra.mxu0 0.0
        %2833 = vmatprep.subr.mxu0 0.0
        %2834 = vmatpush2.xpose.msra.mxu0 0.0
        %2835 = vmatprep.subr.mxu0 0.0
        %2836 = vmatpush2.xpose.msra.mxu0 0.0
        %2837 = vmatprep.mubr.f32.mxu0 0.0
        %2838 = vmatmul.mubr.f32.gmra.mxu0 %v2769
        %v2839 = vpop.f32.mrf.mxu0
        %v2840 = vadd.f32 0.0, %v2839
        %v2841 = vpop.f32.mrf.mxu0
        %2842 = vdwg.mxu0
        %v2843 = vmul.f32 %v2840, 0.35355338
        %v2844 = vsel %vm1148, %v2843, -inf
        %2845 = vmax.xlane.f32.xlu0 %v2844
        %v2846 = vpop.xlane.xlu0 %2845
        %v2847 = vsub.f32 %v2843, %v2846
        %v2848 = vmul.f32 %v2847, 1.442695
        %v2849 = vpow.pop %v2848
        %v2850 = vsel %vm1148, %v2849, 0.0
        %2851 = vadd.xlane.f32.xlu0 %v2850
        %v2852 = vpop.xlane.xlu0 %2851
        %v2853 = vrcp.pop %v2852
        %v2854 = vmul.f32 %v2849, %v2853
        %2855 = vrot.lane.b32.xlu0 %v2254, 40
        %v2856 = vpop.permute.xlu0 %2855
        %v2859 = vsel %vm1148, %v2854, 0
        %2861 = vmatprep.subr.mxu0 0.0
        %2862 = vmatpush1.msra.mxu0 0.0
        %2863 = vmatprep.subr.mxu0 0.0
        %2864 = vmatpush1.msra.mxu0 0.0
        %2865 = vmatprep.subr.mxu0 0.0
        %2866 = vmatpush1.msra.mxu0 0.0
        %2867 = vmatprep.subr.mxu0 0.0
        %2868 = vmatpush1.msra.mxu0 0.0
        %2869 = vmatprep.subr.mxu0 0.0
        %2870 = vmatpush1.msra.mxu0 0.0
        %2871 = vmatprep.subr.mxu0 0.0
        %2872 = vmatpush1.msra.mxu0 0.0
        %2873 = vmatprep.subr.mxu0 0.0
        %2874 = vmatpush1.msra.mxu0 0.0
        %2875 = vmatprep.subr.mxu0 0.0
        %2876 = vmatpush1.msra.mxu0 0.0
        %2877 = vmatprep.subr.mxu0 0.0
        %2878 = vmatpush1.msra.mxu0 0.0
        %2879 = vmatprep.subr.mxu0 0.0
        %2880 = vmatpush1.msra.mxu0 0.0
        %2881 = vmatprep.subr.mxu0 0.0
        %2882 = vmatpush1.msra.mxu0 0.0
        %2883 = vmatprep.subr.mxu0 0.0
        %2884 = vmatpush1.msra.mxu0 0.0
        %2885 = vmatprep.subr.mxu0 0.0
        %2886 = vmatpush1.msra.mxu0 0.0
        %2887 = vmatprep.subr.mxu0 0.0
        %2888 = vmatpush1.msra.mxu0 0.0
        %2889 = vmatprep.subr.mxu0 0.0
        %2890 = vmatpush1.msra.mxu0 0.0
        %2891 = vmatprep.subr.mxu0 0.0
        %2892 = vmatpush1.msra.mxu0 %v2856
        %2893 = vmatprep.subr.mxu0 0.0
        %2894 = vmatpush2.msra.mxu0 0.0
        %2895 = vmatprep.subr.mxu0 0.0
        %2896 = vmatpush2.msra.mxu0 0.0
        %2897 = vmatprep.subr.mxu0 0.0
        %2898 = vmatpush2.msra.mxu0 0.0
        %2899 = vmatprep.subr.mxu0 0.0
        %2900 = vmatpush2.msra.mxu0 0.0
        %2901 = vmatprep.subr.mxu0 0.0
        %2902 = vmatpush2.msra.mxu0 0.0
        %2903 = vmatprep.subr.mxu0 0.0
        %2904 = vmatpush2.msra.mxu0 0.0
        %2905 = vmatprep.subr.mxu0 0.0
        %2906 = vmatpush2.msra.mxu0 0.0
        %2907 = vmatprep.subr.mxu0 0.0
        %2908 = vmatpush2.msra.mxu0 0.0
        %2909 = vmatprep.subr.mxu0 0.0
        %2910 = vmatpush2.msra.mxu0 0.0
        %2911 = vmatprep.subr.mxu0 0.0
        %2912 = vmatpush2.msra.mxu0 0.0
        %2913 = vmatprep.subr.mxu0 0.0
        %2914 = vmatpush2.msra.mxu0 0.0
        %2915 = vmatprep.subr.mxu0 0.0
        %2916 = vmatpush2.msra.mxu0 0.0
        %2917 = vmatprep.subr.mxu0 0.0
        %2918 = vmatpush2.msra.mxu0 0.0
        %2919 = vmatprep.subr.mxu0 0.0
        %2920 = vmatpush2.msra.mxu0 0.0
        %2921 = vmatprep.subr.mxu0 0.0
        %2922 = vmatpush2.msra.mxu0 0.0
        %2923 = vmatprep.subr.mxu0 0.0
        %2924 = vmatpush2.msra.mxu0 0.0
        %2925 = vmatprep.mubr.f32.mxu0 0.0
        %2926 = vmatmul.mubr.f32.gmra.mxu0 %v2859
        %v2927 = vpop.f32.mrf.mxu0
        %v2928 = vadd.f32 0.0, %v2927
        %v2929 = vpop.f32.mrf.mxu0
        %2930 = vdwg.mxu0
        %2932 = vrot.lane.b32.xlu0 %v2928, 24
        %v2933 = vpop.permute.xlu0 %2932
        %2935 = vst.msk [vmem:[#allocation2] sm:$0xff] %vm1855, %v2933
        %v2936 = vld [vmem:[#allocation2] sm:$0xff]
        %v2937 = vld [vmem:[%s19] sm:$0xff]
        %v2938 = vld [vmem:[%s19 + $0x8] sm:$0xff]
        %v2939 = vld [vmem:[%s19 + $0x10] sm:$0xff]
        %v2940 = vld [vmem:[%s19 + $0x18] sm:$0xff]
        %v2941 = vld [vmem:[%s20] sm:$0x1]
        %v2942 = vlaneseq
        %v2943 = vshrl.u32 %v2942, 7
        %v2944 = vsub.s32 0, %v2943
        %v2945 = vrot.slane %v2941, %v2944
        %v2947 = vsel %vm1869, %v2936, 0
        %2949 = vmatprep.subr.mxu0 0.0
        %2950 = vmatpush1.msra.mxu0 0.0
        %2951 = vmatprep.subr.mxu0 0.0
        %2952 = vmatpush1.msra.mxu0 0.0
        %2953 = vmatprep.subr.mxu0 0.0
        %2954 = vmatpush1.msra.mxu0 0.0
        %2955 = vmatprep.subr.mxu0 0.0
        %2956 = vmatpush1.msra.mxu0 0.0
        %2957 = vmatprep.subr.mxu0 0.0
        %2958 = vmatpush1.msra.mxu0 0.0
        %2959 = vmatprep.subr.mxu0 0.0
        %2960 = vmatpush1.msra.mxu0 0.0
        %2961 = vmatprep.subr.mxu0 0.0
        %2962 = vmatpush1.msra.mxu0 0.0
        %2963 = vmatprep.subr.mxu0 0.0
        %2964 = vmatpush1.msra.mxu0 0.0
        %2965 = vmatprep.subr.mxu0 0.0
        %2966 = vmatpush1.msra.mxu0 0.0
        %2967 = vmatprep.subr.mxu0 0.0
        %2968 = vmatpush1.msra.mxu0 0.0
        %2969 = vmatprep.subr.mxu0 0.0
        %2970 = vmatpush1.msra.mxu0 0.0
        %2971 = vmatprep.subr.mxu0 0.0
        %2972 = vmatpush1.msra.mxu0 0.0
        %2973 = vmatprep.subr.mxu0 0.0
        %2974 = vmatpush1.msra.mxu0 %v2940
        %2975 = vmatprep.subr.mxu0 0.0
        %2976 = vmatpush1.msra.mxu0 %v2939
        %2977 = vmatprep.subr.mxu0 0.0
        %2978 = vmatpush1.msra.mxu0 %v2938
        %2979 = vmatprep.subr.mxu0 0.0
        %2980 = vmatpush1.msra.mxu0 %v2937
        %2981 = vmatprep.subr.mxu0 0.0
        %2982 = vmatpush2.msra.mxu0 0.0
        %2983 = vmatprep.subr.mxu0 0.0
        %2984 = vmatpush2.msra.mxu0 0.0
        %2985 = vmatprep.subr.mxu0 0.0
        %2986 = vmatpush2.msra.mxu0 0.0
        %2987 = vmatprep.subr.mxu0 0.0
        %2988 = vmatpush2.msra.mxu0 0.0
        %2989 = vmatprep.subr.mxu0 0.0
        %2990 = vmatpush2.msra.mxu0 0.0
        %2991 = vmatprep.subr.mxu0 0.0
        %2992 = vmatpush2.msra.mxu0 0.0
        %2993 = vmatprep.subr.mxu0 0.0
        %2994 = vmatpush2.msra.mxu0 0.0
        %2995 = vmatprep.subr.mxu0 0.0
        %2996 = vmatpush2.msra.mxu0 0.0
        %2997 = vmatprep.subr.mxu0 0.0
        %2998 = vmatpush2.msra.mxu0 0.0
        %2999 = vmatprep.subr.mxu0 0.0
        %3000 = vmatpush2.msra.mxu0 0.0
        %3001 = vmatprep.subr.mxu0 0.0
        %3002 = vmatpush2.msra.mxu0 0.0
        %3003 = vmatprep.subr.mxu0 0.0
        %3004 = vmatpush2.msra.mxu0 0.0
        %3005 = vmatprep.subr.mxu0 0.0
        %3006 = vmatpush2.msra.mxu0 0.0
        %3007 = vmatprep.subr.mxu0 0.0
        %3008 = vmatpush2.msra.mxu0 0.0
        %3009 = vmatprep.subr.mxu0 0.0
        %3010 = vmatpush2.msra.mxu0 0.0
        %3011 = vmatprep.subr.mxu0 0.0
        %3012 = vmatpush2.msra.mxu0 0.0
        %3013 = vmatprep.mubr.f32.mxu0 0.0
        %3014 = vmatmul.mubr.f32.gmra.mxu0 %v2947
        %v3015 = vpop.f32.mrf.mxu0
        %v3016 = vadd.f32 %v2945, %v3015
        %v3017 = vpop.f32.mrf.mxu0
        %3018 = vdwg.mxu0
        %v3019 = vadd.f32 %v2149, %v3016
        %v3020 = vld [vmem:[%s21] sm:$0x1]
        %v3021 = vld [vmem:[%s22] sm:$0x1]
        %v3022 = vsel %vm1869, %v3019, 0.0
        %3023 = vadd.xlane.f32.xlu0 %v3022
        %v3024 = vpop.xlane.xlu0 %3023
        %v3025 = vmul.f32 %v3024, %v1950
        %v3026 = vsub.f32 %v3019, %v3025
        %v3027 = vmul.f32 %v3026, %v3026
        %v3028 = vsel %vm1869, %v3027, 0.0
        %3029 = vadd.xlane.f32.xlu0 %v3028
        %v3030 = vpop.xlane.xlu0 %3029
        %v3031 = vmul.f32 %v3030, %v1950
        %v3032 = vadd.f32 %v3031, 1e-05
        %v3033 = vrsqrt.pop %v3032
        %v3034 = vmul.f32 %v3026, %v3033
        %v3035 = vlaneseq
        %v3036 = vshrl.u32 %v3035, 7
        %v3037 = vsub.s32 0, %v3036
        %v3038 = vrot.slane %v3020, %v3037
        %v3039 = vmul.f32 %v3034, %v3038
        %v3040 = vlaneseq
        %v3041 = vshrl.u32 %v3040, 7
        %v3042 = vsub.s32 0, %v3041
        %v3043 = vrot.slane %v3021, %v3042
        %v3044 = vadd.f32 %v3039, %v3043
        %v3045 = vld [vmem:[%s23] sm:$0xff]
        %v3046 = vld [vmem:[%s23 + $0x8] sm:$0xff]
        %v3047 = vld [vmem:[%s23 + $0x10] sm:$0xff]
        %v3048 = vld [vmem:[%s23 + $0x18] sm:$0xff]
        %v3049 = vld [vmem:[%s24] sm:$0x1]
        %v3050 = vlaneseq
        %v3051 = vshrl.u32 %v3050, 7
        %v3052 = vsub.s32 0, %v3051
        %v3053 = vrot.slane %v3049, %v3052
        %v3055 = vsel %vm1869, %v3044, 0
        %3057 = vmatprep.subr.mxu0 0.0
        %3058 = vmatpush1.msra.mxu0 0.0
        %3059 = vmatprep.subr.mxu0 0.0
        %3060 = vmatpush1.msra.mxu0 0.0
        %3061 = vmatprep.subr.mxu0 0.0
        %3062 = vmatpush1.msra.mxu0 0.0
        %3063 = vmatprep.subr.mxu0 0.0
        %3064 = vmatpush1.msra.mxu0 0.0
        %3065 = vmatprep.subr.mxu0 0.0
        %3066 = vmatpush1.msra.mxu0 0.0
        %3067 = vmatprep.subr.mxu0 0.0
        %3068 = vmatpush1.msra.mxu0 0.0
        %3069 = vmatprep.subr.mxu0 0.0
        %3070 = vmatpush1.msra.mxu0 0.0
        %3071 = vmatprep.subr.mxu0 0.0
        %3072 = vmatpush1.msra.mxu0 0.0
        %3073 = vmatprep.subr.mxu0 0.0
        %3074 = vmatpush1.msra.mxu0 0.0
        %3075 = vmatprep.subr.mxu0 0.0
        %3076 = vmatpush1.msra.mxu0 0.0
        %3077 = vmatprep.subr.mxu0 0.0
        %3078 = vmatpush1.msra.mxu0 0.0
        %3079 = vmatprep.subr.mxu0 0.0
        %3080 = vmatpush1.msra.mxu0 0.0
        %3081 = vmatprep.subr.mxu0 0.0
        %3082 = vmatpush1.msra.mxu0 %v3048
        %3083 = vmatprep.subr.mxu0 0.0
        %3084 = vmatpush1.msra.mxu0 %v3047
        %3085 = vmatprep.subr.mxu0 0.0
        %3086 = vmatpush1.msra.mxu0 %v3046
        %3087 = vmatprep.subr.mxu0 0.0
        %3088 = vmatpush1.msra.mxu0 %v3045
        %3089 = vmatprep.subr.mxu0 0.0
        %3090 = vmatpush2.msra.mxu0 0.0
        %3091 = vmatprep.subr.mxu0 0.0
        %3092 = vmatpush2.msra.mxu0 0.0
        %3093 = vmatprep.subr.mxu0 0.0
        %3094 = vmatpush2.msra.mxu0 0.0
        %3095 = vmatprep.subr.mxu0 0.0
        %3096 = vmatpush2.msra.mxu0 0.0
        %3097 = vmatprep.subr.mxu0 0.0
        %3098 = vmatpush2.msra.mxu0 0.0
        %3099 = vmatprep.subr.mxu0 0.0
        %3100 = vmatpush2.msra.mxu0 0.0
        %3101 = vmatprep.subr.mxu0 0.0
        %3102 = vmatpush2.msra.mxu0 0.0
        %3103 = vmatprep.subr.mxu0 0.0
        %3104 = vmatpush2.msra.mxu0 0.0
        %3105 = vmatprep.subr.mxu0 0.0
        %3106 = vmatpush2.msra.mxu0 0.0
        %3107 = vmatprep.subr.mxu0 0.0
        %3108 = vmatpush2.msra.mxu0 0.0
        %3109 = vmatprep.subr.mxu0 0.0
        %3110 = vmatpush2.msra.mxu0 0.0
        %3111 = vmatprep.subr.mxu0 0.0
        %3112 = vmatpush2.msra.mxu0 0.0
        %3113 = vmatprep.subr.mxu0 0.0
        %3114 = vmatpush2.msra.mxu0 0.0
        %3115 = vmatprep.subr.mxu0 0.0
        %3116 = vmatpush2.msra.mxu0 0.0
        %3117 = vmatprep.subr.mxu0 0.0
        %3118 = vmatpush2.msra.mxu0 0.0
        %3119 = vmatprep.subr.mxu0 0.0
        %3120 = vmatpush2.msra.mxu0 0.0
        %3121 = vmatprep.mubr.f32.mxu0 0.0
        %3122 = vmatmul.mubr.f32.gmra.mxu0 %v3055
        %v3123 = vpop.f32.mrf.mxu0
        %v3124 = vadd.f32 %v3053, %v3123
        %v3125 = vpop.f32.mrf.mxu0
        %3126 = vdwg.mxu0
        %v3127 = vmax.f32 %v3124, 0.0
        %v3128 = vld [vmem:[%s25] sm:$0xff]
        %v3129 = vld [vmem:[%s25 + $0x8] sm:$0xff]
        %v3130 = vld [vmem:[%s25 + $0x10] sm:$0xff]
        %v3131 = vld [vmem:[%s25 + $0x18] sm:$0xff]
        %v3132 = vld [vmem:[%s25 + $0x20] sm:$0xff]
        %v3133 = vld [vmem:[%s25 + $0x28] sm:$0xff]
        %v3134 = vld [vmem:[%s25 + $0x30] sm:$0xff]
        %v3135 = vld [vmem:[%s25 + $0x38] sm:$0xff]
        %v3136 = vld [vmem:[%s26] sm:$0x1]
        %v3137 = vlaneseq
        %v3138 = vshrl.u32 %v3137, 7
        %v3139 = vsub.s32 0, %v3138
        %v3140 = vrot.slane %v3136, %v3139
        %v3142 = vsel %vm2075, %v3127, 0
        %3144 = vmatprep.subr.mxu0 0.0
        %3145 = vmatpush1.msra.mxu0 0.0
        %3146 = vmatprep.subr.mxu0 0.0
        %3147 = vmatpush1.msra.mxu0 0.0
        %3148 = vmatprep.subr.mxu0 0.0
        %3149 = vmatpush1.msra.mxu0 0.0
        %3150 = vmatprep.subr.mxu0 0.0
        %3151 = vmatpush1.msra.mxu0 0.0
        %3152 = vmatprep.subr.mxu0 0.0
        %3153 = vmatpush1.msra.mxu0 0.0
        %3154 = vmatprep.subr.mxu0 0.0
        %3155 = vmatpush1.msra.mxu0 0.0
        %3156 = vmatprep.subr.mxu0 0.0
        %3157 = vmatpush1.msra.mxu0 0.0
        %3158 = vmatprep.subr.mxu0 0.0
        %3159 = vmatpush1.msra.mxu0 0.0
        %3160 = vmatprep.subr.mxu0 0.0
        %3161 = vmatpush1.msra.mxu0 %v3135
        %3162 = vmatprep.subr.mxu0 0.0
        %3163 = vmatpush1.msra.mxu0 %v3134
        %3164 = vmatprep.subr.mxu0 0.0
        %3165 = vmatpush1.msra.mxu0 %v3133
        %3166 = vmatprep.subr.mxu0 0.0
        %3167 = vmatpush1.msra.mxu0 %v3132
        %3168 = vmatprep.subr.mxu0 0.0
        %3169 = vmatpush1.msra.mxu0 %v3131
        %3170 = vmatprep.subr.mxu0 0.0
        %3171 = vmatpush1.msra.mxu0 %v3130
        %3172 = vmatprep.subr.mxu0 0.0
        %3173 = vmatpush1.msra.mxu0 %v3129
        %3174 = vmatprep.subr.mxu0 0.0
        %3175 = vmatpush1.msra.mxu0 %v3128
        %3176 = vmatprep.subr.mxu0 0.0
        %3177 = vmatpush2.msra.mxu0 0.0
        %3178 = vmatprep.subr.mxu0 0.0
        %3179 = vmatpush2.msra.mxu0 0.0
        %3180 = vmatprep.subr.mxu0 0.0
        %3181 = vmatpush2.msra.mxu0 0.0
        %3182 = vmatprep.subr.mxu0 0.0
        %3183 = vmatpush2.msra.mxu0 0.0
        %3184 = vmatprep.subr.mxu0 0.0
        %3185 = vmatpush2.msra.mxu0 0.0
        %3186 = vmatprep.subr.mxu0 0.0
        %3187 = vmatpush2.msra.mxu0 0.0
        %3188 = vmatprep.subr.mxu0 0.0
        %3189 = vmatpush2.msra.mxu0 0.0
        %3190 = vmatprep.subr.mxu0 0.0
        %3191 = vmatpush2.msra.mxu0 0.0
        %3192 = vmatprep.subr.mxu0 0.0
        %3193 = vmatpush2.msra.mxu0 0.0
        %3194 = vmatprep.subr.mxu0 0.0
        %3195 = vmatpush2.msra.mxu0 0.0
        %3196 = vmatprep.subr.mxu0 0.0
        %3197 = vmatpush2.msra.mxu0 0.0
        %3198 = vmatprep.subr.mxu0 0.0
        %3199 = vmatpush2.msra.mxu0 0.0
        %3200 = vmatprep.subr.mxu0 0.0
        %3201 = vmatpush2.msra.mxu0 0.0
        %3202 = vmatprep.subr.mxu0 0.0
        %3203 = vmatpush2.msra.mxu0 0.0
        %3204 = vmatprep.subr.mxu0 0.0
        %3205 = vmatpush2.msra.mxu0 0.0
        %3206 = vmatprep.subr.mxu0 0.0
        %3207 = vmatpush2.msra.mxu0 0.0
        %3208 = vmatprep.mubr.f32.mxu0 0.0
        %3209 = vmatmul.mubr.f32.gmra.mxu0 %v3142
        %v3210 = vpop.f32.mrf.mxu0
        %v3211 = vadd.f32 %v3140, %v3210
        %v3212 = vpop.f32.mrf.mxu0
        %3213 = vdwg.mxu0
        %v3214 = vadd.f32 %v3019, %v3211
        %v3215 = vld [vmem:[#allocation23 + $0x1] sm:$0x1]
        %v3216 = vld [vmem:[#allocation24 + $0x1] sm:$0x1]
        %v3217 = vsel %vm1869, %v3214, 0.0
        %3218 = vadd.xlane.f32.xlu0 %v3217
        %v3219 = vpop.xlane.xlu0 %3218
        %v3220 = vmul.f32 %v3219, %v1950
        %v3221 = vsub.f32 %v3214, %v3220
        %v3222 = vmul.f32 %v3221, %v3221
        %v3223 = vsel %vm1869, %v3222, 0.0
        %3224 = vadd.xlane.f32.xlu0 %v3223
        %v3225 = vpop.xlane.xlu0 %3224
        %v3226 = vmul.f32 %v3225, %v1950
        %v3227 = vadd.f32 %v3226, 1e-05
        %v3228 = vrsqrt.pop %v3227
        %v3229 = vmul.f32 %v3221, %v3228
        %v3230 = vlaneseq
        %v3231 = vshrl.u32 %v3230, 7
        %v3232 = vsub.s32 0, %v3231
        %v3233 = vrot.slane %v3215, %v3232
        %v3234 = vmul.f32 %v3229, %v3233
        %v3235 = vlaneseq
        %v3236 = vshrl.u32 %v3235, 7
        %v3237 = vsub.s32 0, %v3236
        %v3238 = vrot.slane %v3216, %v3237
        %v3239 = vadd.f32 %v3234, %v3238
        %s3240 = scalar_lea.vmem %s17, 32
        %v3241 = vld [vmem:[%s3240] sm:$0xff]
        %v3242 = vld [vmem:[%s3240 + $0x8] sm:$0xff]
        %v3243 = vld [vmem:[%s3240 + $0x10] sm:$0xff]
        %v3244 = vld [vmem:[%s3240 + $0x18] sm:$0xff]
        %v3245 = vld [vmem:[#allocation26 + $0x1] sm:$0x1]
        %v3246 = vlaneseq
        %v3247 = vshrl.u32 %v3246, 7
        %v3248 = vsub.s32 0, %v3247
        %v3249 = vrot.slane %v3245, %v3248
        %v3251 = vsel %vm1869, %v3239, 0
        %3253 = vmatprep.subr.mxu0 0.0
        %3254 = vmatpush1.msra.mxu0 0.0
        %3255 = vmatprep.subr.mxu0 0.0
        %3256 = vmatpush1.msra.mxu0 0.0
        %3257 = vmatprep.subr.mxu0 0.0
        %3258 = vmatpush1.msra.mxu0 0.0
        %3259 = vmatprep.subr.mxu0 0.0
        %3260 = vmatpush1.msra.mxu0 0.0
        %3261 = vmatprep.subr.mxu0 0.0
        %3262 = vmatpush1.msra.mxu0 0.0
        %3263 = vmatprep.subr.mxu0 0.0
        %3264 = vmatpush1.msra.mxu0 0.0
        %3265 = vmatprep.subr.mxu0 0.0
        %3266 = vmatpush1.msra.mxu0 0.0
        %3267 = vmatprep.subr.mxu0 0.0
        %3268 = vmatpush1.msra.mxu0 0.0
        %3269 = vmatprep.subr.mxu0 0.0
        %3270 = vmatpush1.msra.mxu0 0.0
        %3271 = vmatprep.subr.mxu0 0.0
        %3272 = vmatpush1.msra.mxu0 0.0
        %3273 = vmatprep.subr.mxu0 0.0
        %3274 = vmatpush1.msra.mxu0 0.0
        %3275 = vmatprep.subr.mxu0 0.0
        %3276 = vmatpush1.msra.mxu0 0.0
        %3277 = vmatprep.subr.mxu0 0.0
        %3278 = vmatpush1.msra.mxu0 %v3244
        %3279 = vmatprep.subr.mxu0 0.0
        %3280 = vmatpush1.msra.mxu0 %v3243
        %3281 = vmatprep.subr.mxu0 0.0
        %3282 = vmatpush1.msra.mxu0 %v3242
        %3283 = vmatprep.subr.mxu0 0.0
        %3284 = vmatpush1.msra.mxu0 %v3241
        %3285 = vmatprep.subr.mxu0 0.0
        %3286 = vmatpush2.msra.mxu0 0.0
        %3287 = vmatprep.subr.mxu0 0.0
        %3288 = vmatpush2.msra.mxu0 0.0
        %3289 = vmatprep.subr.mxu0 0.0
        %3290 = vmatpush2.msra.mxu0 0.0
        %3291 = vmatprep.subr.mxu0 0.0
        %3292 = vmatpush2.msra.mxu0 0.0
        %3293 = vmatprep.subr.mxu0 0.0
        %3294 = vmatpush2.msra.mxu0 0.0
        %3295 = vmatprep.subr.mxu0 0.0
        %3296 = vmatpush2.msra.mxu0 0.0
        %3297 = vmatprep.subr.mxu0 0.0
        %3298 = vmatpush2.msra.mxu0 0.0
        %3299 = vmatprep.subr.mxu0 0.0
        %3300 = vmatpush2.msra.mxu0 0.0
        %3301 = vmatprep.subr.mxu0 0.0
        %3302 = vmatpush2.msra.mxu0 0.0
        %3303 = vmatprep.subr.mxu0 0.0
        %3304 = vmatpush2.msra.mxu0 0.0
        %3305 = vmatprep.subr.mxu0 0.0
        %3306 = vmatpush2.msra.mxu0 0.0
        %3307 = vmatprep.subr.mxu0 0.0
        %3308 = vmatpush2.msra.mxu0 0.0
        %3309 = vmatprep.subr.mxu0 0.0
        %3310 = vmatpush2.msra.mxu0 0.0
        %3311 = vmatprep.subr.mxu0 0.0
        %3312 = vmatpush2.msra.mxu0 0.0
        %3313 = vmatprep.subr.mxu0 0.0
        %3314 = vmatpush2.msra.mxu0 0.0
        %3315 = vmatprep.subr.mxu0 0.0
        %3316 = vmatpush2.msra.mxu0 0.0
        %3317 = vmatprep.mubr.f32.mxu0 0.0
        %3318 = vmatmul.mubr.f32.gmra.mxu0 %v3251
        %v3319 = vpop.f32.mrf.mxu0
        %v3320 = vadd.f32 %v3249, %v3319
        %v3321 = vpop.f32.mrf.mxu0
        %3322 = vdwg.mxu0
        %3324 = vrot.lane.b32.xlu0 %v3320, 96
        %v3325 = vpop.permute.xlu0 %3324
        %v3326 = vsel %vm1148, %v3320, 0
        %v3328 = vsel %vm1148, %v3325, 0
        %3330 = vmatprep.subr.mxu0 0.0
        %3331 = vmatpush1.xpose.msra.mxu0 0.0
        %3332 = vmatprep.subr.mxu0 0.0
        %3333 = vmatpush1.xpose.msra.mxu0 0.0
        %3334 = vmatprep.subr.mxu0 0.0
        %3335 = vmatpush1.xpose.msra.mxu0 0.0
        %3336 = vmatprep.subr.mxu0 0.0
        %3337 = vmatpush1.xpose.msra.mxu0 0.0
        %3338 = vmatprep.subr.mxu0 0.0
        %3339 = vmatpush1.xpose.msra.mxu0 0.0
        %3340 = vmatprep.subr.mxu0 0.0
        %3341 = vmatpush1.xpose.msra.mxu0 0.0
        %3342 = vmatprep.subr.mxu0 0.0
        %3343 = vmatpush1.xpose.msra.mxu0 0.0
        %3344 = vmatprep.subr.mxu0 0.0
        %3345 = vmatpush1.xpose.msra.mxu0 0.0
        %3346 = vmatprep.subr.mxu0 0.0
        %3347 = vmatpush1.xpose.msra.mxu0 0.0
        %3348 = vmatprep.subr.mxu0 0.0
        %3349 = vmatpush1.xpose.msra.mxu0 0.0
        %3350 = vmatprep.subr.mxu0 0.0
        %3351 = vmatpush1.xpose.msra.mxu0 0.0
        %3352 = vmatprep.subr.mxu0 0.0
        %3353 = vmatpush1.xpose.msra.mxu0 0.0
        %3354 = vmatprep.subr.mxu0 0.0
        %3355 = vmatpush1.xpose.msra.mxu0 0.0
        %3356 = vmatprep.subr.mxu0 0.0
        %3357 = vmatpush1.xpose.msra.mxu0 0.0
        %3358 = vmatprep.subr.mxu0 0.0
        %3359 = vmatpush1.xpose.msra.mxu0 0.0
        %3360 = vmatprep.subr.mxu0 0.0
        %3361 = vmatpush1.xpose.msra.mxu0 %v3328
        %3362 = vmatprep.subr.mxu0 0.0
        %3363 = vmatpush2.xpose.msra.mxu0 0.0
        %3364 = vmatprep.subr.mxu0 0.0
        %3365 = vmatpush2.xpose.msra.mxu0 0.0
        %3366 = vmatprep.subr.mxu0 0.0
        %3367 = vmatpush2.xpose.msra.mxu0 0.0
        %3368 = vmatprep.subr.mxu0 0.0
        %3369 = vmatpush2.xpose.msra.mxu0 0.0
        %3370 = vmatprep.subr.mxu0 0.0
        %3371 = vmatpush2.xpose.msra.mxu0 0.0
        %3372 = vmatprep.subr.mxu0 0.0
        %3373 = vmatpush2.xpose.msra.mxu0 0.0
        %3374 = vmatprep.subr.mxu0 0.0
        %3375 = vmatpush2.xpose.msra.mxu0 0.0
        %3376 = vmatprep.subr.mxu0 0.0
        %3377 = vmatpush2.xpose.msra.mxu0 0.0
        %3378 = vmatprep.subr.mxu0 0.0
        %3379 = vmatpush2.xpose.msra.mxu0 0.0
        %3380 = vmatprep.subr.mxu0 0.0
        %3381 = vmatpush2.xpose.msra.mxu0 0.0
        %3382 = vmatprep.subr.mxu0 0.0
        %3383 = vmatpush2.xpose.msra.mxu0 0.0
        %3384 = vmatprep.subr.mxu0 0.0
        %3385 = vmatpush2.xpose.msra.mxu0 0.0
        %3386 = vmatprep.subr.mxu0 0.0
        %3387 = vmatpush2.xpose.msra.mxu0 0.0
        %3388 = vmatprep.subr.mxu0 0.0
        %3389 = vmatpush2.xpose.msra.mxu0 0.0
        %3390 = vmatprep.subr.mxu0 0.0
        %3391 = vmatpush2.xpose.msra.mxu0 0.0
        %3392 = vmatprep.subr.mxu0 0.0
        %3393 = vmatpush2.xpose.msra.mxu0 0.0
        %3394 = vmatprep.mubr.f32.mxu0 0.0
        %3395 = vmatmul.mubr.f32.gmra.mxu0 %v3326
        %v3396 = vpop.f32.mrf.mxu0
        %v3397 = vadd.f32 0.0, %v3396
        %v3398 = vpop.f32.mrf.mxu0
        %3399 = vdwg.mxu0
        %v3400 = vmul.f32 %v3397, 0.35355338
        %v3401 = vsel %vm1148, %v3400, -inf
        %3402 = vmax.xlane.f32.xlu0 %v3401
        %v3403 = vpop.xlane.xlu0 %3402
        %v3404 = vsub.f32 %v3400, %v3403
        %v3405 = vmul.f32 %v3404, 1.442695
        %v3406 = vpow.pop %v3405
        %v3407 = vsel %vm1148, %v3406, 0.0
        %3408 = vadd.xlane.f32.xlu0 %v3407
        %v3409 = vpop.xlane.xlu0 %3408
        %v3410 = vrcp.pop %v3409
        %v3411 = vmul.f32 %v3406, %v3410
        %3412 = vrot.lane.b32.xlu0 %v3320, 64
        %v3413 = vpop.permute.xlu0 %3412
        %v3416 = vsel %vm1148, %v3411, 0
        %3418 = vmatprep.subr.mxu0 0.0
        %3419 = vmatpush1.msra.mxu0 0.0
        %3420 = vmatprep.subr.mxu0 0.0
        %3421 = vmatpush1.msra.mxu0 0.0
        %3422 = vmatprep.subr.mxu0 0.0
        %3423 = vmatpush1.msra.mxu0 0.0
        %3424 = vmatprep.subr.mxu0 0.0
        %3425 = vmatpush1.msra.mxu0 0.0
        %3426 = vmatprep.subr.mxu0 0.0
        %3427 = vmatpush1.msra.mxu0 0.0
        %3428 = vmatprep.subr.mxu0 0.0
        %3429 = vmatpush1.msra.mxu0 0.0
        %3430 = vmatprep.subr.mxu0 0.0
        %3431 = vmatpush1.msra.mxu0 0.0
        %3432 = vmatprep.subr.mxu0 0.0
        %3433 = vmatpush1.msra.mxu0 0.0
        %3434 = vmatprep.subr.mxu0 0.0
        %3435 = vmatpush1.msra.mxu0 0.0
        %3436 = vmatprep.subr.mxu0 0.0
        %3437 = vmatpush1.msra.mxu0 0.0
        %3438 = vmatprep.subr.mxu0 0.0
        %3439 = vmatpush1.msra.mxu0 0.0
        %3440 = vmatprep.subr.mxu0 0.0
        %3441 = vmatpush1.msra.mxu0 0.0
        %3442 = vmatprep.subr.mxu0 0.0
        %3443 = vmatpush1.msra.mxu0 0.0
        %3444 = vmatprep.subr.mxu0 0.0
        %3445 = vmatpush1.msra.mxu0 0.0
        %3446 = vmatprep.subr.mxu0 0.0
        %3447 = vmatpush1.msra.mxu0 0.0
        %3448 = vmatprep.subr.mxu0 0.0
        %3449 = vmatpush1.msra.mxu0 %v3413
        %3450 = vmatprep.subr.mxu0 0.0
        %3451 = vmatpush2.msra.mxu0 0.0
        %3452 = vmatprep.subr.mxu0 0.0
        %3453 = vmatpush2.msra.mxu0 0.0
        %3454 = vmatprep.subr.mxu0 0.0
        %3455 = vmatpush2.msra.mxu0 0.0
        %3456 = vmatprep.subr.mxu0 0.0
        %3457 = vmatpush2.msra.mxu0 0.0
        %3458 = vmatprep.subr.mxu0 0.0
        %3459 = vmatpush2.msra.mxu0 0.0
        %3460 = vmatprep.subr.mxu0 0.0
        %3461 = vmatpush2.msra.mxu0 0.0
        %3462 = vmatprep.subr.mxu0 0.0
        %3463 = vmatpush2.msra.mxu0 0.0
        %3464 = vmatprep.subr.mxu0 0.0
        %3465 = vmatpush2.msra.mxu0 0.0
        %3466 = vmatprep.subr.mxu0 0.0
        %3467 = vmatpush2.msra.mxu0 0.0
        %3468 = vmatprep.subr.mxu0 0.0
        %3469 = vmatpush2.msra.mxu0 0.0
        %3470 = vmatprep.subr.mxu0 0.0
        %3471 = vmatpush2.msra.mxu0 0.0
        %3472 = vmatprep.subr.mxu0 0.0
        %3473 = vmatpush2.msra.mxu0 0.0
        %3474 = vmatprep.subr.mxu0 0.0
        %3475 = vmatpush2.msra.mxu0 0.0
        %3476 = vmatprep.subr.mxu0 0.0
        %3477 = vmatpush2.msra.mxu0 0.0
        %3478 = vmatprep.subr.mxu0 0.0
        %3479 = vmatpush2.msra.mxu0 0.0
        %3480 = vmatprep.subr.mxu0 0.0
        %3481 = vmatpush2.msra.mxu0 0.0
        %3482 = vmatprep.mubr.f32.mxu0 0.0
        %3483 = vmatmul.mubr.f32.gmra.mxu0 %v3416
        %v3484 = vpop.f32.mrf.mxu0
        %v3485 = vadd.f32 0.0, %v3484
        %v3486 = vpop.f32.mrf.mxu0
        %3487 = vdwg.mxu0
        %3488 = vst.msk [vmem:[#allocation2] sm:$0xff] %vm1148, %v3485
        %3489 = vrot.lane.b32.xlu0 %v3320, 120
        %v3490 = vpop.permute.xlu0 %3489
        %3491 = vrot.lane.b32.xlu0 %v3320, 88
        %v3492 = vpop.permute.xlu0 %3491
        %v3493 = vsel %vm1148, %v3490, 0
        %v3495 = vsel %vm1148, %v3492, 0
        %3497 = vmatprep.subr.mxu0 0.0
        %3498 = vmatpush1.xpose.msra.mxu0 0.0
        %3499 = vmatprep.subr.mxu0 0.0
        %3500 = vmatpush1.xpose.msra.mxu0 0.0
        %3501 = vmatprep.subr.mxu0 0.0
        %3502 = vmatpush1.xpose.msra.mxu0 0.0
        %3503 = vmatprep.subr.mxu0 0.0
        %3504 = vmatpush1.xpose.msra.mxu0 0.0
        %3505 = vmatprep.subr.mxu0 0.0
        %3506 = vmatpush1.xpose.msra.mxu0 0.0
        %3507 = vmatprep.subr.mxu0 0.0
        %3508 = vmatpush1.xpose.msra.mxu0 0.0
        %3509 = vmatprep.subr.mxu0 0.0
        %3510 = vmatpush1.xpose.msra.mxu0 0.0
        %3511 = vmatprep.subr.mxu0 0.0
        %3512 = vmatpush1.xpose.msra.mxu0 0.0
        %3513 = vmatprep.subr.mxu0 0.0
        %3514 = vmatpush1.xpose.msra.mxu0 0.0
        %3515 = vmatprep.subr.mxu0 0.0
        %3516 = vmatpush1.xpose.msra.mxu0 0.0
        %3517 = vmatprep.subr.mxu0 0.0
        %3518 = vmatpush1.xpose.msra.mxu0 0.0
        %3519 = vmatprep.subr.mxu0 0.0
        %3520 = vmatpush1.xpose.msra.mxu0 0.0
        %3521 = vmatprep.subr.mxu0 0.0
        %3522 = vmatpush1.xpose.msra.mxu0 0.0
        %3523 = vmatprep.subr.mxu0 0.0
        %3524 = vmatpush1.xpose.msra.mxu0 0.0
        %3525 = vmatprep.subr.mxu0 0.0
        %3526 = vmatpush1.xpose.msra.mxu0 0.0
        %3527 = vmatprep.subr.mxu0 0.0
        %3528 = vmatpush1.xpose.msra.mxu0 %v3495
        %3529 = vmatprep.subr.mxu0 0.0
        %3530 = vmatpush2.xpose.msra.mxu0 0.0
        %3531 = vmatprep.subr.mxu0 0.0
        %3532 = vmatpush2.xpose.msra.mxu0 0.0
        %3533 = vmatprep.subr.mxu0 0.0
        %3534 = vmatpush2.xpose.msra.mxu0 0.0
        %3535 = vmatprep.subr.mxu0 0.0
        %3536 = vmatpush2.xpose.msra.mxu0 0.0
        %3537 = vmatprep.subr.mxu0 0.0
        %3538 = vmatpush2.xpose.msra.mxu0 0.0
        %3539 = vmatprep.subr.mxu0 0.0
        %3540 = vmatpush2.xpose.msra.mxu0 0.0
        %3541 = vmatprep.subr.mxu0 0.0
        %3542 = vmatpush2.xpose.msra.mxu0 0.0
        %3543 = vmatprep.subr.mxu0 0.0
        %3544 = vmatpush2.xpose.msra.mxu0 0.0
        %3545 = vmatprep.subr.mxu0 0.0
        %3546 = vmatpush2.xpose.msra.mxu0 0.0
        %3547 = vmatprep.subr.mxu0 0.0
        %3548 = vmatpush2.xpose.msra.mxu0 0.0
        %3549 = vmatprep.subr.mxu0 0.0
        %3550 = vmatpush2.xpose.msra.mxu0 0.0
        %3551 = vmatprep.subr.mxu0 0.0
        %3552 = vmatpush2.xpose.msra.mxu0 0.0
        %3553 = vmatprep.subr.mxu0 0.0
        %3554 = vmatpush2.xpose.msra.mxu0 0.0
        %3555 = vmatprep.subr.mxu0 0.0
        %3556 = vmatpush2.xpose.msra.mxu0 0.0
        %3557 = vmatprep.subr.mxu0 0.0
        %3558 = vmatpush2.xpose.msra.mxu0 0.0
        %3559 = vmatprep.subr.mxu0 0.0
        %3560 = vmatpush2.xpose.msra.mxu0 0.0
        %3561 = vmatprep.mubr.f32.mxu0 0.0
        %3562 = vmatmul.mubr.f32.gmra.mxu0 %v3493
        %v3563 = vpop.f32.mrf.mxu0
        %v3564 = vadd.f32 0.0, %v3563
        %v3565 = vpop.f32.mrf.mxu0
        %3566 = vdwg.mxu0
        %v3567 = vmul.f32 %v3564, 0.35355338
        %v3568 = vsel %vm1148, %v3567, -inf
        %3569 = vmax.xlane.f32.xlu0 %v3568
        %v3570 = vpop.xlane.xlu0 %3569
        %v3571 = vsub.f32 %v3567, %v3570
        %v3572 = vmul.f32 %v3571, 1.442695
        %v3573 = vpow.pop %v3572
        %v3574 = vsel %vm1148, %v3573, 0.0
        %3575 = vadd.xlane.f32.xlu0 %v3574
        %v3576 = vpop.xlane.xlu0 %3575
        %v3577 = vrcp.pop %v3576
        %v3578 = vmul.f32 %v3573, %v3577
        %3579 = vrot.lane.b32.xlu0 %v3320, 56
        %v3580 = vpop.permute.xlu0 %3579
        %v3583 = vsel %vm1148, %v3578, 0
        %3585 = vmatprep.subr.mxu0 0.0
        %3586 = vmatpush1.msra.mxu0 0.0
        %3587 = vmatprep.subr.mxu0 0.0
        %3588 = vmatpush1.msra.mxu0 0.0
        %3589 = vmatprep.subr.mxu0 0.0
        %3590 = vmatpush1.msra.mxu0 0.0
        %3591 = vmatprep.subr.mxu0 0.0
        %3592 = vmatpush1.msra.mxu0 0.0
        %3593 = vmatprep.subr.mxu0 0.0
        %3594 = vmatpush1.msra.mxu0 0.0
        %3595 = vmatprep.subr.mxu0 0.0
        %3596 = vmatpush1.msra.mxu0 0.0
        %3597 = vmatprep.subr.mxu0 0.0
        %3598 = vmatpush1.msra.mxu0 0.0
        %3599 = vmatprep.subr.mxu0 0.0
        %3600 = vmatpush1.msra.mxu0 0.0
        %3601 = vmatprep.subr.mxu0 0.0
        %3602 = vmatpush1.msra.mxu0 0.0
        %3603 = vmatprep.subr.mxu0 0.0
        %3604 = vmatpush1.msra.mxu0 0.0
        %3605 = vmatprep.subr.mxu0 0.0
        %3606 = vmatpush1.msra.mxu0 0.0
        %3607 = vmatprep.subr.mxu0 0.0
        %3608 = vmatpush1.msra.mxu0 0.0
        %3609 = vmatprep.subr.mxu0 0.0
        %3610 = vmatpush1.msra.mxu0 0.0
        %3611 = vmatprep.subr.mxu0 0.0
        %3612 = vmatpush1.msra.mxu0 0.0
        %3613 = vmatprep.subr.mxu0 0.0
        %3614 = vmatpush1.msra.mxu0 0.0
        %3615 = vmatprep.subr.mxu0 0.0
        %3616 = vmatpush1.msra.mxu0 %v3580
        %3617 = vmatprep.subr.mxu0 0.0
        %3618 = vmatpush2.msra.mxu0 0.0
        %3619 = vmatprep.subr.mxu0 0.0
        %3620 = vmatpush2.msra.mxu0 0.0
        %3621 = vmatprep.subr.mxu0 0.0
        %3622 = vmatpush2.msra.mxu0 0.0
        %3623 = vmatprep.subr.mxu0 0.0
        %3624 = vmatpush2.msra.mxu0 0.0
        %3625 = vmatprep.subr.mxu0 0.0
        %3626 = vmatpush2.msra.mxu0 0.0
        %3627 = vmatprep.subr.mxu0 0.0
        %3628 = vmatpush2.msra.mxu0 0.0
        %3629 = vmatprep.subr.mxu0 0.0
        %3630 = vmatpush2.msra.mxu0 0.0
        %3631 = vmatprep.subr.mxu0 0.0
        %3632 = vmatpush2.msra.mxu0 0.0
        %3633 = vmatprep.subr.mxu0 0.0
        %3634 = vmatpush2.msra.mxu0 0.0
        %3635 = vmatprep.subr.mxu0 0.0
        %3636 = vmatpush2.msra.mxu0 0.0
        %3637 = vmatprep.subr.mxu0 0.0
        %3638 = vmatpush2.msra.mxu0 0.0
        %3639 = vmatprep.subr.mxu0 0.0
        %3640 = vmatpush2.msra.mxu0 0.0
        %3641 = vmatprep.subr.mxu0 0.0
        %3642 = vmatpush2.msra.mxu0 0.0
        %3643 = vmatprep.subr.mxu0 0.0
        %3644 = vmatpush2.msra.mxu0 0.0
        %3645 = vmatprep.subr.mxu0 0.0
        %3646 = vmatpush2.msra.mxu0 0.0
        %3647 = vmatprep.subr.mxu0 0.0
        %3648 = vmatpush2.msra.mxu0 0.0
        %3649 = vmatprep.mubr.f32.mxu0 0.0
        %3650 = vmatmul.mubr.f32.gmra.mxu0 %v3583
        %v3651 = vpop.f32.mrf.mxu0
        %v3652 = vadd.f32 0.0, %v3651
        %v3653 = vpop.f32.mrf.mxu0
        %3654 = vdwg.mxu0
        %3656 = vrot.lane.b32.xlu0 %v3652, 8
        %v3657 = vpop.permute.xlu0 %3656
        %3659 = vst.msk [vmem:[#allocation2] sm:$0xff] %vm1497, %v3657
        %3660 = vrot.lane.b32.xlu0 %v3320, 112
        %v3661 = vpop.permute.xlu0 %3660
        %3662 = vrot.lane.b32.xlu0 %v3320, 80
        %v3663 = vpop.permute.xlu0 %3662
        %v3664 = vsel %vm1148, %v3661, 0
        %v3666 = vsel %vm1148, %v3663, 0
        %3668 = vmatprep.subr.mxu0 0.0
        %3669 = vmatpush1.xpose.msra.mxu0 0.0
        %3670 = vmatprep.subr.mxu0 0.0
        %3671 = vmatpush1.xpose.msra.mxu0 0.0
        %3672 = vmatprep.subr.mxu0 0.0
        %3673 = vmatpush1.xpose.msra.mxu0 0.0
        %3674 = vmatprep.subr.mxu0 0.0
        %3675 = vmatpush1.xpose.msra.mxu0 0.0
        %3676 = vmatprep.subr.mxu0 0.0
        %3677 = vmatpush1.xpose.msra.mxu0 0.0
        %3678 = vmatprep.subr.mxu0 0.0
        %3679 = vmatpush1.xpose.msra.mxu0 0.0
        %3680 = vmatprep.subr.mxu0 0.0
        %3681 = vmatpush1.xpose.msra.mxu0 0.0
        %3682 = vmatprep.subr.mxu0 0.0
        %3683 = vmatpush1.xpose.msra.mxu0 0.0
        %3684 = vmatprep.subr.mxu0 0.0
        %3685 = vmatpush1.xpose.msra.mxu0 0.0
        %3686 = vmatprep.subr.mxu0 0.0
        %3687 = vmatpush1.xpose.msra.mxu0 0.0
        %3688 = vmatprep.subr.mxu0 0.0
        %3689 = vmatpush1.xpose.msra.mxu0 0.0
        %3690 = vmatprep.subr.mxu0 0.0
        %3691 = vmatpush1.xpose.msra.mxu0 0.0
        %3692 = vmatprep.subr.mxu0 0.0
        %3693 = vmatpush1.xpose.msra.mxu0 0.0
        %3694 = vmatprep.subr.mxu0 0.0
        %3695 = vmatpush1.xpose.msra.mxu0 0.0
        %3696 = vmatprep.subr.mxu0 0.0
        %3697 = vmatpush1.xpose.msra.mxu0 0.0
        %3698 = vmatprep.subr.mxu0 0.0
        %3699 = vmatpush1.xpose.msra.mxu0 %v3666
        %3700 = vmatprep.subr.mxu0 0.0
        %3701 = vmatpush2.xpose.msra.mxu0 0.0
        %3702 = vmatprep.subr.mxu0 0.0
        %3703 = vmatpush2.xpose.msra.mxu0 0.0
        %3704 = vmatprep.subr.mxu0 0.0
        %3705 = vmatpush2.xpose.msra.mxu0 0.0
        %3706 = vmatprep.subr.mxu0 0.0
        %3707 = vmatpush2.xpose.msra.mxu0 0.0
        %3708 = vmatprep.subr.mxu0 0.0
        %3709 = vmatpush2.xpose.msra.mxu0 0.0
        %3710 = vmatprep.subr.mxu0 0.0
        %3711 = vmatpush2.xpose.msra.mxu0 0.0
        %3712 = vmatprep.subr.mxu0 0.0
        %3713 = vmatpush2.xpose.msra.mxu0 0.0
        %3714 = vmatprep.subr.mxu0 0.0
        %3715 = vmatpush2.xpose.msra.mxu0 0.0
        %3716 = vmatprep.subr.mxu0 0.0
        %3717 = vmatpush2.xpose.msra.mxu0 0.0
        %3718 = vmatprep.subr.mxu0 0.0
        %3719 = vmatpush2.xpose.msra.mxu0 0.0
        %3720 = vmatprep.subr.mxu0 0.0
        %3721 = vmatpush2.xpose.msra.mxu0 0.0
        %3722 = vmatprep.subr.mxu0 0.0
        %3723 = vmatpush2.xpose.msra.mxu0 0.0
        %3724 = vmatprep.subr.mxu0 0.0
        %3725 = vmatpush2.xpose.msra.mxu0 0.0
        %3726 = vmatprep.subr.mxu0 0.0
        %3727 = vmatpush2.xpose.msra.mxu0 0.0
        %3728 = vmatprep.subr.mxu0 0.0
        %3729 = vmatpush2.xpose.msra.mxu0 0.0
        %3730 = vmatprep.subr.mxu0 0.0
        %3731 = vmatpush2.xpose.msra.mxu0 0.0
        %3732 = vmatprep.mubr.f32.mxu0 0.0
        %3733 = vmatmul.mubr.f32.gmra.mxu0 %v3664
        %v3734 = vpop.f32.mrf.mxu0
        %v3735 = vadd.f32 0.0, %v3734
        %v3736 = vpop.f32.mrf.mxu0
        %3737 = vdwg.mxu0
        %v3738 = vmul.f32 %v3735, 0.35355338
        %v3739 = vsel %vm1148, %v3738, -inf
        %3740 = vmax.xlane.f32.xlu0 %v3739
        %v3741 = vpop.xlane.xlu0 %3740
        %v3742 = vsub.f32 %v3738, %v3741
        %v3743 = vmul.f32 %v3742, 1.442695
        %v3744 = vpow.pop %v3743
        %v3745 = vsel %vm1148, %v3744, 0.0
        %3746 = vadd.xlane.f32.xlu0 %v3745
        %v3747 = vpop.xlane.xlu0 %3746
        %v3748 = vrcp.pop %v3747
        %v3749 = vmul.f32 %v3744, %v3748
        %3750 = vrot.lane.b32.xlu0 %v3320, 48
        %v3751 = vpop.permute.xlu0 %3750
        %v3754 = vsel %vm1148, %v3749, 0
        %3756 = vmatprep.subr.mxu0 0.0
        %3757 = vmatpush1.msra.mxu0 0.0
        %3758 = vmatprep.subr.mxu0 0.0
        %3759 = vmatpush1.msra.mxu0 0.0
        %3760 = vmatprep.subr.mxu0 0.0
        %3761 = vmatpush1.msra.mxu0 0.0
        %3762 = vmatprep.subr.mxu0 0.0
        %3763 = vmatpush1.msra.mxu0 0.0
        %3764 = vmatprep.subr.mxu0 0.0
        %3765 = vmatpush1.msra.mxu0 0.0
        %3766 = vmatprep.subr.mxu0 0.0
        %3767 = vmatpush1.msra.mxu0 0.0
        %3768 = vmatprep.subr.mxu0 0.0
        %3769 = vmatpush1.msra.mxu0 0.0
        %3770 = vmatprep.subr.mxu0 0.0
        %3771 = vmatpush1.msra.mxu0 0.0
        %3772 = vmatprep.subr.mxu0 0.0
        %3773 = vmatpush1.msra.mxu0 0.0
        %3774 = vmatprep.subr.mxu0 0.0
        %3775 = vmatpush1.msra.mxu0 0.0
        %3776 = vmatprep.subr.mxu0 0.0
        %3777 = vmatpush1.msra.mxu0 0.0
        %3778 = vmatprep.subr.mxu0 0.0
        %3779 = vmatpush1.msra.mxu0 0.0
        %3780 = vmatprep.subr.mxu0 0.0
        %3781 = vmatpush1.msra.mxu0 0.0
        %3782 = vmatprep.subr.mxu0 0.0
        %3783 = vmatpush1.msra.mxu0 0.0
        %3784 = vmatprep.subr.mxu0 0.0
        %3785 = vmatpush1.msra.mxu0 0.0
        %3786 = vmatprep.subr.mxu0 0.0
        %3787 = vmatpush1.msra.mxu0 %v3751
        %3788 = vmatprep.subr.mxu0 0.0
        %3789 = vmatpush2.msra.mxu0 0.0
        %3790 = vmatprep.subr.mxu0 0.0
        %3791 = vmatpush2.msra.mxu0 0.0
        %3792 = vmatprep.subr.mxu0 0.0
        %3793 = vmatpush2.msra.mxu0 0.0
        %3794 = vmatprep.subr.mxu0 0.0
        %3795 = vmatpush2.msra.mxu0 0.0
        %3796 = vmatprep.subr.mxu0 0.0
        %3797 = vmatpush2.msra.mxu0 0.0
        %3798 = vmatprep.subr.mxu0 0.0
        %3799 = vmatpush2.msra.mxu0 0.0
        %3800 = vmatprep.subr.mxu0 0.0
        %3801 = vmatpush2.msra.mxu0 0.0
        %3802 = vmatprep.subr.mxu0 0.0
        %3803 = vmatpush2.msra.mxu0 0.0
        %3804 = vmatprep.subr.mxu0 0.0
        %3805 = vmatpush2.msra.mxu0 0.0
        %3806 = vmatprep.subr.mxu0 0.0
        %3807 = vmatpush2.msra.mxu0 0.0
        %3808 = vmatprep.subr.mxu0 0.0
        %3809 = vmatpush2.msra.mxu0 0.0
        %3810 = vmatprep.subr.mxu0 0.0
        %3811 = vmatpush2.msra.mxu0 0.0
        %3812 = vmatprep.subr.mxu0 0.0
        %3813 = vmatpush2.msra.mxu0 0.0
        %3814 = vmatprep.subr.mxu0 0.0
        %3815 = vmatpush2.msra.mxu0 0.0
        %3816 = vmatprep.subr.mxu0 0.0
        %3817 = vmatpush2.msra.mxu0 0.0
        %3818 = vmatprep.subr.mxu0 0.0
        %3819 = vmatpush2.msra.mxu0 0.0
        %3820 = vmatprep.mubr.f32.mxu0 0.0
        %3821 = vmatmul.mubr.f32.gmra.mxu0 %v3754
        %v3822 = vpop.f32.mrf.mxu0
        %v3823 = vadd.f32 0.0, %v3822
        %v3824 = vpop.f32.mrf.mxu0
        %3825 = vdwg.mxu0
        %3827 = vrot.lane.b32.xlu0 %v3823, 16
        %v3828 = vpop.permute.xlu0 %3827
        %3830 = vst.msk [vmem:[#allocation2] sm:$0xff] %vm1676, %v3828
        %3831 = vrot.lane.b32.xlu0 %v3320, 104
        %v3832 = vpop.permute.xlu0 %3831
        %3833 = vrot.lane.b32.xlu0 %v3320, 72
        %v3834 = vpop.permute.xlu0 %3833
        %v3835 = vsel %vm1148, %v3832, 0
        %v3837 = vsel %vm1148, %v3834, 0
        %3839 = vmatprep.subr.mxu0 0.0
        %3840 = vmatpush1.xpose.msra.mxu0 0.0
        %3841 = vmatprep.subr.mxu0 0.0
        %3842 = vmatpush1.xpose.msra.mxu0 0.0
        %3843 = vmatprep.subr.mxu0 0.0
        %3844 = vmatpush1.xpose.msra.mxu0 0.0
        %3845 = vmatprep.subr.mxu0 0.0
        %3846 = vmatpush1.xpose.msra.mxu0 0.0
        %3847 = vmatprep.subr.mxu0 0.0
        %3848 = vmatpush1.xpose.msra.mxu0 0.0
        %3849 = vmatprep.subr.mxu0 0.0
        %3850 = vmatpush1.xpose.msra.mxu0 0.0
        %3851 = vmatprep.subr.mxu0 0.0
        %3852 = vmatpush1.xpose.msra.mxu0 0.0
        %3853 = vmatprep.subr.mxu0 0.0
        %3854 = vmatpush1.xpose.msra.mxu0 0.0
        %3855 = vmatprep.subr.mxu0 0.0
        %3856 = vmatpush1.xpose.msra.mxu0 0.0
        %3857 = vmatprep.subr.mxu0 0.0
        %3858 = vmatpush1.xpose.msra.mxu0 0.0
        %3859 = vmatprep.subr.mxu0 0.0
        %3860 = vmatpush1.xpose.msra.mxu0 0.0
        %3861 = vmatprep.subr.mxu0 0.0
        %3862 = vmatpush1.xpose.msra.mxu0 0.0
        %3863 = vmatprep.subr.mxu0 0.0
        %3864 = vmatpush1.xpose.msra.mxu0 0.0
        %3865 = vmatprep.subr.mxu0 0.0
        %3866 = vmatpush1.xpose.msra.mxu0 0.0
        %3867 = vmatprep.subr.mxu0 0.0
        %3868 = vmatpush1.xpose.msra.mxu0 0.0
        %3869 = vmatprep.subr.mxu0 0.0
        %3870 = vmatpush1.xpose.msra.mxu0 %v3837
        %3871 = vmatprep.subr.mxu0 0.0
        %3872 = vmatpush2.xpose.msra.mxu0 0.0
        %3873 = vmatprep.subr.mxu0 0.0
        %3874 = vmatpush2.xpose.msra.mxu0 0.0
        %3875 = vmatprep.subr.mxu0 0.0
        %3876 = vmatpush2.xpose.msra.mxu0 0.0
        %3877 = vmatprep.subr.mxu0 0.0
        %3878 = vmatpush2.xpose.msra.mxu0 0.0
        %3879 = vmatprep.subr.mxu0 0.0
        %3880 = vmatpush2.xpose.msra.mxu0 0.0
        %3881 = vmatprep.subr.mxu0 0.0
        %3882 = vmatpush2.xpose.msra.mxu0 0.0
        %3883 = vmatprep.subr.mxu0 0.0
        %3884 = vmatpush2.xpose.msra.mxu0 0.0
        %3885 = vmatprep.subr.mxu0 0.0
        %3886 = vmatpush2.xpose.msra.mxu0 0.0
        %3887 = vmatprep.subr.mxu0 0.0
        %3888 = vmatpush2.xpose.msra.mxu0 0.0
        %3889 = vmatprep.subr.mxu0 0.0
        %3890 = vmatpush2.xpose.msra.mxu0 0.0
        %3891 = vmatprep.subr.mxu0 0.0
        %3892 = vmatpush2.xpose.msra.mxu0 0.0
        %3893 = vmatprep.subr.mxu0 0.0
        %3894 = vmatpush2.xpose.msra.mxu0 0.0
        %3895 = vmatprep.subr.mxu0 0.0
        %3896 = vmatpush2.xpose.msra.mxu0 0.0
        %3897 = vmatprep.subr.mxu0 0.0
        %3898 = vmatpush2.xpose.msra.mxu0 0.0
        %3899 = vmatprep.subr.mxu0 0.0
        %3900 = vmatpush2.xpose.msra.mxu0 0.0
        %3901 = vmatprep.subr.mxu0 0.0
        %3902 = vmatpush2.xpose.msra.mxu0 0.0
        %3903 = vmatprep.mubr.f32.mxu0 0.0
        %3904 = vmatmul.mubr.f32.gmra.mxu0 %v3835
        %v3905 = vpop.f32.mrf.mxu0
        %v3906 = vadd.f32 0.0, %v3905
        %v3907 = vpop.f32.mrf.mxu0
        %3908 = vdwg.mxu0
        %v3909 = vmul.f32 %v3906, 0.35355338
        %v3910 = vsel %vm1148, %v3909, -inf
        %3911 = vmax.xlane.f32.xlu0 %v3910
        %v3912 = vpop.xlane.xlu0 %3911
        %v3913 = vsub.f32 %v3909, %v3912
        %v3914 = vmul.f32 %v3913, 1.442695
        %v3915 = vpow.pop %v3914
        %v3916 = vsel %vm1148, %v3915, 0.0
        %3917 = vadd.xlane.f32.xlu0 %v3916
        %v3918 = vpop.xlane.xlu0 %3917
        %v3919 = vrcp.pop %v3918
        %v3920 = vmul.f32 %v3915, %v3919
        %3921 = vrot.lane.b32.xlu0 %v3320, 40
        %v3922 = vpop.permute.xlu0 %3921
        %v3925 = vsel %vm1148, %v3920, 0
        %3927 = vmatprep.subr.mxu0 0.0
        %3928 = vmatpush1.msra.mxu0 0.0
        %3929 = vmatprep.subr.mxu0 0.0
        %3930 = vmatpush1.msra.mxu0 0.0
        %3931 = vmatprep.subr.mxu0 0.0
        %3932 = vmatpush1.msra.mxu0 0.0
        %3933 = vmatprep.subr.mxu0 0.0
        %3934 = vmatpush1.msra.mxu0 0.0
        %3935 = vmatprep.subr.mxu0 0.0
        %3936 = vmatpush1.msra.mxu0 0.0
        %3937 = vmatprep.subr.mxu0 0.0
        %3938 = vmatpush1.msra.mxu0 0.0
        %3939 = vmatprep.subr.mxu0 0.0
        %3940 = vmatpush1.msra.mxu0 0.0
        %3941 = vmatprep.subr.mxu0 0.0
        %3942 = vmatpush1.msra.mxu0 0.0
        %3943 = vmatprep.subr.mxu0 0.0
        %3944 = vmatpush1.msra.mxu0 0.0
        %3945 = vmatprep.subr.mxu0 0.0
        %3946 = vmatpush1.msra.mxu0 0.0
        %3947 = vmatprep.subr.mxu0 0.0
        %3948 = vmatpush1.msra.mxu0 0.0
        %3949 = vmatprep.subr.mxu0 0.0
        %3950 = vmatpush1.msra.mxu0 0.0
        %3951 = vmatprep.subr.mxu0 0.0
        %3952 = vmatpush1.msra.mxu0 0.0
        %3953 = vmatprep.subr.mxu0 0.0
        %3954 = vmatpush1.msra.mxu0 0.0
        %3955 = vmatprep.subr.mxu0 0.0
        %3956 = vmatpush1.msra.mxu0 0.0
        %3957 = vmatprep.subr.mxu0 0.0
        %3958 = vmatpush1.msra.mxu0 %v3922
        %3959 = vmatprep.subr.mxu0 0.0
        %3960 = vmatpush2.msra.mxu0 0.0
        %3961 = vmatprep.subr.mxu0 0.0
        %3962 = vmatpush2.msra.mxu0 0.0
        %3963 = vmatprep.subr.mxu0 0.0
        %3964 = vmatpush2.msra.mxu0 0.0
        %3965 = vmatprep.subr.mxu0 0.0
        %3966 = vmatpush2.msra.mxu0 0.0
        %3967 = vmatprep.subr.mxu0 0.0
        %3968 = vmatpush2.msra.mxu0 0.0
        %3969 = vmatprep.subr.mxu0 0.0
        %3970 = vmatpush2.msra.mxu0 0.0
        %3971 = vmatprep.subr.mxu0 0.0
        %3972 = vmatpush2.msra.mxu0 0.0
        %3973 = vmatprep.subr.mxu0 0.0
        %3974 = vmatpush2.msra.mxu0 0.0
        %3975 = vmatprep.subr.mxu0 0.0
        %3976 = vmatpush2.msra.mxu0 0.0
        %3977 = vmatprep.subr.mxu0 0.0
        %3978 = vmatpush2.msra.mxu0 0.0
        %3979 = vmatprep.subr.mxu0 0.0
        %3980 = vmatpush2.msra.mxu0 0.0
        %3981 = vmatprep.subr.mxu0 0.0
        %3982 = vmatpush2.msra.mxu0 0.0
        %3983 = vmatprep.subr.mxu0 0.0
        %3984 = vmatpush2.msra.mxu0 0.0
        %3985 = vmatprep.subr.mxu0 0.0
        %3986 = vmatpush2.msra.mxu0 0.0
        %3987 = vmatprep.subr.mxu0 0.0
        %3988 = vmatpush2.msra.mxu0 0.0
        %3989 = vmatprep.subr.mxu0 0.0
        %3990 = vmatpush2.msra.mxu0 0.0
        %3991 = vmatprep.mubr.f32.mxu0 0.0
        %3992 = vmatmul.mubr.f32.gmra.mxu0 %v3925
        %v3993 = vpop.f32.mrf.mxu0
        %v3994 = vadd.f32 0.0, %v3993
        %v3995 = vpop.f32.mrf.mxu0
        %3996 = vdwg.mxu0
        %3998 = vrot.lane.b32.xlu0 %v3994, 24
        %v3999 = vpop.permute.xlu0 %3998
        %4001 = vst.msk [vmem:[#allocation2] sm:$0xff] %vm1855, %v3999
        %v4002 = vld [vmem:[#allocation2] sm:$0xff]
        %s4003 = scalar_lea.vmem %s19, 32
        %v4004 = vld [vmem:[%s4003] sm:$0xff]
        %v4005 = vld [vmem:[%s4003 + $0x8] sm:$0xff]
        %v4006 = vld [vmem:[%s4003 + $0x10] sm:$0xff]
        %v4007 = vld [vmem:[%s4003 + $0x18] sm:$0xff]
        %v4008 = vld [vmem:[%s20 + $0x1] sm:$0x1]
        %v4009 = vlaneseq
        %v4010 = vshrl.u32 %v4009, 7
        %v4011 = vsub.s32 0, %v4010
        %v4012 = vrot.slane %v4008, %v4011
        %v4014 = vsel %vm1869, %v4002, 0
        %4016 = vmatprep.subr.mxu0 0.0
        %4017 = vmatpush1.msra.mxu0 0.0
        %4018 = vmatprep.subr.mxu0 0.0
        %4019 = vmatpush1.msra.mxu0 0.0
        %4020 = vmatprep.subr.mxu0 0.0
        %4021 = vmatpush1.msra.mxu0 0.0
        %4022 = vmatprep.subr.mxu0 0.0
        %4023 = vmatpush1.msra.mxu0 0.0
        %4024 = vmatprep.subr.mxu0 0.0
        %4025 = vmatpush1.msra.mxu0 0.0
        %4026 = vmatprep.subr.mxu0 0.0
        %4027 = vmatpush1.msra.mxu0 0.0
        %4028 = vmatprep.subr.mxu0 0.0
        %4029 = vmatpush1.msra.mxu0 0.0
        %4030 = vmatprep.subr.mxu0 0.0
        %4031 = vmatpush1.msra.mxu0 0.0
        %4032 = vmatprep.subr.mxu0 0.0
        %4033 = vmatpush1.msra.mxu0 0.0
        %4034 = vmatprep.subr.mxu0 0.0
        %4035 = vmatpush1.msra.mxu0 0.0
        %4036 = vmatprep.subr.mxu0 0.0
        %4037 = vmatpush1.msra.mxu0 0.0
        %4038 = vmatprep.subr.mxu0 0.0
        %4039 = vmatpush1.msra.mxu0 0.0
        %4040 = vmatprep.subr.mxu0 0.0
        %4041 = vmatpush1.msra.mxu0 %v4007
        %4042 = vmatprep.subr.mxu0 0.0
        %4043 = vmatpush1.msra.mxu0 %v4006
        %4044 = vmatprep.subr.mxu0 0.0
        %4045 = vmatpush1.msra.mxu0 %v4005
        %4046 = vmatprep.subr.mxu0 0.0
        %4047 = vmatpush1.msra.mxu0 %v4004
        %4048 = vmatprep.subr.mxu0 0.0
        %4049 = vmatpush2.msra.mxu0 0.0
        %4050 = vmatprep.subr.mxu0 0.0
        %4051 = vmatpush2.msra.mxu0 0.0
        %4052 = vmatprep.subr.mxu0 0.0
        %4053 = vmatpush2.msra.mxu0 0.0
        %4054 = vmatprep.subr.mxu0 0.0
        %4055 = vmatpush2.msra.mxu0 0.0
        %4056 = vmatprep.subr.mxu0 0.0
        %4057 = vmatpush2.msra.mxu0 0.0
        %4058 = vmatprep.subr.mxu0 0.0
        %4059 = vmatpush2.msra.mxu0 0.0
        %4060 = vmatprep.subr.mxu0 0.0
        %4061 = vmatpush2.msra.mxu0 0.0
        %4062 = vmatprep.subr.mxu0 0.0
        %4063 = vmatpush2.msra.mxu0 0.0
        %4064 = vmatprep.subr.mxu0 0.0
        %4065 = vmatpush2.msra.mxu0 0.0
        %4066 = vmatprep.subr.mxu0 0.0
        %4067 = vmatpush2.msra.mxu0 0.0
        %4068 = vmatprep.subr.mxu0 0.0
        %4069 = vmatpush2.msra.mxu0 0.0
        %4070 = vmatprep.subr.mxu0 0.0
        %4071 = vmatpush2.msra.mxu0 0.0
        %4072 = vmatprep.subr.mxu0 0.0
        %4073 = vmatpush2.msra.mxu0 0.0
        %4074 = vmatprep.subr.mxu0 0.0
        %4075 = vmatpush2.msra.mxu0 0.0
        %4076 = vmatprep.subr.mxu0 0.0
        %4077 = vmatpush2.msra.mxu0 0.0
        %4078 = vmatprep.subr.mxu0 0.0
        %4079 = vmatpush2.msra.mxu0 0.0
        %4080 = vmatprep.mubr.f32.mxu0 0.0
        %4081 = vmatmul.mubr.f32.gmra.mxu0 %v4014
        %v4082 = vpop.f32.mrf.mxu0
        %v4083 = vadd.f32 %v4012, %v4082
        %v4084 = vpop.f32.mrf.mxu0
        %4085 = vdwg.mxu0
        %v4086 = vadd.f32 %v3214, %v4083
        %v4087 = vld [vmem:[%s21 + $0x1] sm:$0x1]
        %v4088 = vld [vmem:[%s22 + $0x1] sm:$0x1]
        %v4089 = vsel %vm1869, %v4086, 0.0
        %4090 = vadd.xlane.f32.xlu0 %v4089
        %v4091 = vpop.xlane.xlu0 %4090
        %v4092 = vmul.f32 %v4091, %v1950
        %v4093 = vsub.f32 %v4086, %v4092
        %v4094 = vmul.f32 %v4093, %v4093
        %v4095 = vsel %vm1869, %v4094, 0.0
        %4096 = vadd.xlane.f32.xlu0 %v4095
        %v4097 = vpop.xlane.xlu0 %4096
        %v4098 = vmul.f32 %v4097, %v1950
        %v4099 = vadd.f32 %v4098, 1e-05
        %v4100 = vrsqrt.pop %v4099
        %v4101 = vmul.f32 %v4093, %v4100
        %v4102 = vlaneseq
        %v4103 = vshrl.u32 %v4102, 7
        %v4104 = vsub.s32 0, %v4103
        %v4105 = vrot.slane %v4087, %v4104
        %v4106 = vmul.f32 %v4101, %v4105
        %v4107 = vlaneseq
        %v4108 = vshrl.u32 %v4107, 7
        %v4109 = vsub.s32 0, %v4108
        %v4110 = vrot.slane %v4088, %v4109
        %v4111 = vadd.f32 %v4106, %v4110
        %s4112 = scalar_lea.vmem %s23, 32
        %v4113 = vld [vmem:[%s4112] sm:$0xff]
        %v4114 = vld [vmem:[%s4112 + $0x8] sm:$0xff]
        %v4115 = vld [vmem:[%s4112 + $0x10] sm:$0xff]
        %v4116 = vld [vmem:[%s4112 + $0x18] sm:$0xff]
        %v4117 = vld [vmem:[%s24 + $0x1] sm:$0x1]
        %v4118 = vlaneseq
        %v4119 = vshrl.u32 %v4118, 7
        %v4120 = vsub.s32 0, %v4119
        %v4121 = vrot.slane %v4117, %v4120
        %v4123 = vsel %vm1869, %v4111, 0
        %4125 = vmatprep.subr.mxu0 0.0
        %4126 = vmatpush1.msra.mxu0 0.0
        %4127 = vmatprep.subr.mxu0 0.0
        %4128 = vmatpush1.msra.mxu0 0.0
        %4129 = vmatprep.subr.mxu0 0.0
        %4130 = vmatpush1.msra.mxu0 0.0
        %4131 = vmatprep.subr.mxu0 0.0
        %4132 = vmatpush1.msra.mxu0 0.0
        %4133 = vmatprep.subr.mxu0 0.0
        %4134 = vmatpush1.msra.mxu0 0.0
        %4135 = vmatprep.subr.mxu0 0.0
        %4136 = vmatpush1.msra.mxu0 0.0
        %4137 = vmatprep.subr.mxu0 0.0
        %4138 = vmatpush1.msra.mxu0 0.0
        %4139 = vmatprep.subr.mxu0 0.0
        %4140 = vmatpush1.msra.mxu0 0.0
        %4141 = vmatprep.subr.mxu0 0.0
        %4142 = vmatpush1.msra.mxu0 0.0
        %4143 = vmatprep.subr.mxu0 0.0
        %4144 = vmatpush1.msra.mxu0 0.0
        %4145 = vmatprep.subr.mxu0 0.0
        %4146 = vmatpush1.msra.mxu0 0.0
        %4147 = vmatprep.subr.mxu0 0.0
        %4148 = vmatpush1.msra.mxu0 0.0
        %4149 = vmatprep.subr.mxu0 0.0
        %4150 = vmatpush1.msra.mxu0 %v4116
        %4151 = vmatprep.subr.mxu0 0.0
        %4152 = vmatpush1.msra.mxu0 %v4115
        %4153 = vmatprep.subr.mxu0 0.0
        %4154 = vmatpush1.msra.mxu0 %v4114
        %4155 = vmatprep.subr.mxu0 0.0
        %4156 = vmatpush1.msra.mxu0 %v4113
        %4157 = vmatprep.subr.mxu0 0.0
        %4158 = vmatpush2.msra.mxu0 0.0
        %4159 = vmatprep.subr.mxu0 0.0
        %4160 = vmatpush2.msra.mxu0 0.0
        %4161 = vmatprep.subr.mxu0 0.0
        %4162 = vmatpush2.msra.mxu0 0.0
        %4163 = vmatprep.subr.mxu0 0.0
        %4164 = vmatpush2.msra.mxu0 0.0
        %4165 = vmatprep.subr.mxu0 0.0
        %4166 = vmatpush2.msra.mxu0 0.0
        %4167 = vmatprep.subr.mxu0 0.0
        %4168 = vmatpush2.msra.mxu0 0.0
        %4169 = vmatprep.subr.mxu0 0.0
        %4170 = vmatpush2.msra.mxu0 0.0
        %4171 = vmatprep.subr.mxu0 0.0
        %4172 = vmatpush2.msra.mxu0 0.0
        %4173 = vmatprep.subr.mxu0 0.0
        %4174 = vmatpush2.msra.mxu0 0.0
        %4175 = vmatprep.subr.mxu0 0.0
        %4176 = vmatpush2.msra.mxu0 0.0
        %4177 = vmatprep.subr.mxu0 0.0
        %4178 = vmatpush2.msra.mxu0 0.0
        %4179 = vmatprep.subr.mxu0 0.0
        %4180 = vmatpush2.msra.mxu0 0.0
        %4181 = vmatprep.subr.mxu0 0.0
        %4182 = vmatpush2.msra.mxu0 0.0
        %4183 = vmatprep.subr.mxu0 0.0
        %4184 = vmatpush2.msra.mxu0 0.0
        %4185 = vmatprep.subr.mxu0 0.0
        %4186 = vmatpush2.msra.mxu0 0.0
        %4187 = vmatprep.subr.mxu0 0.0
        %4188 = vmatpush2.msra.mxu0 0.0
        %4189 = vmatprep.mubr.f32.mxu0 0.0
        %4190 = vmatmul.mubr.f32.gmra.mxu0 %v4123
        %v4191 = vpop.f32.mrf.mxu0
        %v4192 = vadd.f32 %v4121, %v4191
        %v4193 = vpop.f32.mrf.mxu0
        %4194 = vdwg.mxu0
        %v4195 = vmax.f32 %v4192, 0.0
        %s4196 = scalar_lea.vmem %s25, 64
        %v4197 = vld [vmem:[%s4196] sm:$0xff]
        %v4198 = vld [vmem:[%s4196 + $0x8] sm:$0xff]
        %v4199 = vld [vmem:[%s4196 + $0x10] sm:$0xff]
        %v4200 = vld [vmem:[%s4196 + $0x18] sm:$0xff]
        %v4201 = vld [vmem:[%s4196 + $0x20] sm:$0xff]
        %v4202 = vld [vmem:[%s4196 + $0x28] sm:$0xff]
        %v4203 = vld [vmem:[%s4196 + $0x30] sm:$0xff]
        %v4204 = vld [vmem:[%s4196 + $0x38] sm:$0xff]
        %v4205 = vld [vmem:[%s26 + $0x1] sm:$0x1]
        %v4206 = vlaneseq
        %v4207 = vshrl.u32 %v4206, 7
        %v4208 = vsub.s32 0, %v4207
        %v4209 = vrot.slane %v4205, %v4208
        %v4211 = vsel %vm2075, %v4195, 0
        %4213 = vmatprep.subr.mxu0 0.0
        %4214 = vmatpush1.msra.mxu0 0.0
        %4215 = vmatprep.subr.mxu0 0.0
        %4216 = vmatpush1.msra.mxu0 0.0
        %4217 = vmatprep.subr.mxu0 0.0
        %4218 = vmatpush1.msra.mxu0 0.0
        %4219 = vmatprep.subr.mxu0 0.0
        %4220 = vmatpush1.msra.mxu0 0.0
        %4221 = vmatprep.subr.mxu0 0.0
        %4222 = vmatpush1.msra.mxu0 0.0
        %4223 = vmatprep.subr.mxu0 0.0
        %4224 = vmatpush1.msra.mxu0 0.0
        %4225 = vmatprep.subr.mxu0 0.0
        %4226 = vmatpush1.msra.mxu0 0.0
        %4227 = vmatprep.subr.mxu0 0.0
        %4228 = vmatpush1.msra.mxu0 0.0
        %4229 = vmatprep.subr.mxu0 0.0
        %4230 = vmatpush1.msra.mxu0 %v4204
        %4231 = vmatprep.subr.mxu0 0.0
        %4232 = vmatpush1.msra.mxu0 %v4203
        %4233 = vmatprep.subr.mxu0 0.0
        %4234 = vmatpush1.msra.mxu0 %v4202
        %4235 = vmatprep.subr.mxu0 0.0
        %4236 = vmatpush1.msra.mxu0 %v4201
        %4237 = vmatprep.subr.mxu0 0.0
        %4238 = vmatpush1.msra.mxu0 %v4200
        %4239 = vmatprep.subr.mxu0 0.0
        %4240 = vmatpush1.msra.mxu0 %v4199
        %4241 = vmatprep.subr.mxu0 0.0
        %4242 = vmatpush1.msra.mxu0 %v4198
        %4243 = vmatprep.subr.mxu0 0.0
        %4244 = vmatpush1.msra.mxu0 %v4197
        %4245 = vmatprep.subr.mxu0 0.0
        %4246 = vmatpush2.msra.mxu0 0.0
        %4247 = vmatprep.subr.mxu0 0.0
        %4248 = vmatpush2.msra.mxu0 0.0
        %4249 = vmatprep.subr.mxu0 0.0
        %4250 = vmatpush2.msra.mxu0 0.0
        %4251 = vmatprep.subr.mxu0 0.0
        %4252 = vmatpush2.msra.mxu0 0.0
        %4253 = vmatprep.subr.mxu0 0.0
        %4254 = vmatpush2.msra.mxu0 0.0
        %4255 = vmatprep.subr.mxu0 0.0
        %4256 = vmatpush2.msra.mxu0 0.0
        %4257 = vmatprep.subr.mxu0 0.0
        %4258 = vmatpush2.msra.mxu0 0.0
        %4259 = vmatprep.subr.mxu0 0.0
        %4260 = vmatpush2.msra.mxu0 0.0
        %4261 = vmatprep.subr.mxu0 0.0
        %4262 = vmatpush2.msra.mxu0 0.0
        %4263 = vmatprep.subr.mxu0 0.0
        %4264 = vmatpush2.msra.mxu0 0.0
        %4265 = vmatprep.subr.mxu0 0.0
        %4266 = vmatpush2.msra.mxu0 0.0
        %4267 = vmatprep.subr.mxu0 0.0
        %4268 = vmatpush2.msra.mxu0 0.0
        %4269 = vmatprep.subr.mxu0 0.0
        %4270 = vmatpush2.msra.mxu0 0.0
        %4271 = vmatprep.subr.mxu0 0.0
        %4272 = vmatpush2.msra.mxu0 0.0
        %4273 = vmatprep.subr.mxu0 0.0
        %4274 = vmatpush2.msra.mxu0 0.0
        %4275 = vmatprep.subr.mxu0 0.0
        %4276 = vmatpush2.msra.mxu0 0.0
        %4277 = vmatprep.mubr.f32.mxu0 0.0
        %4278 = vmatmul.mubr.f32.gmra.mxu0 %v4211
        %v4279 = vpop.f32.mrf.mxu0
        %v4280 = vadd.f32 %v4209, %v4279
        %v4281 = vpop.f32.mrf.mxu0
        %4282 = vdwg.mxu0
        %v4283 = vadd.f32 %v4086, %v4280
        %4284 = vst.msk [vmem:[%s1003] sm:$0xff] %vm1869, %v4283
        %s4285 = sand.u32 %s629, 1
        %s4286 = scalar_lea.sflag [#allocation5], %s4285
        %s4287 = sand.u32 %s629, 1
        %s4288 = smul.addr %s4287, 8
        %s4289 = scalar_lea.vmem [#allocation27], %s4288
        // Predicated region
        $region189: #{encoder_io_forward.1} parent=127 // pred_check
          %p4290 = pneg %p639
        $region190: #{encoder_io_forward.1} parent=127 // pred_check_branch
          %4292 = sbr.rel (%p4290) target = $region192
        $region191: #{encoder_io_forward.1} parent=127 // pred_region
          %s4294 = ssub.s32 128, 128
          %4295 = vsyncadd %s4286, %s4294
          %s4296 = smul.addr %s49, 128
          %s4297 = scalar_lea.hbm %s27, %s4296
          %s4299 = sshll.u32 %s4289, 4
          %s4300 = int_to_ptr.vmem [resolvable:$true] %s4299
          %4302 = dma.vmem_to_hbm [thread:$0]  %s4300, 128, %s4297, %s4286
        $region192: #{encoder_io_forward.1} parent=127 // pred_fallthru
          _
      $region128: #{encoder_io_forward.1} parent=5 // pred_fallthru
        _
      %p4303 = scmp.le.s32.totalorder 2, %s44
      // Predicated region
      $region193: #{encoder_io_forward.1} parent=5 // pred_check
        %p4304 = pneg %p4303
      $region194: #{encoder_io_forward.1} parent=5 // pred_check_branch
        %4306 = sbr.rel (%p4304) target = $region196
      $region195: #{encoder_io_forward.1} parent=5 // pred_region
        %s4307 = ssub.s32 %s44, 2
        // Predicated region
        $region197: #{encoder_io_forward.1} parent=195 // pred_check
          %p4308 = pneg %p645
        $region198: #{encoder_io_forward.1} parent=195 // pred_check_branch
          %4310 = sbr.rel (%p4308) target = $region200
        $region199: #{encoder_io_forward.1} parent=195 // pred_region
          %s4311 = sand.u32 %s630, 1
          %s4312 = scalar_lea.sflag [#allocation5], %s4311
          %s4313 = sand.u32 %s630, 1
          %s4314 = smul.addr %s4313, 8
          %s4315 = scalar_lea.vmem [#allocation27], %s4314
          %4316 = dma.done %s4312, 128
        $region200: #{encoder_io_forward.1} parent=195 // pred_fallthru
          _
      $region196: #{encoder_io_forward.1} parent=5 // pred_fallthru
        _
    $region6: #{encoder_io_forward.1} parent=1 // loop_footer
      %s48 = sadd.s32 1, %s44
    $region7: #{encoder_io_forward.1} parent=1 // loop_footer_branch
      %43 = sbr.rel target = $region3
    $region8: #{encoder_io_forward.1} parent=1 // loop_exit
      _
    %4317 = vsyncpa [#allocation4], 1
    %s4318 = scalar_lea.sflag [#allocation4], 1
    %4319 = vsyncpa %s4318, 1
    %4320 = vsyncpa [#allocation7], 1
    %4321 = vsyncpa [#allocation10], 1
    %4322 = vsyncpa [#allocation13], 1
    %4323 = vsyncpa [#allocation16], 1
    %4324 = vsyncpa [#allocation19], 1
    %4325 = vsyncpa [#allocation22], 1
    %4326 = vsyncpa [#allocation25], 1
    %4327 = vsyncpa [#allocation5], 1
    %s4328 = scalar_lea.sflag [#allocation5], 1
    %4329 = vsyncpa %s4328, 1

</llo_original>
